<compile_context>
chip_gen: v6e
topology: v6e:2x2x1
jax: 0.10.0
libtpu: 0.0.40
codegen_flags: <defaults>
</compile_context>

<pallas_src>
import jax
import jax.numpy as jnp
from jax.experimental import pallas as pl
from jax.experimental.pallas import tpu as pltpu

BN_EPS = 1e-5
# Raised scoped-VMEM limit (v5e default is only 16 MiB); stays below v7x's
# 64 MiB physical VMEM.
_VMEM_LIMIT = 48 * 1024 * 1024


def _round_up(x, m):
    return (x + m - 1) // m * m


def _pick_tile_h(Ho, Wo, target_rows=2048):
    """Output rows per pass-1 grid step.

    Wants: TH | Ho, lane-dense tiles (TH*Wo % 128 == 0) unless the whole image
    is a single tile, and TH*Wo <= target_rows so double-buffered tiles fit the
    per-generation VMEM budget (target sized with v7x's 64 MiB in mind; v5e/v6e
    have more headroom)."""
    if Ho * Wo <= target_rows:
        return Ho
    best = None
    for th in range(1, Ho + 1):
        if Ho % th or th * Wo > target_rows or (th * Wo) % 128:
            continue
        best = th
    if best is None:
        # TODO(synk): masked-tail m tiling for widths with no 128-aligned
        # divisor; the whole-image fallback can exceed VMEM on huge images.
        best = Ho
    return best


def _pick_tile_m(M, Cout, vmem_budget_bytes=12 << 20):
    """Lane tile for the streaming BN+ReLU pass.

    Pass 2 has no conv halo, so it gets its own (bigger) lane-dense tiling,
    independent of the pass-1 row-tile choice."""
    per_elem = (2 + 4) * 2          # bf16 in + f32 out, double-buffered
    cap = max(128, vmem_budget_bytes // (per_elem * max(Cout, 1)))
    if M <= cap:
        return M
    best = None
    tm = 128
    while tm <= min(M, cap):
        if M % tm == 0:
            best = tm
        tm += 128
    return best if best is not None else M


def _make_conv_stats_kernel(*, KH, KW, TH, Wo, Cout, n_halo):
    m = TH * Wo

    def kernel(*refs):
        x_main = refs[0]                      # (TH, Wp, Cin) bf16
        halos = refs[1:1 + n_halo]            # n_halo x (1, Wp, Cin) bf16
        w_ref = refs[1 + n_halo]              # (K, Cout_p) bf16, resident
        y_ref = refs[2 + n_halo]              # (Cout, m) bf16 channels-first
        stats_ref = refs[3 + n_halo]          # (2, Cout) f32 [sum, sumsq]
        xf_ref = refs[4 + n_halo]             # scratch (TH+KH-1, Wp, Cin) bf16
        p_ref = refs[5 + n_halo]              # scratch (m, K) bf16 patch matrix

        cin = x_main.shape[-1]

        # Assemble the haloed input tile in VMEM.  The main TH rows and the
        # KH-1 single halo rows are separate pipelined views of the SAME
        # padded HBM array -> no duplicated halo storage / extra HBM pass.
        xf_ref[0:TH, :, :] = x_main[...]
        for j in range(n_halo):
            xf_ref[TH + j:TH + j + 1, :, :] = halos[j][...]

        # Build the (m, KH*KW*Cin) patch matrix once in VMEM, then a single
        # fused GEMM with K = KH*KW*Cin instead of KH*KW lane-sparse GEMMs.
        for kh in range(KH):
            for kw in range(KW):
                k0 = (kh * KW + kw) * cin
                p_ref[:, k0:k0 + cin] = (
                    xf_ref[kh:kh + TH, kw:kw + Wo, :].reshape(m, cin))

        acc = jnp.dot(p_ref[...], w_ref[...],
                      preferred_element_type=jnp.float32)     # (m, Cout_p) f32
        accr = acc[:, :Cout]                  # drop MXU lane padding

        # Per-tile BN partial statistics straight from the f32 accumulator
        # (stats stay f32; only the intermediate activation is cast to bf16).
        stats_ref[0:1, :] = jnp.sum(accr, axis=0, keepdims=True)
        stats_ref[1:2, :] = jnp.sum(accr * accr, axis=0, keepdims=True)

        # Channels-first bf16 intermediate: no padded channels in HBM, halved
        # writeback bytes, and a transpose-free lane-dense pass 2.
        y_ref[...] = jnp.transpose(acc)[:Cout, :].astype(y_ref.dtype)

    return kernel


def _bn_relu_kernel(y_ref, scale_ref, shift_ref, o_ref):
    """y_ref: (Cout, TM) bf16; scale/shift: (Cout, 1) f32; o_ref: (Cout, TM) f32.
    Pure streaming FMA + ReLU on the channels-first layout (no transpose)."""
    y = y_ref[...].astype(jnp.float32)
    o_ref[...] = jnp.maximum(y * scale_ref[...] + shift_ref[...], 0.0)


def conv_block_forward(x_nchw, w, b, gamma, beta, *, stride=1, padding=1,
                       eps=BN_EPS):
    """x: (N, Cin, H, W); w: (Cout, Cin, KH, KW); b/gamma/beta: (Cout,).
    Returns ReLU(BatchNorm2d(Conv2d(x))) in NCHW using batch (training) stats."""
    N, Cin, H, W = x_nchw.shape
    Cout, _, KH, KW = w.shape
    # TODO(synk): strided conv path not implemented in the fused kernel.
    assert stride == 1, "fused ConvBlock kernel currently supports stride=1"

    Ho = H + 2 * padding - KH + 1
    Wo = W + 2 * padding - KW + 1
    Hp = H + 2 * padding
    Wp = W + 2 * padding

    K = KH * KW * Cin
    Cout_p = _round_up(Cout, 128)       # MXU lane padding (VMEM only, not HBM)
    TH = _pick_tile_h(Ho, Wo)
    nH = Ho // TH
    m = TH * Wo
    n_halo = KH - 1

    # --- layout glue (plain JAX): pad once, no halo duplication, no im2col ---
    x_nhwc = jnp.transpose(x_nchw, (0, 2, 3, 1))
    xp = jnp.pad(x_nhwc, ((0, 0), (padding, padding), (padding, padding),
                          (0, 0))).astype(jnp.bfloat16)       # (N, Hp, Wp, Cin)

    # Weights -> (K, Cout_p) with K ordered (kh, kw, cin); zero-padded lanes.
    w2 = jnp.transpose(w, (2, 3, 1, 0)).reshape(K, Cout)
    w2 = jnp.pad(w2, ((0, 0), (0, Cout_p - Cout))).astype(jnp.bfloat16)
    # Conv bias `b` intentionally unused: it cancels under training-mode BN.
    del b

    # --- pass 1: fused-K conv GEMM + per-tile BN partial statistics ---
    kern1 = _make_conv_stats_kernel(KH=KH, KW=KW, TH=TH, Wo=Wo, Cout=Cout,
                                    n_halo=n_halo)
    x_specs = [pl.BlockSpec((None, TH, Wp, Cin), lambda n, t: (n, t, 0, 0))]
    for j in range(n_halo):
        # 1-row halo views of the same padded array (block size 1 -> the block
        # index is the element row index, so overlapping windows need no stack).
        x_specs.append(pl.BlockSpec(
            (None, 1, Wp, Cin),
            lambda n, t, j=j: (n, t * TH + TH + j, 0, 0)))

    y, stats = pl.pallas_call(
        kern1,
        grid=(N, nH),
        in_specs=x_specs + [pl.BlockSpec((K, Cout_p), lambda n, t: (0, 0))],
        out_specs=[
            pl.BlockSpec((None, Cout, m), lambda n, t: (n, 0, t)),
            pl.BlockSpec((None, None, 2, Cout), lambda n, t: (n, t, 0, 0)),
        ],
        out_shape=[
            jax.ShapeDtypeStruct((N, Cout, Ho * Wo), jnp.bfloat16),
            jax.ShapeDtypeStruct((N, nH, 2, Cout), jnp.float32),
        ],
        scratch_shapes=[
            pltpu.VMEM((TH + KH - 1, Wp, Cin), jnp.bfloat16),
            pltpu.VMEM((m, K), jnp.bfloat16),
        ],
        compiler_params=pltpu.CompilerParams(
            dimension_semantics=("parallel", "parallel"),
            vmem_limit_bytes=_VMEM_LIMIT),
    )(xp, *([xp] * n_halo), w2)

    # --- tiny JAX reduce: full-batch stats -> per-channel scale/shift ---
    # (f32 E[x^2]-mean^2; fine at these scales. TODO(synk): Welford-style
    # combine for very large N*Ho*Wo / large activation magnitudes.)
    cnt = jnp.float32(N * Ho * Wo)
    ch_sum = jnp.sum(stats[:, :, 0, :], axis=(0, 1))
    ch_ssq = jnp.sum(stats[:, :, 1, :], axis=(0, 1))
    mean = ch_sum / cnt
    var = jnp.maximum(ch_ssq / cnt - mean * mean, 0.0)   # biased (train-mode BN)
    scale = gamma.astype(jnp.float32) * jax.lax.rsqrt(var + eps)
    shift = beta.astype(jnp.float32) - mean * scale

    # --- pass 2: transpose-free streaming scale/shift + ReLU (own tiling) ---
    TM = _pick_tile_m(Ho * Wo, Cout)
    nM = (Ho * Wo) // TM
    out = pl.pallas_call(
        _bn_relu_kernel,
        grid=(N, nM),
        in_specs=[
            pl.BlockSpec((None, Cout, TM), lambda n, j: (n, 0, j)),
            pl.BlockSpec((Cout, 1), lambda n, j: (0, 0)),
            pl.BlockSpec((Cout, 1), lambda n, j: (0, 0)),
        ],
        out_specs=pl.BlockSpec((None, Cout, TM), lambda n, j: (n, 0, j)),
        out_shape=jax.ShapeDtypeStruct((N, Cout, Ho * Wo), jnp.float32),
        compiler_params=pltpu.CompilerParams(
            dimension_semantics=("parallel", "parallel"),
            vmem_limit_bytes=_VMEM_LIMIT),
    )(y, scale.reshape(Cout, 1), shift.reshape(Cout, 1))

    # Free reshape: output is already channels-first / NCHW-flat.
    return out.reshape(N, Cout, Ho, Wo)


def _reference(x, w, b, gamma, beta, eps=BN_EPS):
    # Same bf16 input rounding as the kernel so the check isolates kernel math.
    xb = x.astype(jnp.bfloat16).astype(jnp.float32)
    wb = w.astype(jnp.bfloat16).astype(jnp.float32)
    y = jax.lax.conv_general_dilated(
        xb, wb, window_strides=(1, 1), padding=((1, 1), (1, 1)),
        dimension_numbers=("NCHW", "OIHW", "NCHW"))
    y = y + b[None, :, None, None]           # bias kept here: must cancel in BN
    mean = jnp.mean(y, axis=(0, 2, 3), keepdims=True)
    var = jnp.var(y, axis=(0, 2, 3), keepdims=True)
    yn = (y - mean) * jax.lax.rsqrt(var + eps)
    yn = yn * gamma[None, :, None, None] + beta[None, :, None, None]
    return jnp.maximum(yn, 0.0)


if __name__ == "__main__":
    key = jax.random.PRNGKey(0)
    k_x, k_w, k_b = jax.random.split(key, 3)

    N, Cin, H, W = 2, 4, 16, 16
    Cout, KH, KW = 8, 3, 3

    x = jax.random.normal(k_x, (N, Cin, H, W), dtype=jnp.float32)

    fan_in = Cin * KH * KW
    bound = 1.0 / (fan_in ** 0.5)
    w = jax.random.uniform(k_w, (Cout, Cin, KH, KW), minval=-bound,
                           maxval=bound, dtype=jnp.float32)
    b = jax.random.uniform(k_b, (Cout,), minval=-bound, maxval=bound,
                           dtype=jnp.float32)
    gamma = jnp.ones((Cout,), jnp.float32)   # BatchNorm2d default weight
    beta = jnp.zeros((Cout,), jnp.float32)   # BatchNorm2d default bias

    fwd = jax.jit(conv_block_forward)
    out = fwd(x, w, b, gamma, beta)
    jax.block_until_ready(out)

    assert out.shape == (N, Cout, H, W)
    assert bool(jnp.all(out >= 0.0))          # ReLU
    ref = _reference(x, w, b, gamma, beta)
    err = float(jnp.max(jnp.abs(out - ref)))
    # bf16 intermediate adds up to ~2^-9 relative rounding on the conv output
    # before normalization; 2e-2 absolute bound comfortably covers it.
    assert err < 2e-2, f"max abs err vs reference = {err}"
    print("KERNEL_OK")
</pallas_src>

<mosaic_0001>
module attributes {stable_mosaic.version = 11 : i64} {
  func.func @kernel(%arg0: i32, %arg1: i32, %arg2: memref<1x16x18x4xbf16, #tpu.memory_space<vmem>>, %arg3: memref<1x1x18x4xbf16, #tpu.memory_space<vmem>>, %arg4: memref<1x1x18x4xbf16, #tpu.memory_space<vmem>>, %arg5: memref<36x128xbf16, #tpu.memory_space<vmem>>, %arg6: memref<1x8x256xbf16, #tpu.memory_space<vmem>>, %arg7: memref<1x1x2x8xf32, #tpu.memory_space<vmem>>, %arg8: memref<18x18x4xbf16, #tpu.memory_space<vmem>>, %arg9: memref<256x36xbf16, #tpu.memory_space<vmem>>) attributes {dimension_semantics = [#tpu.dimension_semantics<parallel>, #tpu.dimension_semantics<parallel>], iteration_bounds = array<i64: 2, 1>, scalar_prefetch = 0 : i64, scratch_operands = 2 : i64, tpu.core_type = #tpu.core_type<tc>, window_params = [{transform_indices = @transform_0, window_bounds = array<i64: 1, 16, 18, 4>}, {transform_indices = @transform_1, window_bounds = array<i64: 1, 1, 18, 4>}, {transform_indices = @transform_2, window_bounds = array<i64: 1, 1, 18, 4>}, {pipeline_mode = #tpu.pipeline_mode<synchronous>, transform_indices = @transform_3, window_bounds = array<i64: 36, 128>}, {transform_indices = @transform_4, window_bounds = array<i64: 1, 8, 256>}, {transform_indices = @transform_5, window_bounds = array<i64: 1, 1, 2, 8>}]} {
    %c0 = arith.constant 0 : index
    %c0_0 = arith.constant 0 : index
    %c0_1 = arith.constant 0 : index
    %c0_2 = arith.constant 0 : index
    %0 = vector.load %arg2[%c0, %c0_0, %c0_1, %c0_2] : memref<1x16x18x4xbf16, #tpu.memory_space<vmem>>, vector<1x16x18x4xbf16>
    %1 = vector.shape_cast %0 : vector<1x16x18x4xbf16> to vector<16x18x4xbf16>
    %c0_3 = arith.constant 0 : index
    %c0_4 = arith.constant 0 : index
    %c0_5 = arith.constant 0 : index
    %2 = vector.load %arg8[%c0_3, %c0_4, %c0_5] : memref<18x18x4xbf16, #tpu.memory_space<vmem>>, vector<16x18x4xbf16>
    tpu.vector_store %arg8[%c0_3, %c0_4, %c0_5], %1 {strides = array<i32>} : memref<18x18x4xbf16, #tpu.memory_space<vmem>>, vector<16x18x4xbf16>,
    %c0_6 = arith.constant 0 : index
    %c0_7 = arith.constant 0 : index
    %c0_8 = arith.constant 0 : index
    %c0_9 = arith.constant 0 : index
    %3 = vector.load %arg3[%c0_6, %c0_7, %c0_8, %c0_9] : memref<1x1x18x4xbf16, #tpu.memory_space<vmem>>, vector<1x1x18x4xbf16>
    %4 = vector.shape_cast %3 : vector<1x1x18x4xbf16> to vector<1x18x4xbf16>
    %c16 = arith.constant 16 : index
    %c0_10 = arith.constant 0 : index
    %c0_11 = arith.constant 0 : index
    %5 = vector.load %arg8[%c16, %c0_10, %c0_11] : memref<18x18x4xbf16, #tpu.memory_space<vmem>>, vector<1x18x4xbf16>
    tpu.vector_store %arg8[%c16, %c0_10, %c0_11], %4 {strides = array<i32>} : memref<18x18x4xbf16, #tpu.memory_space<vmem>>, vector<1x18x4xbf16>,
    %c0_12 = arith.constant 0 : index
    %c0_13 = arith.constant 0 : index
    %c0_14 = arith.constant 0 : index
    %c0_15 = arith.constant 0 : index
    %6 = vector.load %arg4[%c0_12, %c0_13, %c0_14, %c0_15] : memref<1x1x18x4xbf16, #tpu.memory_space<vmem>>, vector<1x1x18x4xbf16>
    %7 = vector.shape_cast %6 : vector<1x1x18x4xbf16> to vector<1x18x4xbf16>
    %c17 = arith.constant 17 : index
    %c0_16 = arith.constant 0 : index
    %c0_17 = arith.constant 0 : index
    %8 = vector.load %arg8[%c17, %c0_16, %c0_17] : memref<18x18x4xbf16, #tpu.memory_space<vmem>>, vector<1x18x4xbf16>
    tpu.vector_store %arg8[%c17, %c0_16, %c0_17], %7 {strides = array<i32>} : memref<18x18x4xbf16, #tpu.memory_space<vmem>>, vector<1x18x4xbf16>,
    %c0_18 = arith.constant 0 : index
    %c0_19 = arith.constant 0 : index
    %c0_20 = arith.constant 0 : index
    %9 = vector.load %arg8[%c0_18, %c0_19, %c0_20] : memref<18x18x4xbf16, #tpu.memory_space<vmem>>, vector<16x16x4xbf16>
    %10 = vector.shape_cast %9 : vector<16x16x4xbf16> to vector<256x4xbf16>
    %c0_21 = arith.constant 0 : index
    %c0_22 = arith.constant 0 : index
    %11 = vector.load %arg9[%c0_21, %c0_22] : memref<256x36xbf16, #tpu.memory_space<vmem>>, vector<256x4xbf16>
    tpu.vector_store %arg9[%c0_21, %c0_22], %10 {strides = array<i32>} : memref<256x36xbf16, #tpu.memory_space<vmem>>, vector<256x4xbf16>,
    %c0_23 = arith.constant 0 : index
    %c1 = arith.constant 1 : index
    %c0_24 = arith.constant 0 : index
    %12 = vector.load %arg8[%c0_23, %c1, %c0_24] : memref<18x18x4xbf16, #tpu.memory_space<vmem>>, vector<16x16x4xbf16>
    %13 = vector.shape_cast %12 : vector<16x16x4xbf16> to vector<256x4xbf16>
    %c0_25 = arith.constant 0 : index
    %c4 = arith.constant 4 : index
    %14 = vector.load %arg9[%c0_25, %c4] : memref<256x36xbf16, #tpu.memory_space<vmem>>, vector<256x4xbf16>
    tpu.vector_store %arg9[%c0_25, %c4], %13 {strides = array<i32>} : memref<256x36xbf16, #tpu.memory_space<vmem>>, vector<256x4xbf16>,
    %c0_26 = arith.constant 0 : index
    %c2 = arith.constant 2 : index
    %c0_27 = arith.constant 0 : index
    %15 = vector.load %arg8[%c0_26, %c2, %c0_27] : memref<18x18x4xbf16, #tpu.memory_space<vmem>>, vector<16x16x4xbf16>
    %16 = vector.shape_cast %15 : vector<16x16x4xbf16> to vector<256x4xbf16>
    %c0_28 = arith.constant 0 : index
    %c8 = arith.constant 8 : index
    %17 = vector.load %arg9[%c0_28, %c8] : memref<256x36xbf16, #tpu.memory_space<vmem>>, vector<256x4xbf16>
    tpu.vector_store %arg9[%c0_28, %c8], %16 {strides = array<i32>} : memref<256x36xbf16, #tpu.memory_space<vmem>>, vector<256x4xbf16>,
    %c1_29 = arith.constant 1 : index
    %c0_30 = arith.constant 0 : index
    %c0_31 = arith.constant 0 : index
    %18 = vector.load %arg8[%c1_29, %c0_30, %c0_31] : memref<18x18x4xbf16, #tpu.memory_space<vmem>>, vector<16x16x4xbf16>
    %19 = vector.shape_cast %18 : vector<16x16x4xbf16> to vector<256x4xbf16>
    %c0_32 = arith.constant 0 : index
    %c12 = arith.constant 12 : index
    %20 = vector.load %arg9[%c0_32, %c12] : memref<256x36xbf16, #tpu.memory_space<vmem>>, vector<256x4xbf16>
    tpu.vector_store %arg9[%c0_32, %c12], %19 {strides = array<i32>} : memref<256x36xbf16, #tpu.memory_space<vmem>>, vector<256x4xbf16>,
    %c1_33 = arith.constant 1 : index
    %c1_34 = arith.constant 1 : index
    %c0_35 = arith.constant 0 : index
    %21 = vector.load %arg8[%c1_33, %c1_34, %c0_35] : memref<18x18x4xbf16, #tpu.memory_space<vmem>>, vector<16x16x4xbf16>
    %22 = vector.shape_cast %21 : vector<16x16x4xbf16> to vector<256x4xbf16>
    %c0_36 = arith.constant 0 : index
    %c16_37 = arith.constant 16 : index
    %23 = vector.load %arg9[%c0_36, %c16_37] : memref<256x36xbf16, #tpu.memory_space<vmem>>, vector<256x4xbf16>
    tpu.vector_store %arg9[%c0_36, %c16_37], %22 {strides = array<i32>} : memref<256x36xbf16, #tpu.memory_space<vmem>>, vector<256x4xbf16>,
    %c1_38 = arith.constant 1 : index
    %c2_39 = arith.constant 2 : index
    %c0_40 = arith.constant 0 : index
    %24 = vector.load %arg8[%c1_38, %c2_39, %c0_40] : memref<18x18x4xbf16, #tpu.memory_space<vmem>>, vector<16x16x4xbf16>
    %25 = vector.shape_cast %24 : vector<16x16x4xbf16> to vector<256x4xbf16>
    %c0_41 = arith.constant 0 : index
    %c20 = arith.constant 20 : index
    %26 = vector.load %arg9[%c0_41, %c20] : memref<256x36xbf16, #tpu.memory_space<vmem>>, vector<256x4xbf16>
    tpu.vector_store %arg9[%c0_41, %c20], %25 {strides = array<i32>} : memref<256x36xbf16, #tpu.memory_space<vmem>>, vector<256x4xbf16>,
    %c2_42 = arith.constant 2 : index
    %c0_43 = arith.constant 0 : index
    %c0_44 = arith.constant 0 : index
    %27 = vector.load %arg8[%c2_42, %c0_43, %c0_44] : memref<18x18x4xbf16, #tpu.memory_space<vmem>>, vector<16x16x4xbf16>
    %28 = vector.shape_cast %27 : vector<16x16x4xbf16> to vector<256x4xbf16>
    %c0_45 = arith.constant 0 : index
    %c24 = arith.constant 24 : index
    %29 = vector.load %arg9[%c0_45, %c24] : memref<256x36xbf16, #tpu.memory_space<vmem>>, vector<256x4xbf16>
    tpu.vector_store %arg9[%c0_45, %c24], %28 {strides = array<i32>} : memref<256x36xbf16, #tpu.memory_space<vmem>>, vector<256x4xbf16>,
    %c2_46 = arith.constant 2 : index
    %c1_47 = arith.constant 1 : index
    %c0_48 = arith.constant 0 : index
    %30 = vector.load %arg8[%c2_46, %c1_47, %c0_48] : memref<18x18x4xbf16, #tpu.memory_space<vmem>>, vector<16x16x4xbf16>
    %31 = vector.shape_cast %30 : vector<16x16x4xbf16> to vector<256x4xbf16>
    %c0_49 = arith.constant 0 : index
    %c28 = arith.constant 28 : index
    %32 = vector.load %arg9[%c0_49, %c28] : memref<256x36xbf16, #tpu.memory_space<vmem>>, vector<256x4xbf16>
    tpu.vector_store %arg9[%c0_49, %c28], %31 {strides = array<i32>} : memref<256x36xbf16, #tpu.memory_space<vmem>>, vector<256x4xbf16>,
    %c2_50 = arith.constant 2 : index
    %c2_51 = arith.constant 2 : index
    %c0_52 = arith.constant 0 : index
    %33 = vector.load %arg8[%c2_50, %c2_51, %c0_52] : memref<18x18x4xbf16, #tpu.memory_space<vmem>>, vector<16x16x4xbf16>
    %34 = vector.shape_cast %33 : vector<16x16x4xbf16> to vector<256x4xbf16>
    %c0_53 = arith.constant 0 : index
    %c32 = arith.constant 32 : index
    %35 = vector.load %arg9[%c0_53, %c32] : memref<256x36xbf16, #tpu.memory_space<vmem>>, vector<256x4xbf16>
    tpu.vector_store %arg9[%c0_53, %c32], %34 {strides = array<i32>} : memref<256x36xbf16, #tpu.memory_space<vmem>>, vector<256x4xbf16>,
    %c0_54 = arith.constant 0 : index
    %c0_55 = arith.constant 0 : index
    %36 = vector.load %arg9[%c0_54, %c0_55] : memref<256x36xbf16, #tpu.memory_space<vmem>>, vector<256x36xbf16>
    %c0_56 = arith.constant 0 : index
    %c0_57 = arith.constant 0 : index
    %37 = vector.load %arg5[%c0_56, %c0_57] : memref<36x128xbf16, #tpu.memory_space<vmem>>, vector<36x128xbf16>
    %cst = arith.constant dense<0.000000e+00> : vector<256x128xf32>
    %38 = tpu.matmul %36, %37, %cst {dimension_numbers = #tpu.dot_dimension_numbers<[1], [0], [0], [1], [0, 0, 1, 1], [], []>} : vector<256x36xbf16>, vector<36x128xbf16>, vector<256x128xf32> -> vector<256x128xf32>
    %39 = vector.extract_strided_slice %38 {offsets = [0, 0], sizes = [256, 8], strides = [1, 1]} : vector<256x128xf32> to vector<256x8xf32>
    %cst_58 = arith.constant dense<0.000000e+00> : vector<8xf32>
    %40 = vector.multi_reduction <add>, %39, %cst_58 [0] : vector<256x8xf32> to vector<8xf32>
    %41 = vector.shape_cast %40 : vector<8xf32> to vector<1x8xf32>
    %c0_59 = arith.constant 0 : index
    %c0_60 = arith.constant 0 : index
    %c0_61 = arith.constant 0 : index
    %c0_62 = arith.constant 0 : index
    %42 = vector.load %arg7[%c0_59, %c0_60, %c0_61, %c0_62] : memref<1x1x2x8xf32, #tpu.memory_space<vmem>>, vector<1x1x1x8xf32>
    %43 = vector.shape_cast %42 : vector<1x1x1x8xf32> to vector<1x8xf32>
    %44 = vector.shape_cast %41 : vector<1x8xf32> to vector<1x1x1x8xf32>
    tpu.vector_store %arg7[%c0_59, %c0_60, %c0_61, %c0_62], %44 {strides = array<i32>} : memref<1x1x2x8xf32, #tpu.memory_space<vmem>>, vector<1x1x1x8xf32>,
    %45 = arith.mulf %39, %39 : vector<256x8xf32>
    %cst_63 = arith.constant dense<0.000000e+00> : vector<8xf32>
    %46 = vector.multi_reduction <add>, %45, %cst_63 [0] : vector<256x8xf32> to vector<8xf32>
    %47 = vector.shape_cast %46 : vector<8xf32> to vector<1x8xf32>
    %c0_64 = arith.constant 0 : index
    %c0_65 = arith.constant 0 : index
    %c1_66 = arith.constant 1 : index
    %c0_67 = arith.constant 0 : index
    %48 = vector.load %arg7[%c0_64, %c0_65, %c1_66, %c0_67] : memref<1x1x2x8xf32, #tpu.memory_space<vmem>>, vector<1x1x1x8xf32>
    %49 = vector.shape_cast %48 : vector<1x1x1x8xf32> to vector<1x8xf32>
    %50 = vector.shape_cast %47 : vector<1x8xf32> to vector<1x1x1x8xf32>
    tpu.vector_store %arg7[%c0_64, %c0_65, %c1_66, %c0_67], %50 {strides = array<i32>} : memref<1x1x2x8xf32, #tpu.memory_space<vmem>>, vector<1x1x1x8xf32>,
    %51 = tpu.transpose %38, [1, 0] : vector<256x128xf32> -> vector<128x256xf32>
    %52 = vector.extract_strided_slice %51 {offsets = [0, 0], sizes = [8, 256], strides = [1, 1]} : vector<128x256xf32> to vector<8x256xf32>
    %53 = arith.truncf %52 : vector<8x256xf32> to vector<8x256xbf16>
    %c0_68 = arith.constant 0 : index
    %c0_69 = arith.constant 0 : index
    %c0_70 = arith.constant 0 : index
    %54 = vector.load %arg6[%c0_68, %c0_69, %c0_70] : memref<1x8x256xbf16, #tpu.memory_space<vmem>>, vector<1x8x256xbf16>
    %55 = vector.shape_cast %54 : vector<1x8x256xbf16> to vector<8x256xbf16>
    %56 = vector.shape_cast %53 : vector<8x256xbf16> to vector<1x8x256xbf16>
    tpu.vector_store %arg6[%c0_68, %c0_69, %c0_70], %56 {strides = array<i32>} : memref<1x8x256xbf16, #tpu.memory_space<vmem>>, vector<1x8x256xbf16>,
    return
  }
  func.func @transform_0(%arg0: i32, %arg1: i32) -> (i32, i32, i32, i32) {
    %c0_i32 = arith.constant 0 : i32
    %c0_i32_0 = arith.constant 0 : i32
    %c0_i32_1 = arith.constant 0 : i32
    return %arg0, %arg1, %c0_i32, %c0_i32_0 : i32, i32, i32, i32
  }
  func.func @transform_1(%arg0: i32, %arg1: i32) -> (i32, i32, i32, i32) {
    %c16_i32 = arith.constant 16 : i32
    %0 = arith.muli %arg1, %c16_i32 : i32
    %c16_i32_0 = arith.constant 16 : i32
    %1 = arith.addi %0, %c16_i32_0 : i32
    %c0_i32 = arith.constant 0 : i32
    %2 = arith.addi %1, %c0_i32 : i32
    %c0_i32_1 = arith.constant 0 : i32
    %c0_i32_2 = arith.constant 0 : i32
    %c0_i32_3 = arith.constant 0 : i32
    return %arg0, %2, %c0_i32_1, %c0_i32_2 : i32, i32, i32, i32
  }
  func.func @transform_2(%arg0: i32, %arg1: i32) -> (i32, i32, i32, i32) {
    %c16_i32 = arith.constant 16 : i32
    %0 = arith.muli %arg1, %c16_i32 : i32
    %c16_i32_0 = arith.constant 16 : i32
    %1 = arith.addi %0, %c16_i32_0 : i32
    %c1_i32 = arith.constant 1 : i32
    %2 = arith.addi %1, %c1_i32 : i32
    %c0_i32 = arith.constant 0 : i32
    %c0_i32_1 = arith.constant 0 : i32
    %c0_i32_2 = arith.constant 0 : i32
    return %arg0, %2, %c0_i32, %c0_i32_1 : i32, i32, i32, i32
  }
  func.func @transform_3(%arg0: i32, %arg1: i32) -> (i32, i32) {
    %c0_i32 = arith.constant 0 : i32
    %c0_i32_0 = arith.constant 0 : i32
    %c0_i32_1 = arith.constant 0 : i32
    return %c0_i32, %c0_i32_0 : i32, i32
  }
  func.func @transform_4(%arg0: i32, %arg1: i32) -> (i32, i32, i32) {
    %c0_i32 = arith.constant 0 : i32
    %c0_i32_0 = arith.constant 0 : i32
    return %arg0, %c0_i32, %arg1 : i32, i32, i32
  }
  func.func @transform_5(%arg0: i32, %arg1: i32) -> (i32, i32, i32, i32) {
    %c0_i32 = arith.constant 0 : i32
    %c0_i32_0 = arith.constant 0 : i32
    %c0_i32_1 = arith.constant 0 : i32
    return %arg0, %arg1, %c0_i32, %c0_i32_0 : i32, i32, i32, i32
  }
}

module attributes {stable_mosaic.version = 11 : i64} {
  func.func @_bn_relu_kernel(%arg0: i32, %arg1: i32, %arg2: memref<1x8x256xbf16, #tpu.memory_space<vmem>>, %arg3: memref<8x1xf32, #tpu.memory_space<vmem>>, %arg4: memref<8x1xf32, #tpu.memory_space<vmem>>, %arg5: memref<1x8x256xf32, #tpu.memory_space<vmem>>) attributes {dimension_semantics = [#tpu.dimension_semantics<parallel>, #tpu.dimension_semantics<parallel>], iteration_bounds = array<i64: 2, 1>, scalar_prefetch = 0 : i64, scratch_operands = 0 : i64, tpu.core_type = #tpu.core_type<tc>, window_params = [{transform_indices = @transform_0, window_bounds = array<i64: 1, 8, 256>}, {pipeline_mode = #tpu.pipeline_mode<synchronous>, transform_indices = @transform_1, window_bounds = array<i64: 8, 1>}, {pipeline_mode = #tpu.pipeline_mode<synchronous>, transform_indices = @transform_2, window_bounds = array<i64: 8, 1>}, {transform_indices = @transform_3, window_bounds = array<i64: 1, 8, 256>}]} {
    %c0 = arith.constant 0 : index
    %c0_0 = arith.constant 0 : index
    %c0_1 = arith.constant 0 : index
    %0 = vector.load %arg2[%c0, %c0_0, %c0_1] : memref<1x8x256xbf16, #tpu.memory_space<vmem>>, vector<1x8x256xbf16>
    %1 = vector.shape_cast %0 : vector<1x8x256xbf16> to vector<8x256xbf16>
    %2 = arith.extf %1 : vector<8x256xbf16> to vector<8x256xf32>
    %c0_2 = arith.constant 0 : index
    %c0_3 = arith.constant 0 : index
    %3 = vector.load %arg3[%c0_2, %c0_3] : memref<8x1xf32, #tpu.memory_space<vmem>>, vector<8x1xf32>
    %4 = vector.broadcast %3 : vector<8x1xf32> to vector<8x256xf32>
    %5 = arith.mulf %2, %4 : vector<8x256xf32>
    %c0_4 = arith.constant 0 : index
    %c0_5 = arith.constant 0 : index
    %6 = vector.load %arg4[%c0_4, %c0_5] : memref<8x1xf32, #tpu.memory_space<vmem>>, vector<8x1xf32>
    %7 = vector.broadcast %6 : vector<8x1xf32> to vector<8x256xf32>
    %8 = arith.addf %5, %7 : vector<8x256xf32>
    %cst = arith.constant 0.000000e+00 : f32
    %9 = vector.broadcast %cst : f32 to vector<8x256xf32>
    %10 = arith.maximumf %8, %9 : vector<8x256xf32>
    %c0_6 = arith.constant 0 : index
    %c0_7 = arith.constant 0 : index
    %c0_8 = arith.constant 0 : index
    %11 = vector.load %arg5[%c0_6, %c0_7, %c0_8] : memref<1x8x256xf32, #tpu.memory_space<vmem>>, vector<1x8x256xf32>
    %12 = vector.shape_cast %11 : vector<1x8x256xf32> to vector<8x256xf32>
    %13 = vector.shape_cast %10 : vector<8x256xf32> to vector<1x8x256xf32>
    tpu.vector_store %arg5[%c0_6, %c0_7, %c0_8], %13 {strides = array<i32>} : memref<1x8x256xf32, #tpu.memory_space<vmem>>, vector<1x8x256xf32>,
    return
  }
  func.func @transform_0(%arg0: i32, %arg1: i32) -> (i32, i32, i32) {
    %c0_i32 = arith.constant 0 : i32
    %c0_i32_0 = arith.constant 0 : i32
    return %arg0, %c0_i32, %arg1 : i32, i32, i32
  }
  func.func @transform_1(%arg0: i32, %arg1: i32) -> (i32, i32) {
    %c0_i32 = arith.constant 0 : i32
    %c0_i32_0 = arith.constant 0 : i32
    %c0_i32_1 = arith.constant 0 : i32
    return %c0_i32, %c0_i32_0 : i32, i32
  }
  func.func @transform_2(%arg0: i32, %arg1: i32) -> (i32, i32) {
    %c0_i32 = arith.constant 0 : i32
    %c0_i32_0 = arith.constant 0 : i32
    %c0_i32_1 = arith.constant 0 : i32
    return %c0_i32, %c0_i32_0 : i32, i32
  }
  func.func @transform_3(%arg0: i32, %arg1: i32) -> (i32, i32, i32) {
    %c0_i32 = arith.constant 0 : i32
    %c0_i32_0 = arith.constant 0 : i32
    return %arg0, %c0_i32, %arg1 : i32, i32, i32
  }
}

</mosaic_0001>

<llo_original>
// kernel: conv_block_forward.3
$region0: #{conv_block_forward.3}
  #allocation0 [shape = 'u32[]', space=smem, size = 0x4, offset = 0x4, fixed_abs, tag = 'smem constant byte address 0x4 - core index']
  #allocation1 [shape = 'u32[144,128]{1,0:T(1,128)}', space=vmem, size = 0x12000, scoped, tag = 'internal scratch']
  %s0 = inlined_call_operand.vmem [shape: bf16[2,8,256], index: 0, kind: input, shape index: {}]
  %s1 = inlined_call_operand.vmem [shape: f32[8,1], index: 1, kind: input, shape index: {}]
  %s2 = inlined_call_operand.vmem [shape: f32[8,1], index: 2, kind: input, shape index: {}]
  %s3 = inlined_call_operand.vmem [shape: f32[2,8,256], index: 3, kind: output, shape index: {}]
  %s4 = sld [smem:[#allocation0]]
  $region45: #{conv_block_forward.3} parent=0
    _
  %s6 = ssub.s32 1, %s4
  %s7 = scalar_select 0, %s6, %s4
  loop: start=0, step=1, limit=4
  $region2: #{conv_block_forward.3} parent=0 // loop_pre_header
    _
  $region3: #{conv_block_forward.3} parent=0 // loop_header
    %s9 = sphi 0, %s13
    %p10 = scmp.ge.s32.totalorder %s9, 4
    %s16 = sphi 0, %s28
    %s17 = sphi 0, %s24
    %s18 = sphi 0, %s16
    %s19 = sphi 0, %s17
    %s20 = sphi 0, %s18
    %s21 = sphi 0, %s19
    %s33 = sphi 0, %s35
    %s36 = sphi 0, %s33
    %s37 = sphi 0, %s36
    %s53 = sphi 0, %s37
    %s57 = sphi 0, %s57
    %s59 = sphi 0, %s57
    %s60 = sphi 0, %s59
    %s74 = sphi 0, %s60
    %s78 = sphi 0, %s78
    %s80 = sphi 0, %s78
    %s81 = sphi 0, %s80
    %s95 = sphi 0, %s81
    %s103 = sphi 0, %s105
    %s106 = sphi 0, %s103
    %s107 = sphi 0, %s106
    %s123 = sphi 0, %s107
  $region4: #{conv_block_forward.3} parent=0 // loop_header_branch
    %12 = sbr.rel (%p10) target = $region8
  $region5: #{conv_block_forward.3} parent=0 // loop_body
    %s14 = ssub.s32 %s9, 1
    %s15 = ssub.s32 %s9, 2
    %s22 = sadd.s32 1, %s17
    %p23 = scmp.ge.s32.totalorder %s22, 1
    %s24 = scalar_select %p23, 0, %s22
    %s25 = sadd.s32 1, %s16
    %s26 = scalar_select %p23, %s25, %s16
    %p27 = scmp.ge.s32.totalorder %s26, 2
    %s28 = scalar_select %p27, 0, %s26
    %s29 = ssub.s32 %s16, %s28
    %s30 = ssub.s32 %s17, %s24
    %s31 = sor.u32 %s29, %s30
    %p32 = scmp.eq.s32.totalorder %s31, 0
    %s34 = sadd.s32 %s33, 1
    %s35 = scalar_select %p32, %s33, %s34
    %p38 = pneg %p32
    %p39 = scmp.eq.s32.totalorder %s9, 1
    %p40 = por %p38, %p39
    %p41 = scmp.ne.s32.totalorder %s33, %s36
    %p42 = scmp.eq.s32.totalorder %s9, 0
    %p43 = por %p41, %p42
    %p44 = scmp.ne.s32.totalorder %s33, %s36
    %p45 = scmp.eq.s32.totalorder %s14, 1
    %p46 = por %p44, %p45
    %p47 = scmp.ne.s32.totalorder %s36, %s37
    %p48 = scmp.eq.s32.totalorder %s14, 0
    %p49 = por %p47, %p48
    %p50 = scmp.ne.s32.totalorder %s36, %s37
    %p51 = scmp.eq.s32.totalorder %s15, 1
    %p52 = por %p50, %p51
    %p54 = scmp.ne.s32.totalorder %s37, %s53
    %p55 = scmp.eq.s32.totalorder %s15, 0
    %p56 = por %p54, %p55
    %s58 = sadd.s32 %s57, 1
    %p61 = scmp.eq.s32.totalorder %s9, 1
    %p62 = scmp.ne.s32.totalorder %s57, %s59
    %p63 = scmp.eq.s32.totalorder %s9, 0
    %p64 = por %p62, %p63
    %p65 = scmp.ne.s32.totalorder %s57, %s59
    %p66 = scmp.eq.s32.totalorder %s14, 1
    %p67 = por %p65, %p66
    %p68 = scmp.ne.s32.totalorder %s59, %s60
    %p69 = scmp.eq.s32.totalorder %s14, 0
    %p70 = por %p68, %p69
    %p71 = scmp.ne.s32.totalorder %s59, %s60
    %p72 = scmp.eq.s32.totalorder %s15, 1
    %p73 = por %p71, %p72
    %p75 = scmp.ne.s32.totalorder %s60, %s74
    %p76 = scmp.eq.s32.totalorder %s15, 0
    %p77 = por %p75, %p76
    %s79 = sadd.s32 %s78, 1
    %p82 = scmp.eq.s32.totalorder %s9, 1
    %p83 = scmp.ne.s32.totalorder %s78, %s80
    %p84 = scmp.eq.s32.totalorder %s9, 0
    %p85 = por %p83, %p84
    %p86 = scmp.ne.s32.totalorder %s78, %s80
    %p87 = scmp.eq.s32.totalorder %s14, 1
    %p88 = por %p86, %p87
    %p89 = scmp.ne.s32.totalorder %s80, %s81
    %p90 = scmp.eq.s32.totalorder %s14, 0
    %p91 = por %p89, %p90
    %p92 = scmp.ne.s32.totalorder %s80, %s81
    %p93 = scmp.eq.s32.totalorder %s15, 1
    %p94 = por %p92, %p93
    %p96 = scmp.ne.s32.totalorder %s81, %s95
    %p97 = scmp.eq.s32.totalorder %s15, 0
    %p98 = por %p96, %p97
    %s99 = ssub.s32 %s16, %s28
    %s100 = ssub.s32 %s17, %s24
    %s101 = sor.u32 %s99, %s100
    %p102 = scmp.eq.s32.totalorder %s101, 0
    %s104 = sadd.s32 %s103, 1
    %s105 = scalar_select %p102, %s103, %s104
    %p108 = pneg %p102
    %p109 = scmp.eq.s32.totalorder %s9, 1
    %p110 = por %p108, %p109
    %p111 = scmp.ne.s32.totalorder %s103, %s106
    %p112 = scmp.eq.s32.totalorder %s9, 0
    %p113 = por %p111, %p112
    %p114 = scmp.ne.s32.totalorder %s103, %s106
    %p115 = scmp.eq.s32.totalorder %s14, 1
    %p116 = por %p114, %p115
    %p117 = scmp.ne.s32.totalorder %s106, %s107
    %p118 = scmp.eq.s32.totalorder %s14, 0
    %p119 = por %p117, %p118
    %p120 = scmp.ne.s32.totalorder %s106, %s107
    %p121 = scmp.eq.s32.totalorder %s15, 1
    %p122 = por %p120, %p121
    %p124 = scmp.ne.s32.totalorder %s107, %s123
    %p125 = scmp.eq.s32.totalorder %s15, 0
    %p126 = por %p124, %p125
    %p127 = scmp.le.s32.totalorder 1, %s9
    %p128 = scmp.lt.s32.totalorder %s9, 3
    %p129 = pnand %p127, %p128
    %p130 = pneg %p129
    // Predicated region
    $region9: #{conv_block_forward.3} parent=5 // pred_check
      _
    $region10: #{conv_block_forward.3} parent=5 // pred_check_branch
      %132 = sbr.rel (%p129) target = $region12
    $region11: #{conv_block_forward.3} parent=5 // pred_region
      %s133 = ssub.s32 %s9, 1
      // Predicated region
      $region13: #{conv_block_forward.3} parent=11 // pred_check
        %p134 = pneg %p70
      $region14: #{conv_block_forward.3} parent=11 // pred_check_branch
        %136 = sbr.rel (%p134) target = $region16
      $region15: #{conv_block_forward.3} parent=11 // pred_region
        _
      $region16: #{conv_block_forward.3} parent=11 // pred_fallthru
        _
      // Predicated region
      $region17: #{conv_block_forward.3} parent=11 // pred_check
        %p137 = pneg %p91
      $region18: #{conv_block_forward.3} parent=11 // pred_check_branch
        %139 = sbr.rel (%p137) target = $region20
      $region19: #{conv_block_forward.3} parent=11 // pred_region
        _
      $region20: #{conv_block_forward.3} parent=11 // pred_fallthru
        _
    $region12: #{conv_block_forward.3} parent=5 // pred_fallthru
      _
    %p140 = scmp.lt.s32.totalorder %s9, 2
    // Predicated region
    $region21: #{conv_block_forward.3} parent=5 // pred_check
      %p141 = pneg %p140
    $region22: #{conv_block_forward.3} parent=5 // pred_check_branch
      %143 = sbr.rel (%p141) target = $region24
    $region23: #{conv_block_forward.3} parent=5 // pred_region
      // Predicated region
      $region25: #{conv_block_forward.3} parent=23 // pred_check
        %p144 = pneg %p43
      $region26: #{conv_block_forward.3} parent=23 // pred_check_branch
        %146 = sbr.rel (%p144) target = $region28
      $region27: #{conv_block_forward.3} parent=23 // pred_region
        %s147 = smul.u32 2, %s17
        %p148 = scmp.lt.s32.totalorder %s16, 1
        %s149 = scalar_select %p148, %s16, 1
        %p150 = scmp.lt.s32.totalorder %s147, 1
        %s151 = scalar_select %p150, %s147, 1
        %s152 = smul.addr %s149, 2
        %s153 = sadd.s32 %s151, %s152
        %s154 = smul.addr %s153, 4
        %s155 = scalar_lea.vmem %s0, %s154
        %s156 = smul.u32 2, %s17
      $region28: #{conv_block_forward.3} parent=23 // pred_fallthru
        _
    $region24: #{conv_block_forward.3} parent=5 // pred_fallthru
      _
    %p157 = scmp.le.s32.totalorder 1, %s9
    %p158 = scmp.lt.s32.totalorder %s9, 3
    %p159 = pnand %p157, %p158
    %p160 = pneg %p159
    // Predicated region
    $region29: #{conv_block_forward.3} parent=5 // pred_check
      _
    $region30: #{conv_block_forward.3} parent=5 // pred_check_branch
      %162 = sbr.rel (%p159) target = $region32
    $region31: #{conv_block_forward.3} parent=5 // pred_region
      %s163 = ssub.s32 %s9, 1
      %s164 = smul.u32 2, %s19
      %p165 = scmp.lt.s32.totalorder %s18, 1
      %s166 = scalar_select %p165, %s18, 1
      %p167 = scmp.lt.s32.totalorder %s164, 1
      %s168 = scalar_select %p167, %s164, 1
      %s169 = smul.addr %s166, 2
      %s170 = sadd.s32 %s168, %s169
      %s171 = smul.addr %s170, 4
      %s172 = scalar_lea.vmem %s0, %s171
      %p173 = pneg %p49
      %p174 = pneg %p46
      %p175 = pneg %p70
      %p176 = pneg %p67
      %p177 = pneg %p91
      %p178 = pneg %p88
      %p179 = pneg %p119
      %p180 = pneg %p116
      %s181 = smul.u32 2, %s19
      %p182 = scmp.lt.s32.totalorder %s18, 1
      %s183 = scalar_select %p182, %s18, 1
      %p184 = scmp.lt.s32.totalorder %s181, 1
      %s185 = scalar_select %p184, %s181, 1
      %s186 = smul.addr %s183, 2
      %s187 = sadd.s32 %s185, %s186
      %s188 = smul.addr %s187, 8
      %s189 = scalar_lea.vmem %s3, %s188
      %s190 = smul.u32 2, %s19
      %p191 = scmp.lt.s32.totalorder %s18, 1
      %s192 = scalar_select %p191, %s18, 1
      %p193 = scmp.lt.s32.totalorder %s190, 1
      %s194 = scalar_select %p193, %s190, 1
      %s195 = smul.addr %s192, 2
      %s196 = sadd.s32 %s194, %s195
      %s197 = smul.addr %s196, 4
      %s198 = scalar_lea.vmem %s0, %s197
      %s199 = smul.u32 2, %s19
      %s200 = smul.u32 2, %s19
      %p201 = scmp.lt.s32.totalorder %s18, 1
      %s202 = scalar_select %p201, %s18, 1
      %p203 = scmp.lt.s32.totalorder %s200, 1
      %s204 = scalar_select %p203, %s200, 1
      %s205 = smul.addr %s202, 2
      %s206 = sadd.s32 %s204, %s205
      %s207 = smul.addr %s206, 8
      %s208 = scalar_lea.vmem %s3, %s207
      %s209 = smul.u32 2, %s19
      %v210 = vld [vmem:[%s198] sm:$0xff]
      %v211 = vunpack.c.l.bf16 %v210
      %v212 = vunpack.c.h.bf16 %v210
      %v213 = vld [vmem:[%s1] sm:$0xff]
      %215 = vset.pattern.permute.xlu0 0
      %216 = vperm.xlu0 %215, %v213
      %v217 = vpop.permute.xlu0 %216
      %v219 = vmul.f32 %v211, %v217
      %v220 = vmul.f32 %v212, %v217
      %v221 = vld [vmem:[%s2] sm:$0xff]
      %223 = vset.pattern.permute.xlu0 0
      %224 = vperm.xlu0 %223, %v221
      %v225 = vpop.permute.xlu0 %224
      %v227 = vadd.f32 %v219, %v225
      %v228 = vadd.f32 %v220, %v225
      %v229 = vmax.f32 %v227, 0.0
      %v230 = vmax.f32 %v228, 0.0
      %231 = vst [vmem:[%s208] sm:$0xff] %v229
      %232 = vst [vmem:[%s208 + $0x8] sm:$0xff] %v230
      %s233 = smul.u32 2, %s19
      %p234 = scmp.lt.s32.totalorder %s18, 1
      %s235 = scalar_select %p234, %s18, 1
      %p236 = scmp.lt.s32.totalorder %s233, 1
      %s237 = scalar_select %p236, %s233, 1
      %s238 = smul.addr %s235, 2
      %s239 = sadd.s32 %s237, %s238
      %s240 = smul.addr %s239, 8
      %s241 = scalar_lea.vmem %s3, %s240
      // Predicated region
      $region33: #{conv_block_forward.3} parent=31 // pred_check
        %p242 = pneg %p116
      $region34: #{conv_block_forward.3} parent=31 // pred_check_branch
        %244 = sbr.rel (%p242) target = $region36
      $region35: #{conv_block_forward.3} parent=31 // pred_region
        %s245 = smul.u32 2, %s19
      $region36: #{conv_block_forward.3} parent=31 // pred_fallthru
        _
    $region32: #{conv_block_forward.3} parent=5 // pred_fallthru
      _
    %p246 = scmp.le.s32.totalorder 2, %s9
    // Predicated region
    $region37: #{conv_block_forward.3} parent=5 // pred_check
      %p247 = pneg %p246
    $region38: #{conv_block_forward.3} parent=5 // pred_check_branch
      %249 = sbr.rel (%p247) target = $region40
    $region39: #{conv_block_forward.3} parent=5 // pred_region
      %s250 = ssub.s32 %s9, 2
      // Predicated region
      $region41: #{conv_block_forward.3} parent=39 // pred_check
        %p251 = pneg %p122
      $region42: #{conv_block_forward.3} parent=39 // pred_check_branch
        %253 = sbr.rel (%p251) target = $region44
      $region43: #{conv_block_forward.3} parent=39 // pred_region
        %s254 = smul.u32 2, %s21
        %p255 = scmp.lt.s32.totalorder %s20, 1
        %s256 = scalar_select %p255, %s20, 1
        %p257 = scmp.lt.s32.totalorder %s254, 1
        %s258 = scalar_select %p257, %s254, 1
        %s259 = smul.addr %s256, 2
        %s260 = sadd.s32 %s258, %s259
        %s261 = smul.addr %s260, 8
        %s262 = scalar_lea.vmem %s3, %s261
      $region44: #{conv_block_forward.3} parent=39 // pred_fallthru
        _
    $region40: #{conv_block_forward.3} parent=5 // pred_fallthru
      _
  $region6: #{conv_block_forward.3} parent=0 // loop_footer
    %s13 = sadd.s32 1, %s9
  $region7: #{conv_block_forward.3} parent=0 // loop_footer_branch
    %8 = sbr.rel target = $region3
  $region8: #{conv_block_forward.3} parent=0 // loop_exit
    _

// kernel: conv_block_forward.2
$region0: #{conv_block_forward.2}
  #allocation0 [shape = 'u32[]', space=smem, size = 0x4, offset = 0x4, fixed_abs, tag = 'smem constant byte address 0x4 - core index']
  #allocation1 [shape = 'u32[144,128]{1,0:T(1,128)}', space=vmem, size = 0x12000, scoped, tag = 'internal scratch']
  #allocation2 [shape = 'bf16[18,18,4]{2,1,0:T(8,128)(2,1)}', space=vmem, size = 0x1b000, scoped, tag = 'scratch operand']
  #allocation3 [shape = 'bf16[256,36]{1,0:T(8,128)(2,1)}', space=vmem, size = 0x10000, scoped, tag = 'scratch operand']
  %s0 = inlined_call_operand.vmem [shape: bf16[2,18,18,4], index: 0, kind: input, shape index: {}, may-alias: {0,1,2}]
  %s1 = inlined_call_operand.vmem [shape: bf16[2,18,18,4], index: 1, kind: input, shape index: {}, may-alias: {0,1,2}]
  %s2 = inlined_call_operand.vmem [shape: bf16[2,18,18,4], index: 2, kind: input, shape index: {}, may-alias: {0,1,2}]
  %s3 = inlined_call_operand.vmem [shape: bf16[36,128], index: 3, kind: input, shape index: {}]
  %s4 = inlined_call_operand.vmem [shape: bf16[2,8,256], index: 4, kind: output, shape index: {0}]
  %s5 = inlined_call_operand.vmem [shape: f32[2,1,2,8], index: 5, kind: output, shape index: {1}]
  %6 = xla_tuple %s4, %s5
  %s7 = sld [smem:[#allocation0]]
  $region57: #{conv_block_forward.2} parent=0
    _
  %s9 = ssub.s32 1, %s7
  %s10 = scalar_select 0, %s9, %s7
  loop: start=0, step=1, limit=4
  $region2: #{conv_block_forward.2} parent=0 // loop_pre_header
    _
  $region3: #{conv_block_forward.2} parent=0 // loop_header
    %s12 = sphi 0, %s16
    %p13 = scmp.ge.s32.totalorder %s12, 4
    %s19 = sphi 0, %s31
    %s20 = sphi 0, %s27
    %s21 = sphi 0, %s19
    %s22 = sphi 0, %s20
    %s23 = sphi 0, %s21
    %s24 = sphi 0, %s22
    %s36 = sphi 0, %s38
    %s39 = sphi 0, %s36
    %s40 = sphi 0, %s39
    %s56 = sphi 0, %s40
    %s68 = sphi 0, %s70
    %s71 = sphi 0, %s68
    %s72 = sphi 0, %s71
    %s88 = sphi 0, %s72
    %s100 = sphi 0, %s102
    %s103 = sphi 0, %s100
    %s104 = sphi 0, %s103
    %s120 = sphi 0, %s104
    %s124 = sphi 0, %s124
    %s126 = sphi 0, %s124
    %s127 = sphi 0, %s126
    %s141 = sphi 0, %s127
    %s149 = sphi 0, %s151
    %s152 = sphi 0, %s149
    %s153 = sphi 0, %s152
    %s169 = sphi 0, %s153
    %s177 = sphi 0, %s179
    %s180 = sphi 0, %s177
    %s181 = sphi 0, %s180
    %s197 = sphi 0, %s181
  $region4: #{conv_block_forward.2} parent=0 // loop_header_branch
    %15 = sbr.rel (%p13) target = $region8
  $region5: #{conv_block_forward.2} parent=0 // loop_body
    %s17 = ssub.s32 %s12, 1
    %s18 = ssub.s32 %s12, 2
    %s25 = sadd.s32 1, %s20
    %p26 = scmp.ge.s32.totalorder %s25, 1
    %s27 = scalar_select %p26, 0, %s25
    %s28 = sadd.s32 1, %s19
    %s29 = scalar_select %p26, %s28, %s19
    %p30 = scmp.ge.s32.totalorder %s29, 2
    %s31 = scalar_select %p30, 0, %s29
    %s32 = ssub.s32 %s19, %s31
    %s33 = ssub.s32 %s20, %s27
    %s34 = sor.u32 %s32, %s33
    %p35 = scmp.eq.s32.totalorder %s34, 0
    %s37 = sadd.s32 %s36, 1
    %s38 = scalar_select %p35, %s36, %s37
    %p41 = pneg %p35
    %p42 = scmp.eq.s32.totalorder %s12, 1
    %p43 = por %p41, %p42
    %p44 = scmp.ne.s32.totalorder %s36, %s39
    %p45 = scmp.eq.s32.totalorder %s12, 0
    %p46 = por %p44, %p45
    %p47 = scmp.ne.s32.totalorder %s36, %s39
    %p48 = scmp.eq.s32.totalorder %s17, 1
    %p49 = por %p47, %p48
    %p50 = scmp.ne.s32.totalorder %s39, %s40
    %p51 = scmp.eq.s32.totalorder %s17, 0
    %p52 = por %p50, %p51
    %p53 = scmp.ne.s32.totalorder %s39, %s40
    %p54 = scmp.eq.s32.totalorder %s18, 1
    %p55 = por %p53, %p54
    %p57 = scmp.ne.s32.totalorder %s40, %s56
    %p58 = scmp.eq.s32.totalorder %s18, 0
    %p59 = por %p57, %p58
    %s60 = smul.u32 %s20, 16
    %s61 = sadd.s32 %s60, 16
    %s62 = smul.u32 %s27, 16
    %s63 = sadd.s32 %s62, 16
    %s64 = ssub.s32 %s19, %s31
    %s65 = ssub.s32 %s61, %s63
    %s66 = sor.u32 %s64, %s65
    %p67 = scmp.eq.s32.totalorder %s66, 0
    %s69 = sadd.s32 %s68, 1
    %s70 = scalar_select %p67, %s68, %s69
    %p73 = pneg %p67
    %p74 = scmp.eq.s32.totalorder %s12, 1
    %p75 = por %p73, %p74
    %p76 = scmp.ne.s32.totalorder %s68, %s71
    %p77 = scmp.eq.s32.totalorder %s12, 0
    %p78 = por %p76, %p77
    %p79 = scmp.ne.s32.totalorder %s68, %s71
    %p80 = scmp.eq.s32.totalorder %s17, 1
    %p81 = por %p79, %p80
    %p82 = scmp.ne.s32.totalorder %s71, %s72
    %p83 = scmp.eq.s32.totalorder %s17, 0
    %p84 = por %p82, %p83
    %p85 = scmp.ne.s32.totalorder %s71, %s72
    %p86 = scmp.eq.s32.totalorder %s18, 1
    %p87 = por %p85, %p86
    %p89 = scmp.ne.s32.totalorder %s72, %s88
    %p90 = scmp.eq.s32.totalorder %s18, 0
    %p91 = por %p89, %p90
    %s92 = smul.u32 %s20, 16
    %s93 = sadd.s32 %s92, 17
    %s94 = smul.u32 %s27, 16
    %s95 = sadd.s32 %s94, 17
    %s96 = ssub.s32 %s19, %s31
    %s97 = ssub.s32 %s93, %s95
    %s98 = sor.u32 %s96, %s97
    %p99 = scmp.eq.s32.totalorder %s98, 0
    %s101 = sadd.s32 %s100, 1
    %s102 = scalar_select %p99, %s100, %s101
    %p105 = pneg %p99
    %p106 = scmp.eq.s32.totalorder %s12, 1
    %p107 = por %p105, %p106
    %p108 = scmp.ne.s32.totalorder %s100, %s103
    %p109 = scmp.eq.s32.totalorder %s12, 0
    %p110 = por %p108, %p109
    %p111 = scmp.ne.s32.totalorder %s100, %s103
    %p112 = scmp.eq.s32.totalorder %s17, 1
    %p113 = por %p111, %p112
    %p114 = scmp.ne.s32.totalorder %s103, %s104
    %p115 = scmp.eq.s32.totalorder %s17, 0
    %p116 = por %p114, %p115
    %p117 = scmp.ne.s32.totalorder %s103, %s104
    %p118 = scmp.eq.s32.totalorder %s18, 1
    %p119 = por %p117, %p118
    %p121 = scmp.ne.s32.totalorder %s104, %s120
    %p122 = scmp.eq.s32.totalorder %s18, 0
    %p123 = por %p121, %p122
    %s125 = sadd.s32 %s124, 1
    %p128 = scmp.eq.s32.totalorder %s12, 1
    %p129 = scmp.ne.s32.totalorder %s124, %s126
    %p130 = scmp.eq.s32.totalorder %s12, 0
    %p131 = por %p129, %p130
    %p132 = scmp.ne.s32.totalorder %s124, %s126
    %p133 = scmp.eq.s32.totalorder %s17, 1
    %p134 = por %p132, %p133
    %p135 = scmp.ne.s32.totalorder %s126, %s127
    %p136 = scmp.eq.s32.totalorder %s17, 0
    %p137 = por %p135, %p136
    %p138 = scmp.ne.s32.totalorder %s126, %s127
    %p139 = scmp.eq.s32.totalorder %s18, 1
    %p140 = por %p138, %p139
    %p142 = scmp.ne.s32.totalorder %s127, %s141
    %p143 = scmp.eq.s32.totalorder %s18, 0
    %p144 = por %p142, %p143
    %s145 = ssub.s32 %s19, %s31
    %s146 = ssub.s32 %s20, %s27
    %s147 = sor.u32 %s145, %s146
    %p148 = scmp.eq.s32.totalorder %s147, 0
    %s150 = sadd.s32 %s149, 1
    %s151 = scalar_select %p148, %s149, %s150
    %p154 = pneg %p148
    %p155 = scmp.eq.s32.totalorder %s12, 1
    %p156 = por %p154, %p155
    %p157 = scmp.ne.s32.totalorder %s149, %s152
    %p158 = scmp.eq.s32.totalorder %s12, 0
    %p159 = por %p157, %p158
    %p160 = scmp.ne.s32.totalorder %s149, %s152
    %p161 = scmp.eq.s32.totalorder %s17, 1
    %p162 = por %p160, %p161
    %p163 = scmp.ne.s32.totalorder %s152, %s153
    %p164 = scmp.eq.s32.totalorder %s17, 0
    %p165 = por %p163, %p164
    %p166 = scmp.ne.s32.totalorder %s152, %s153
    %p167 = scmp.eq.s32.totalorder %s18, 1
    %p168 = por %p166, %p167
    %p170 = scmp.ne.s32.totalorder %s153, %s169
    %p171 = scmp.eq.s32.totalorder %s18, 0
    %p172 = por %p170, %p171
    %s173 = ssub.s32 %s19, %s31
    %s174 = ssub.s32 %s20, %s27
    %s175 = sor.u32 %s173, %s174
    %p176 = scmp.eq.s32.totalorder %s175, 0
    %s178 = sadd.s32 %s177, 1
    %s179 = scalar_select %p176, %s177, %s178
    %p182 = pneg %p176
    %p183 = scmp.eq.s32.totalorder %s12, 1
    %p184 = por %p182, %p183
    %p185 = scmp.ne.s32.totalorder %s177, %s180
    %p186 = scmp.eq.s32.totalorder %s12, 0
    %p187 = por %p185, %p186
    %p188 = scmp.ne.s32.totalorder %s177, %s180
    %p189 = scmp.eq.s32.totalorder %s17, 1
    %p190 = por %p188, %p189
    %p191 = scmp.ne.s32.totalorder %s180, %s181
    %p192 = scmp.eq.s32.totalorder %s17, 0
    %p193 = por %p191, %p192
    %p194 = scmp.ne.s32.totalorder %s180, %s181
    %p195 = scmp.eq.s32.totalorder %s18, 1
    %p196 = por %p194, %p195
    %p198 = scmp.ne.s32.totalorder %s181, %s197
    %p199 = scmp.eq.s32.totalorder %s18, 0
    %p200 = por %p198, %p199
    %p201 = scmp.le.s32.totalorder 1, %s12
    %p202 = scmp.lt.s32.totalorder %s12, 3
    %p203 = pnand %p201, %p202
    %p204 = pneg %p203
    // Predicated region
    $region9: #{conv_block_forward.2} parent=5 // pred_check
      _
    $region10: #{conv_block_forward.2} parent=5 // pred_check_branch
      %206 = sbr.rel (%p203) target = $region12
    $region11: #{conv_block_forward.2} parent=5 // pred_region
      %s207 = ssub.s32 %s12, 1
      // Predicated region
      $region13: #{conv_block_forward.2} parent=11 // pred_check
        %p208 = pneg %p137
      $region14: #{conv_block_forward.2} parent=11 // pred_check_branch
        %210 = sbr.rel (%p208) target = $region16
      $region15: #{conv_block_forward.2} parent=11 // pred_region
        _
      $region16: #{conv_block_forward.2} parent=11 // pred_fallthru
        _
    $region12: #{conv_block_forward.2} parent=5 // pred_fallthru
      _
    %p211 = scmp.lt.s32.totalorder %s12, 2
    // Predicated region
    $region17: #{conv_block_forward.2} parent=5 // pred_check
      %p212 = pneg %p211
    $region18: #{conv_block_forward.2} parent=5 // pred_check_branch
      %214 = sbr.rel (%p212) target = $region20
    $region19: #{conv_block_forward.2} parent=5 // pred_region
      // Predicated region
      $region21: #{conv_block_forward.2} parent=19 // pred_check
        %p215 = pneg %p46
      $region22: #{conv_block_forward.2} parent=19 // pred_check_branch
        %217 = sbr.rel (%p215) target = $region24
      $region23: #{conv_block_forward.2} parent=19 // pred_region
        %s218 = smul.u32 16, %s20
        %s219 = ssub.s32 18, %s218
        %p220 = scmp.lt.s32.totalorder %s219, 16
        %s221 = scalar_select %p220, %s219, 16
        %s222 = smul.u32 64, %s221
        %s223 = smul.u32 %s222, 3
        %p224 = scmp.lt.s32.totalorder %s19, 1
        %s225 = scalar_select %p224, %s19, 1
        %p226 = scmp.lt.s32.totalorder %s218, 17
        %s227 = scalar_select %p226, %s218, 17
        %s228 = smul.addr %s227, 3
        %s229 = smul.addr %s225, 54
        %s230 = sadd.s32 %s228, %s229
        %s231 = smul.addr %s230, 4
        %s232 = scalar_lea.vmem %s0, %s231
        %s233 = smul.u32 16, %s20
        %s234 = ssub.s32 18, %s233
        %p235 = scmp.lt.s32.totalorder %s234, 16
        %s236 = scalar_select %p235, %s234, 16
        %s237 = smul.u32 64, %s236
        %s238 = smul.u32 %s237, 3
      $region24: #{conv_block_forward.2} parent=19 // pred_fallthru
        _
      // Predicated region
      $region25: #{conv_block_forward.2} parent=19 // pred_check
        %p239 = pneg %p78
      $region26: #{conv_block_forward.2} parent=19 // pred_check_branch
        %241 = sbr.rel (%p239) target = $region28
      $region27: #{conv_block_forward.2} parent=19 // pred_region
        %s242 = smul.u32 %s20, 16
        %s243 = sadd.s32 %s242, 16
        %p244 = scmp.lt.s32.totalorder %s19, 1
        %s245 = scalar_select %p244, %s19, 1
        %p246 = scmp.lt.s32.totalorder %s243, 17
        %s247 = scalar_select %p246, %s243, 17
        %s248 = smul.addr %s247, 3
        %s249 = smul.addr %s245, 54
        %s250 = sadd.s32 %s248, %s249
        %s251 = smul.addr %s250, 4
        %s252 = scalar_lea.vmem %s1, %s251
        %s253 = smul.u32 %s20, 16
        %s254 = sadd.s32 %s253, 16
      $region28: #{conv_block_forward.2} parent=19 // pred_fallthru
        _
      // Predicated region
      $region29: #{conv_block_forward.2} parent=19 // pred_check
        %p255 = pneg %p110
      $region30: #{conv_block_forward.2} parent=19 // pred_check_branch
        %257 = sbr.rel (%p255) target = $region32
      $region31: #{conv_block_forward.2} parent=19 // pred_region
        %s258 = smul.u32 %s20, 16
        %s259 = sadd.s32 %s258, 17
        %p260 = scmp.lt.s32.totalorder %s19, 1
        %s261 = scalar_select %p260, %s19, 1
        %p262 = scmp.lt.s32.totalorder %s259, 17
        %s263 = scalar_select %p262, %s259, 17
        %s264 = smul.addr %s263, 3
        %s265 = smul.addr %s261, 54
        %s266 = sadd.s32 %s264, %s265
        %s267 = smul.addr %s266, 4
        %s268 = scalar_lea.vmem %s2, %s267
        %s269 = smul.u32 %s20, 16
        %s270 = sadd.s32 %s269, 17
      $region32: #{conv_block_forward.2} parent=19 // pred_fallthru
        _
    $region20: #{conv_block_forward.2} parent=5 // pred_fallthru
      _
    %p271 = scmp.le.s32.totalorder 1, %s12
    %p272 = scmp.lt.s32.totalorder %s12, 3
    %p273 = pnand %p271, %p272
    %p274 = pneg %p273
    // Predicated region
    $region33: #{conv_block_forward.2} parent=5 // pred_check
      _
    $region34: #{conv_block_forward.2} parent=5 // pred_check_branch
      %276 = sbr.rel (%p273) target = $region36
    $region35: #{conv_block_forward.2} parent=5 // pred_region
      %s277 = ssub.s32 %s12, 1
      %s278 = smul.u32 16, %s22
      %s279 = ssub.s32 18, %s278
      %p280 = scmp.lt.s32.totalorder %s279, 16
      %s281 = scalar_select %p280, %s279, 16
      %s282 = smul.u32 64, %s281
      %s283 = smul.u32 %s282, 3
      %p284 = scmp.lt.s32.totalorder %s21, 1
      %s285 = scalar_select %p284, %s21, 1
      %p286 = scmp.lt.s32.totalorder %s278, 17
      %s287 = scalar_select %p286, %s278, 17
      %s288 = smul.addr %s287, 3
      %s289 = smul.addr %s285, 54
      %s290 = sadd.s32 %s288, %s289
      %s291 = smul.addr %s290, 4
      %s292 = scalar_lea.vmem %s0, %s291
      %p293 = pneg %p52
      %p294 = pneg %p49
      %s295 = smul.u32 %s22, 16
      %s296 = sadd.s32 %s295, 16
      %p297 = scmp.lt.s32.totalorder %s21, 1
      %s298 = scalar_select %p297, %s21, 1
      %p299 = scmp.lt.s32.totalorder %s296, 17
      %s300 = scalar_select %p299, %s296, 17
      %s301 = smul.addr %s300, 3
      %s302 = smul.addr %s298, 54
      %s303 = sadd.s32 %s301, %s302
      %s304 = smul.addr %s303, 4
      %s305 = scalar_lea.vmem %s1, %s304
      %p306 = pneg %p84
      %p307 = pneg %p81
      %s308 = smul.u32 %s22, 16
      %s309 = sadd.s32 %s308, 17
      %p310 = scmp.lt.s32.totalorder %s21, 1
      %s311 = scalar_select %p310, %s21, 1
      %p312 = scmp.lt.s32.totalorder %s309, 17
      %s313 = scalar_select %p312, %s309, 17
      %s314 = smul.addr %s313, 3
      %s315 = smul.addr %s311, 54
      %s316 = sadd.s32 %s314, %s315
      %s317 = smul.addr %s316, 4
      %s318 = scalar_lea.vmem %s2, %s317
      %p319 = pneg %p116
      %p320 = pneg %p113
      %p321 = pneg %p137
      %p322 = pneg %p134
      %p323 = pneg %p165
      %p324 = pneg %p162
      %s325 = smul.u32 2, %s22
      %p326 = scmp.lt.s32.totalorder %s21, 1
      %s327 = scalar_select %p326, %s21, 1
      %p328 = scmp.lt.s32.totalorder %s325, 1
      %s329 = scalar_select %p328, %s325, 1
      %s330 = smul.addr %s327, 2
      %s331 = sadd.s32 %s329, %s330
      %s332 = smul.addr %s331, 4
      %s333 = scalar_lea.vmem %s4, %s332
      %p334 = pneg %p193
      %p335 = pneg %p190
      %p336 = scmp.lt.s32.totalorder %s21, 1
      %s337 = scalar_select %p336, %s21, 1
      %p338 = scmp.lt.s32.totalorder %s22, 0
      %s339 = scalar_select %p338, %s22, 0
      %s340 = sadd.s32 %s339, %s337
      %s341 = smul.addr %s340, 2
      %s342 = scalar_lea.vmem %s5, %s341
      %s343 = smul.u32 16, %s22
      %s344 = ssub.s32 18, %s343
      %p345 = scmp.lt.s32.totalorder %s344, 16
      %s346 = scalar_select %p345, %s344, 16
      %s347 = smul.u32 64, %s346
      %s348 = smul.u32 %s347, 3
      %p349 = scmp.lt.s32.totalorder %s21, 1
      %s350 = scalar_select %p349, %s21, 1
      %p351 = scmp.lt.s32.totalorder %s343, 17
      %s352 = scalar_select %p351, %s343, 17
      %s353 = smul.addr %s352, 3
      %s354 = smul.addr %s350, 54
      %s355 = sadd.s32 %s353, %s354
      %s356 = smul.addr %s355, 4
      %s357 = scalar_lea.vmem %s0, %s356
      %s358 = smul.u32 16, %s22
      %s359 = ssub.s32 18, %s358
      %p360 = scmp.lt.s32.totalorder %s359, 16
      %s361 = scalar_select %p360, %s359, 16
      %s362 = smul.u32 64, %s361
      %s363 = smul.u32 %s362, 3
      %s364 = smul.u32 %s22, 16
      %s365 = sadd.s32 %s364, 16
      %p366 = scmp.lt.s32.totalorder %s21, 1
      %s367 = scalar_select %p366, %s21, 1
      %p368 = scmp.lt.s32.totalorder %s365, 17
      %s369 = scalar_select %p368, %s365, 17
      %s370 = smul.addr %s369, 3
      %s371 = smul.addr %s367, 54
      %s372 = sadd.s32 %s370, %s371
      %s373 = smul.addr %s372, 4
      %s374 = scalar_lea.vmem %s1, %s373
      %s375 = smul.u32 %s22, 16
      %s376 = sadd.s32 %s375, 16
      %s377 = smul.u32 %s22, 16
      %s378 = sadd.s32 %s377, 17
      %p379 = scmp.lt.s32.totalorder %s21, 1
      %s380 = scalar_select %p379, %s21, 1
      %p381 = scmp.lt.s32.totalorder %s378, 17
      %s382 = scalar_select %p381, %s378, 17
      %s383 = smul.addr %s382, 3
      %s384 = smul.addr %s380, 54
      %s385 = sadd.s32 %s383, %s384
      %s386 = smul.addr %s385, 4
      %s387 = scalar_lea.vmem %s2, %s386
      %s388 = smul.u32 %s22, 16
      %s389 = sadd.s32 %s388, 17
      %s390 = smul.u32 2, %s22
      %p391 = scmp.lt.s32.totalorder %s21, 1
      %s392 = scalar_select %p391, %s21, 1
      %p393 = scmp.lt.s32.totalorder %s390, 1
      %s394 = scalar_select %p393, %s390, 1
      %s395 = smul.addr %s392, 2
      %s396 = sadd.s32 %s394, %s395
      %s397 = smul.addr %s396, 4
      %s398 = scalar_lea.vmem %s4, %s397
      %s399 = smul.u32 2, %s22
      %p400 = scmp.lt.s32.totalorder %s21, 1
      %s401 = scalar_select %p400, %s21, 1
      %p402 = scmp.lt.s32.totalorder %s22, 0
      %s403 = scalar_select %p402, %s22, 0
      %s404 = sadd.s32 %s403, %s401
      %s405 = smul.addr %s404, 2
      %s406 = scalar_lea.vmem %s5, %s405
      %v408 = vld [vmem:[%s357] sm:$0xf]
      %v409 = vld [vmem:[%s357 + $0x4] sm:$0xf]
      %v410 = vld [vmem:[%s357 + $0x8] sm:$0x1]
      %v411 = vld [vmem:[%s357 + $0xc] sm:$0xf]
      %v412 = vld [vmem:[%s357 + $0x10] sm:$0xf]
      %v413 = vld [vmem:[%s357 + $0x14] sm:$0x1]
      %v414 = vld [vmem:[%s357 + $0x18] sm:$0xf]
      %v415 = vld [vmem:[%s357 + $0x1c] sm:$0xf]
      %v416 = vld [vmem:[%s357 + $0x20] sm:$0x1]
      %v417 = vld [vmem:[%s357 + $0x24] sm:$0xf]
      %v418 = vld [vmem:[%s357 + $0x28] sm:$0xf]
      %v419 = vld [vmem:[%s357 + $0x2c] sm:$0x1]
      %v420 = vld [vmem:[%s357 + $0x30] sm:$0xf]
      %v421 = vld [vmem:[%s357 + $0x34] sm:$0xf]
      %v422 = vld [vmem:[%s357 + $0x38] sm:$0x1]
      %v423 = vld [vmem:[%s357 + $0x3c] sm:$0xf]
      %v424 = vld [vmem:[%s357 + $0x40] sm:$0xf]
      %v425 = vld [vmem:[%s357 + $0x44] sm:$0x1]
      %v426 = vld [vmem:[%s357 + $0x48] sm:$0xf]
      %v427 = vld [vmem:[%s357 + $0x4c] sm:$0xf]
      %v428 = vld [vmem:[%s357 + $0x50] sm:$0x1]
      %v429 = vld [vmem:[%s357 + $0x54] sm:$0xf]
      %v430 = vld [vmem:[%s357 + $0x58] sm:$0xf]
      %v431 = vld [vmem:[%s357 + $0x5c] sm:$0x1]
      %v432 = vld [vmem:[%s357 + $0x60] sm:$0xf]
      %v433 = vld [vmem:[%s357 + $0x64] sm:$0xf]
      %v434 = vld [vmem:[%s357 + $0x68] sm:$0x1]
      %v435 = vld [vmem:[%s357 + $0x6c] sm:$0xf]
      %v436 = vld [vmem:[%s357 + $0x70] sm:$0xf]
      %v437 = vld [vmem:[%s357 + $0x74] sm:$0x1]
      %v438 = vld [vmem:[%s357 + $0x78] sm:$0xf]
      %v439 = vld [vmem:[%s357 + $0x7c] sm:$0xf]
      %v440 = vld [vmem:[%s357 + $0x80] sm:$0x1]
      %v441 = vld [vmem:[%s357 + $0x84] sm:$0xf]
      %v442 = vld [vmem:[%s357 + $0x88] sm:$0xf]
      %v443 = vld [vmem:[%s357 + $0x8c] sm:$0x1]
      %v444 = vld [vmem:[%s357 + $0x90] sm:$0xf]
      %v445 = vld [vmem:[%s357 + $0x94] sm:$0xf]
      %v446 = vld [vmem:[%s357 + $0x98] sm:$0x1]
      %v447 = vld [vmem:[%s357 + $0x9c] sm:$0xf]
      %v448 = vld [vmem:[%s357 + $0xa0] sm:$0xf]
      %v449 = vld [vmem:[%s357 + $0xa4] sm:$0x1]
      %v450 = vld [vmem:[%s357 + $0xa8] sm:$0xf]
      %v451 = vld [vmem:[%s357 + $0xac] sm:$0xf]
      %v452 = vld [vmem:[%s357 + $0xb0] sm:$0x1]
      %v453 = vld [vmem:[%s357 + $0xb4] sm:$0xf]
      %v454 = vld [vmem:[%s357 + $0xb8] sm:$0xf]
      %v455 = vld [vmem:[%s357 + $0xbc] sm:$0x1]
      %vm456 = vcmask 27648
      %457 = vst.msk [vmem:[#allocation2] sm:$0xf] %vm456, %v408
      %458 = vst.msk [vmem:[#allocation2 + $0x4] sm:$0xf] %vm456, %v409
      %vm459 = vcmask 24576
      %460 = vst.msk [vmem:[#allocation2 + $0x8] sm:$0x1] %vm459, %v410
      %461 = vst.msk [vmem:[#allocation2 + $0xc] sm:$0xf] %vm456, %v411
      %462 = vst.msk [vmem:[#allocation2 + $0x10] sm:$0xf] %vm456, %v412
      %463 = vst.msk [vmem:[#allocation2 + $0x14] sm:$0x1] %vm459, %v413
      %464 = vst.msk [vmem:[#allocation2 + $0x18] sm:$0xf] %vm456, %v414
      %465 = vst.msk [vmem:[#allocation2 + $0x1c] sm:$0xf] %vm456, %v415
      %466 = vst.msk [vmem:[#allocation2 + $0x20] sm:$0x1] %vm459, %v416
      %467 = vst.msk [vmem:[#allocation2 + $0x24] sm:$0xf] %vm456, %v417
      %468 = vst.msk [vmem:[#allocation2 + $0x28] sm:$0xf] %vm456, %v418
      %469 = vst.msk [vmem:[#allocation2 + $0x2c] sm:$0x1] %vm459, %v419
      %470 = vst.msk [vmem:[#allocation2 + $0x30] sm:$0xf] %vm456, %v420
      %471 = vst.msk [vmem:[#allocation2 + $0x34] sm:$0xf] %vm456, %v421
      %472 = vst.msk [vmem:[#allocation2 + $0x38] sm:$0x1] %vm459, %v422
      %473 = vst.msk [vmem:[#allocation2 + $0x3c] sm:$0xf] %vm456, %v423
      %474 = vst.msk [vmem:[#allocation2 + $0x40] sm:$0xf] %vm456, %v424
      %475 = vst.msk [vmem:[#allocation2 + $0x44] sm:$0x1] %vm459, %v425
      %476 = vst.msk [vmem:[#allocation2 + $0x48] sm:$0xf] %vm456, %v426
      %477 = vst.msk [vmem:[#allocation2 + $0x4c] sm:$0xf] %vm456, %v427
      %478 = vst.msk [vmem:[#allocation2 + $0x50] sm:$0x1] %vm459, %v428
      %479 = vst.msk [vmem:[#allocation2 + $0x54] sm:$0xf] %vm456, %v429
      %480 = vst.msk [vmem:[#allocation2 + $0x58] sm:$0xf] %vm456, %v430
      %481 = vst.msk [vmem:[#allocation2 + $0x5c] sm:$0x1] %vm459, %v431
      %482 = vst.msk [vmem:[#allocation2 + $0x60] sm:$0xf] %vm456, %v432
      %483 = vst.msk [vmem:[#allocation2 + $0x64] sm:$0xf] %vm456, %v433
      %484 = vst.msk [vmem:[#allocation2 + $0x68] sm:$0x1] %vm459, %v434
      %485 = vst.msk [vmem:[#allocation2 + $0x6c] sm:$0xf] %vm456, %v435
      %486 = vst.msk [vmem:[#allocation2 + $0x70] sm:$0xf] %vm456, %v436
      %487 = vst.msk [vmem:[#allocation2 + $0x74] sm:$0x1] %vm459, %v437
      %488 = vst.msk [vmem:[#allocation2 + $0x78] sm:$0xf] %vm456, %v438
      %489 = vst.msk [vmem:[#allocation2 + $0x7c] sm:$0xf] %vm456, %v439
      %490 = vst.msk [vmem:[#allocation2 + $0x80] sm:$0x1] %vm459, %v440
      %491 = vst.msk [vmem:[#allocation2 + $0x84] sm:$0xf] %vm456, %v441
      %492 = vst.msk [vmem:[#allocation2 + $0x88] sm:$0xf] %vm456, %v442
      %493 = vst.msk [vmem:[#allocation2 + $0x8c] sm:$0x1] %vm459, %v443
      %494 = vst.msk [vmem:[#allocation2 + $0x90] sm:$0xf] %vm456, %v444
      %495 = vst.msk [vmem:[#allocation2 + $0x94] sm:$0xf] %vm456, %v445
      %496 = vst.msk [vmem:[#allocation2 + $0x98] sm:$0x1] %vm459, %v446
      %497 = vst.msk [vmem:[#allocation2 + $0x9c] sm:$0xf] %vm456, %v447
      %498 = vst.msk [vmem:[#allocation2 + $0xa0] sm:$0xf] %vm456, %v448
      %499 = vst.msk [vmem:[#allocation2 + $0xa4] sm:$0x1] %vm459, %v449
      %500 = vst.msk [vmem:[#allocation2 + $0xa8] sm:$0xf] %vm456, %v450
      %501 = vst.msk [vmem:[#allocation2 + $0xac] sm:$0xf] %vm456, %v451
      %502 = vst.msk [vmem:[#allocation2 + $0xb0] sm:$0x1] %vm459, %v452
      %503 = vst.msk [vmem:[#allocation2 + $0xb4] sm:$0xf] %vm456, %v453
      %504 = vst.msk [vmem:[#allocation2 + $0xb8] sm:$0xf] %vm456, %v454
      %505 = vst.msk [vmem:[#allocation2 + $0xbc] sm:$0x1] %vm459, %v455
      %v506 = vld [vmem:[%s374] sm:$0xf]
      %v507 = vld [vmem:[%s374 + $0x4] sm:$0xf]
      %v508 = vld [vmem:[%s374 + $0x8] sm:$0x1]
      %s509 = scalar_lea.vmem [#allocation2], 192
      %510 = vst.msk [vmem:[%s509] sm:$0xf] %vm456, %v506
      %511 = vst.msk [vmem:[%s509 + $0x4] sm:$0xf] %vm456, %v507
      %512 = vst.msk [vmem:[%s509 + $0x8] sm:$0x1] %vm459, %v508
      %v513 = vld [vmem:[%s387] sm:$0xf]
      %v514 = vld [vmem:[%s387 + $0x4] sm:$0xf]
      %v515 = vld [vmem:[%s387 + $0x8] sm:$0x1]
      %s516 = scalar_lea.vmem [#allocation2], 204
      %517 = vst.msk [vmem:[%s516] sm:$0xf] %vm456, %v513
      %518 = vst.msk [vmem:[%s516 + $0x4] sm:$0xf] %vm456, %v514
      %519 = vst.msk [vmem:[%s516 + $0x8] sm:$0x1] %vm459, %v515
      %v520 = vld [vmem:[#allocation2] sm:$0xf]
      %v521 = vld [vmem:[#allocation2 + $0x4] sm:$0xf]
      %v522 = vld [vmem:[#allocation2 + $0xc] sm:$0xf]
      %v523 = vld [vmem:[#allocation2 + $0x10] sm:$0xf]
      %v524 = vld [vmem:[#allocation2 + $0x18] sm:$0xf]
      %v525 = vld [vmem:[#allocation2 + $0x1c] sm:$0xf]
      %v526 = vld [vmem:[#allocation2 + $0x24] sm:$0xf]
      %v527 = vld [vmem:[#allocation2 + $0x28] sm:$0xf]
      %v528 = vld [vmem:[#allocation2 + $0x30] sm:$0xf]
      %v529 = vld [vmem:[#allocation2 + $0x34] sm:$0xf]
      %v530 = vld [vmem:[#allocation2 + $0x3c] sm:$0xf]
      %v531 = vld [vmem:[#allocation2 + $0x40] sm:$0xf]
      %v532 = vld [vmem:[#allocation2 + $0x48] sm:$0xf]
      %v533 = vld [vmem:[#allocation2 + $0x4c] sm:$0xf]
      %v534 = vld [vmem:[#allocation2 + $0x54] sm:$0xf]
      %v535 = vld [vmem:[#allocation2 + $0x58] sm:$0xf]
      %v536 = vld [vmem:[#allocation2 + $0x60] sm:$0xf]
      %v537 = vld [vmem:[#allocation2 + $0x64] sm:$0xf]
      %v538 = vld [vmem:[#allocation2 + $0x6c] sm:$0xf]
      %v539 = vld [vmem:[#allocation2 + $0x70] sm:$0xf]
      %v540 = vld [vmem:[#allocation2 + $0x78] sm:$0xf]
      %v541 = vld [vmem:[#allocation2 + $0x7c] sm:$0xf]
      %v542 = vld [vmem:[#allocation2 + $0x84] sm:$0xf]
      %v543 = vld [vmem:[#allocation2 + $0x88] sm:$0xf]
      %v544 = vld [vmem:[#allocation2 + $0x90] sm:$0xf]
      %v545 = vld [vmem:[#allocation2 + $0x94] sm:$0xf]
      %v546 = vld [vmem:[#allocation2 + $0x9c] sm:$0xf]
      %v547 = vld [vmem:[#allocation2 + $0xa0] sm:$0xf]
      %v548 = vld [vmem:[#allocation2 + $0xa8] sm:$0xf]
      %v549 = vld [vmem:[#allocation2 + $0xac] sm:$0xf]
      %v550 = vld [vmem:[#allocation2 + $0xb4] sm:$0xf]
      %v551 = vld [vmem:[#allocation2 + $0xb8] sm:$0xf]
      %552 = vst.msk [vmem:[#allocation3] sm:$0xf] %vm456, %v520
      %553 = vst.msk [vmem:[#allocation3 + $0x4] sm:$0xf] %vm456, %v521
      %554 = vst.msk [vmem:[#allocation3 + $0x8] sm:$0xf] %vm456, %v522
      %555 = vst.msk [vmem:[#allocation3 + $0xc] sm:$0xf] %vm456, %v523
      %556 = vst.msk [vmem:[#allocation3 + $0x10] sm:$0xf] %vm456, %v524
      %557 = vst.msk [vmem:[#allocation3 + $0x14] sm:$0xf] %vm456, %v525
      %558 = vst.msk [vmem:[#allocation3 + $0x18] sm:$0xf] %vm456, %v526
      %559 = vst.msk [vmem:[#allocation3 + $0x1c] sm:$0xf] %vm456, %v527
      %560 = vst.msk [vmem:[#allocation3 + $0x20] sm:$0xf] %vm456, %v528
      %561 = vst.msk [vmem:[#allocation3 + $0x24] sm:$0xf] %vm456, %v529
      %562 = vst.msk [vmem:[#allocation3 + $0x28] sm:$0xf] %vm456, %v530
      %563 = vst.msk [vmem:[#allocation3 + $0x2c] sm:$0xf] %vm456, %v531
      %564 = vst.msk [vmem:[#allocation3 + $0x30] sm:$0xf] %vm456, %v532
      %565 = vst.msk [vmem:[#allocation3 + $0x34] sm:$0xf] %vm456, %v533
      %566 = vst.msk [vmem:[#allocation3 + $0x38] sm:$0xf] %vm456, %v534
      %567 = vst.msk [vmem:[#allocation3 + $0x3c] sm:$0xf] %vm456, %v535
      %568 = vst.msk [vmem:[#allocation3 + $0x40] sm:$0xf] %vm456, %v536
      %569 = vst.msk [vmem:[#allocation3 + $0x44] sm:$0xf] %vm456, %v537
      %570 = vst.msk [vmem:[#allocation3 + $0x48] sm:$0xf] %vm456, %v538
      %571 = vst.msk [vmem:[#allocation3 + $0x4c] sm:$0xf] %vm456, %v539
      %572 = vst.msk [vmem:[#allocation3 + $0x50] sm:$0xf] %vm456, %v540
      %573 = vst.msk [vmem:[#allocation3 + $0x54] sm:$0xf] %vm456, %v541
      %574 = vst.msk [vmem:[#allocation3 + $0x58] sm:$0xf] %vm456, %v542
      %575 = vst.msk [vmem:[#allocation3 + $0x5c] sm:$0xf] %vm456, %v543
      %576 = vst.msk [vmem:[#allocation3 + $0x60] sm:$0xf] %vm456, %v544
      %577 = vst.msk [vmem:[#allocation3 + $0x64] sm:$0xf] %vm456, %v545
      %578 = vst.msk [vmem:[#allocation3 + $0x68] sm:$0xf] %vm456, %v546
      %579 = vst.msk [vmem:[#allocation3 + $0x6c] sm:$0xf] %vm456, %v547
      %580 = vst.msk [vmem:[#allocation3 + $0x70] sm:$0xf] %vm456, %v548
      %581 = vst.msk [vmem:[#allocation3 + $0x74] sm:$0xf] %vm456, %v549
      %582 = vst.msk [vmem:[#allocation3 + $0x78] sm:$0xf] %vm456, %v550
      %583 = vst.msk [vmem:[#allocation3 + $0x7c] sm:$0xf] %vm456, %v551
      %v584 = vld [vmem:[#allocation2] sm:$0xf]
      %v585 = vld [vmem:[#allocation2 + $0x4] sm:$0xf]
      %v586 = vld [vmem:[#allocation2 + $0x8] sm:$0x1]
      %v587 = vld [vmem:[#allocation2 + $0xc] sm:$0xf]
      %v588 = vld [vmem:[#allocation2 + $0x10] sm:$0xf]
      %v589 = vld [vmem:[#allocation2 + $0x14] sm:$0x1]
      %v590 = vld [vmem:[#allocation2 + $0x18] sm:$0xf]
      %v591 = vld [vmem:[#allocation2 + $0x1c] sm:$0xf]
      %v592 = vld [vmem:[#allocation2 + $0x20] sm:$0x1]
      %v593 = vld [vmem:[#allocation2 + $0x24] sm:$0xf]
      %v594 = vld [vmem:[#allocation2 + $0x28] sm:$0xf]
      %v595 = vld [vmem:[#allocation2 + $0x2c] sm:$0x1]
      %v596 = vld [vmem:[#allocation2 + $0x30] sm:$0xf]
      %v597 = vld [vmem:[#allocation2 + $0x34] sm:$0xf]
      %v598 = vld [vmem:[#allocation2 + $0x38] sm:$0x1]
      %v599 = vld [vmem:[#allocation2 + $0x3c] sm:$0xf]
      %v600 = vld [vmem:[#allocation2 + $0x40] sm:$0xf]
      %v601 = vld [vmem:[#allocation2 + $0x44] sm:$0x1]
      %v602 = vld [vmem:[#allocation2 + $0x48] sm:$0xf]
      %v603 = vld [vmem:[#allocation2 + $0x4c] sm:$0xf]
      %v604 = vld [vmem:[#allocation2 + $0x50] sm:$0x1]
      %v605 = vld [vmem:[#allocation2 + $0x54] sm:$0xf]
      %v606 = vld [vmem:[#allocation2 + $0x58] sm:$0xf]
      %v607 = vld [vmem:[#allocation2 + $0x5c] sm:$0x1]
      %v608 = vld [vmem:[#allocation2 + $0x60] sm:$0xf]
      %v609 = vld [vmem:[#allocation2 + $0x64] sm:$0xf]
      %v610 = vld [vmem:[#allocation2 + $0x68] sm:$0x1]
      %v611 = vld [vmem:[#allocation2 + $0x6c] sm:$0xf]
      %v612 = vld [vmem:[#allocation2 + $0x70] sm:$0xf]
      %v613 = vld [vmem:[#allocation2 + $0x74] sm:$0x1]
      %v614 = vld [vmem:[#allocation2 + $0x78] sm:$0xf]
      %v615 = vld [vmem:[#allocation2 + $0x7c] sm:$0xf]
      %v616 = vld [vmem:[#allocation2 + $0x80] sm:$0x1]
      %v617 = vld [vmem:[#allocation2 + $0x84] sm:$0xf]
      %v618 = vld [vmem:[#allocation2 + $0x88] sm:$0xf]
      %v619 = vld [vmem:[#allocation2 + $0x8c] sm:$0x1]
      %v620 = vld [vmem:[#allocation2 + $0x90] sm:$0xf]
      %v621 = vld [vmem:[#allocation2 + $0x94] sm:$0xf]
      %v622 = vld [vmem:[#allocation2 + $0x98] sm:$0x1]
      %v623 = vld [vmem:[#allocation2 + $0x9c] sm:$0xf]
      %v624 = vld [vmem:[#allocation2 + $0xa0] sm:$0xf]
      %v625 = vld [vmem:[#allocation2 + $0xa4] sm:$0x1]
      %v626 = vld [vmem:[#allocation2 + $0xa8] sm:$0xf]
      %v627 = vld [vmem:[#allocation2 + $0xac] sm:$0xf]
      %v628 = vld [vmem:[#allocation2 + $0xb0] sm:$0x1]
      %v629 = vld [vmem:[#allocation2 + $0xb4] sm:$0xf]
      %v630 = vld [vmem:[#allocation2 + $0xb8] sm:$0xf]
      %v631 = vld [vmem:[#allocation2 + $0xbc] sm:$0x1]
      %vm632 = vsmask.f32 3328
      %vm633 = vsmask.f32 7440
      %vm634 = vmor %vm632, %vm633
      %v636 = vshrl.u32 %v584, 16
      %v638 = vrot.slane %v636, 4
      %v639 = vshll.u32 %v584, 16
      %v641 = vrot.slane %v639, 5
      %v642 = vor.u32 %v638, %v641
      %v643 = vrot.slane %v642, 4
      %v645 = vshll.u32 %v585, 16
      %v647 = vrot.slane %v645, 5
      %v648 = vsel %vm634, %v643, %v647
      %v649 = vshrl.u32 %v585, 16
      %v651 = vrot.slane %v649, 4
      %v652 = vor.u32 %v651, %v647
      %v653 = vrot.slane %v652, 4
      %v655 = vshll.u32 %v586, 16
      %v657 = vrot.slane %v655, 5
      %v658 = vsel %vm634, %v653, %v657
      %v660 = vshrl.u32 %v587, 16
      %v662 = vrot.slane %v660, 4
      %v663 = vshll.u32 %v587, 16
      %v665 = vrot.slane %v663, 5
      %v666 = vor.u32 %v662, %v665
      %v667 = vrot.slane %v666, 4
      %v669 = vshll.u32 %v588, 16
      %v671 = vrot.slane %v669, 5
      %v672 = vsel %vm634, %v667, %v671
      %v673 = vshrl.u32 %v588, 16
      %v675 = vrot.slane %v673, 4
      %v676 = vor.u32 %v675, %v671
      %v677 = vrot.slane %v676, 4
      %v679 = vshll.u32 %v589, 16
      %v681 = vrot.slane %v679, 5
      %v682 = vsel %vm634, %v677, %v681
      %v684 = vshrl.u32 %v590, 16
      %v686 = vrot.slane %v684, 4
      %v687 = vshll.u32 %v590, 16
      %v689 = vrot.slane %v687, 5
      %v690 = vor.u32 %v686, %v689
      %v691 = vrot.slane %v690, 4
      %v693 = vshll.u32 %v591, 16
      %v695 = vrot.slane %v693, 5
      %v696 = vsel %vm634, %v691, %v695
      %v697 = vshrl.u32 %v591, 16
      %v699 = vrot.slane %v697, 4
      %v700 = vor.u32 %v699, %v695
      %v701 = vrot.slane %v700, 4
      %v703 = vshll.u32 %v592, 16
      %v705 = vrot.slane %v703, 5
      %v706 = vsel %vm634, %v701, %v705
      %v708 = vshrl.u32 %v593, 16
      %v710 = vrot.slane %v708, 4
      %v711 = vshll.u32 %v593, 16
      %v713 = vrot.slane %v711, 5
      %v714 = vor.u32 %v710, %v713
      %v715 = vrot.slane %v714, 4
      %v717 = vshll.u32 %v594, 16
      %v719 = vrot.slane %v717, 5
      %v720 = vsel %vm634, %v715, %v719
      %v721 = vshrl.u32 %v594, 16
      %v723 = vrot.slane %v721, 4
      %v724 = vor.u32 %v723, %v719
      %v725 = vrot.slane %v724, 4
      %v727 = vshll.u32 %v595, 16
      %v729 = vrot.slane %v727, 5
      %v730 = vsel %vm634, %v725, %v729
      %v732 = vshrl.u32 %v596, 16
      %v734 = vrot.slane %v732, 4
      %v735 = vshll.u32 %v596, 16
      %v737 = vrot.slane %v735, 5
      %v738 = vor.u32 %v734, %v737
      %v739 = vrot.slane %v738, 4
      %v741 = vshll.u32 %v597, 16
      %v743 = vrot.slane %v741, 5
      %v744 = vsel %vm634, %v739, %v743
      %v745 = vshrl.u32 %v597, 16
      %v747 = vrot.slane %v745, 4
      %v748 = vor.u32 %v747, %v743
      %v749 = vrot.slane %v748, 4
      %v751 = vshll.u32 %v598, 16
      %v753 = vrot.slane %v751, 5
      %v754 = vsel %vm634, %v749, %v753
      %v756 = vshrl.u32 %v599, 16
      %v758 = vrot.slane %v756, 4
      %v759 = vshll.u32 %v599, 16
      %v761 = vrot.slane %v759, 5
      %v762 = vor.u32 %v758, %v761
      %v763 = vrot.slane %v762, 4
      %v765 = vshll.u32 %v600, 16
      %v767 = vrot.slane %v765, 5
      %v768 = vsel %vm634, %v763, %v767
      %v769 = vshrl.u32 %v600, 16
      %v771 = vrot.slane %v769, 4
      %v772 = vor.u32 %v771, %v767
      %v773 = vrot.slane %v772, 4
      %v775 = vshll.u32 %v601, 16
      %v777 = vrot.slane %v775, 5
      %v778 = vsel %vm634, %v773, %v777
      %v780 = vshrl.u32 %v602, 16
      %v782 = vrot.slane %v780, 4
      %v783 = vshll.u32 %v602, 16
      %v785 = vrot.slane %v783, 5
      %v786 = vor.u32 %v782, %v785
      %v787 = vrot.slane %v786, 4
      %v789 = vshll.u32 %v603, 16
      %v791 = vrot.slane %v789, 5
      %v792 = vsel %vm634, %v787, %v791
      %v793 = vshrl.u32 %v603, 16
      %v795 = vrot.slane %v793, 4
      %v796 = vor.u32 %v795, %v791
      %v797 = vrot.slane %v796, 4
      %v799 = vshll.u32 %v604, 16
      %v801 = vrot.slane %v799, 5
      %v802 = vsel %vm634, %v797, %v801
      %v804 = vshrl.u32 %v605, 16
      %v806 = vrot.slane %v804, 4
      %v807 = vshll.u32 %v605, 16
      %v809 = vrot.slane %v807, 5
      %v810 = vor.u32 %v806, %v809
      %v811 = vrot.slane %v810, 4
      %v813 = vshll.u32 %v606, 16
      %v815 = vrot.slane %v813, 5
      %v816 = vsel %vm634, %v811, %v815
      %v817 = vshrl.u32 %v606, 16
      %v819 = vrot.slane %v817, 4
      %v820 = vor.u32 %v819, %v815
      %v821 = vrot.slane %v820, 4
      %v823 = vshll.u32 %v607, 16
      %v825 = vrot.slane %v823, 5
      %v826 = vsel %vm634, %v821, %v825
      %v828 = vshrl.u32 %v608, 16
      %v830 = vrot.slane %v828, 4
      %v831 = vshll.u32 %v608, 16
      %v833 = vrot.slane %v831, 5
      %v834 = vor.u32 %v830, %v833
      %v835 = vrot.slane %v834, 4
      %v837 = vshll.u32 %v609, 16
      %v839 = vrot.slane %v837, 5
      %v840 = vsel %vm634, %v835, %v839
      %v841 = vshrl.u32 %v609, 16
      %v843 = vrot.slane %v841, 4
      %v844 = vor.u32 %v843, %v839
      %v845 = vrot.slane %v844, 4
      %v847 = vshll.u32 %v610, 16
      %v849 = vrot.slane %v847, 5
      %v850 = vsel %vm634, %v845, %v849
      %v852 = vshrl.u32 %v611, 16
      %v854 = vrot.slane %v852, 4
      %v855 = vshll.u32 %v611, 16
      %v857 = vrot.slane %v855, 5
      %v858 = vor.u32 %v854, %v857
      %v859 = vrot.slane %v858, 4
      %v861 = vshll.u32 %v612, 16
      %v863 = vrot.slane %v861, 5
      %v864 = vsel %vm634, %v859, %v863
      %v865 = vshrl.u32 %v612, 16
      %v867 = vrot.slane %v865, 4
      %v868 = vor.u32 %v867, %v863
      %v869 = vrot.slane %v868, 4
      %v871 = vshll.u32 %v613, 16
      %v873 = vrot.slane %v871, 5
      %v874 = vsel %vm634, %v869, %v873
      %v876 = vshrl.u32 %v614, 16
      %v878 = vrot.slane %v876, 4
      %v879 = vshll.u32 %v614, 16
      %v881 = vrot.slane %v879, 5
      %v882 = vor.u32 %v878, %v881
      %v883 = vrot.slane %v882, 4
      %v885 = vshll.u32 %v615, 16
      %v887 = vrot.slane %v885, 5
      %v888 = vsel %vm634, %v883, %v887
      %v889 = vshrl.u32 %v615, 16
      %v891 = vrot.slane %v889, 4
      %v892 = vor.u32 %v891, %v887
      %v893 = vrot.slane %v892, 4
      %v895 = vshll.u32 %v616, 16
      %v897 = vrot.slane %v895, 5
      %v898 = vsel %vm634, %v893, %v897
      %v900 = vshrl.u32 %v617, 16
      %v902 = vrot.slane %v900, 4
      %v903 = vshll.u32 %v617, 16
      %v905 = vrot.slane %v903, 5
      %v906 = vor.u32 %v902, %v905
      %v907 = vrot.slane %v906, 4
      %v909 = vshll.u32 %v618, 16
      %v911 = vrot.slane %v909, 5
      %v912 = vsel %vm634, %v907, %v911
      %v913 = vshrl.u32 %v618, 16
      %v915 = vrot.slane %v913, 4
      %v916 = vor.u32 %v915, %v911
      %v917 = vrot.slane %v916, 4
      %v919 = vshll.u32 %v619, 16
      %v921 = vrot.slane %v919, 5
      %v922 = vsel %vm634, %v917, %v921
      %v924 = vshrl.u32 %v620, 16
      %v926 = vrot.slane %v924, 4
      %v927 = vshll.u32 %v620, 16
      %v929 = vrot.slane %v927, 5
      %v930 = vor.u32 %v926, %v929
      %v931 = vrot.slane %v930, 4
      %v933 = vshll.u32 %v621, 16
      %v935 = vrot.slane %v933, 5
      %v936 = vsel %vm634, %v931, %v935
      %v937 = vshrl.u32 %v621, 16
      %v939 = vrot.slane %v937, 4
      %v940 = vor.u32 %v939, %v935
      %v941 = vrot.slane %v940, 4
      %v943 = vshll.u32 %v622, 16
      %v945 = vrot.slane %v943, 5
      %v946 = vsel %vm634, %v941, %v945
      %v948 = vshrl.u32 %v623, 16
      %v950 = vrot.slane %v948, 4
      %v951 = vshll.u32 %v623, 16
      %v953 = vrot.slane %v951, 5
      %v954 = vor.u32 %v950, %v953
      %v955 = vrot.slane %v954, 4
      %v957 = vshll.u32 %v624, 16
      %v959 = vrot.slane %v957, 5
      %v960 = vsel %vm634, %v955, %v959
      %v961 = vshrl.u32 %v624, 16
      %v963 = vrot.slane %v961, 4
      %v964 = vor.u32 %v963, %v959
      %v965 = vrot.slane %v964, 4
      %v967 = vshll.u32 %v625, 16
      %v969 = vrot.slane %v967, 5
      %v970 = vsel %vm634, %v965, %v969
      %v972 = vshrl.u32 %v626, 16
      %v974 = vrot.slane %v972, 4
      %v975 = vshll.u32 %v626, 16
      %v977 = vrot.slane %v975, 5
      %v978 = vor.u32 %v974, %v977
      %v979 = vrot.slane %v978, 4
      %v981 = vshll.u32 %v627, 16
      %v983 = vrot.slane %v981, 5
      %v984 = vsel %vm634, %v979, %v983
      %v985 = vshrl.u32 %v627, 16
      %v987 = vrot.slane %v985, 4
      %v988 = vor.u32 %v987, %v983
      %v989 = vrot.slane %v988, 4
      %v991 = vshll.u32 %v628, 16
      %v993 = vrot.slane %v991, 5
      %v994 = vsel %vm634, %v989, %v993
      %v996 = vshrl.u32 %v629, 16
      %v998 = vrot.slane %v996, 4
      %v999 = vshll.u32 %v629, 16
      %v1001 = vrot.slane %v999, 5
      %v1002 = vor.u32 %v998, %v1001
      %v1003 = vrot.slane %v1002, 4
      %v1005 = vshll.u32 %v630, 16
      %v1007 = vrot.slane %v1005, 5
      %v1008 = vsel %vm634, %v1003, %v1007
      %v1009 = vshrl.u32 %v630, 16
      %v1011 = vrot.slane %v1009, 4
      %v1012 = vor.u32 %v1011, %v1007
      %v1013 = vrot.slane %v1012, 4
      %v1015 = vshll.u32 %v631, 16
      %v1017 = vrot.slane %v1015, 5
      %v1018 = vsel %vm634, %v1013, %v1017
      %1019 = vrot.lane.b32.xlu0 %v648, 4
      %v1020 = vpop.permute.xlu0 %1019
      %1021 = vrot.lane.b32.xlu0 %v658, 4
      %v1022 = vpop.permute.xlu0 %1021
      %1023 = vrot.lane.b32.xlu0 %v672, 4
      %v1024 = vpop.permute.xlu0 %1023
      %1025 = vrot.lane.b32.xlu0 %v682, 4
      %v1026 = vpop.permute.xlu0 %1025
      %1027 = vrot.lane.b32.xlu0 %v696, 4
      %v1028 = vpop.permute.xlu0 %1027
      %1029 = vrot.lane.b32.xlu0 %v706, 4
      %v1030 = vpop.permute.xlu0 %1029
      %1031 = vrot.lane.b32.xlu0 %v720, 4
      %v1032 = vpop.permute.xlu0 %1031
      %1033 = vrot.lane.b32.xlu0 %v730, 4
      %v1034 = vpop.permute.xlu0 %1033
      %1035 = vrot.lane.b32.xlu0 %v744, 4
      %v1036 = vpop.permute.xlu0 %1035
      %1037 = vrot.lane.b32.xlu0 %v754, 4
      %v1038 = vpop.permute.xlu0 %1037
      %1039 = vrot.lane.b32.xlu0 %v768, 4
      %v1040 = vpop.permute.xlu0 %1039
      %1041 = vrot.lane.b32.xlu0 %v778, 4
      %v1042 = vpop.permute.xlu0 %1041
      %1043 = vrot.lane.b32.xlu0 %v792, 4
      %v1044 = vpop.permute.xlu0 %1043
      %1045 = vrot.lane.b32.xlu0 %v802, 4
      %v1046 = vpop.permute.xlu0 %1045
      %1047 = vrot.lane.b32.xlu0 %v816, 4
      %v1048 = vpop.permute.xlu0 %1047
      %1049 = vrot.lane.b32.xlu0 %v826, 4
      %v1050 = vpop.permute.xlu0 %1049
      %1051 = vrot.lane.b32.xlu0 %v840, 4
      %v1052 = vpop.permute.xlu0 %1051
      %1053 = vrot.lane.b32.xlu0 %v850, 4
      %v1054 = vpop.permute.xlu0 %1053
      %1055 = vrot.lane.b32.xlu0 %v864, 4
      %v1056 = vpop.permute.xlu0 %1055
      %1057 = vrot.lane.b32.xlu0 %v874, 4
      %v1058 = vpop.permute.xlu0 %1057
      %1059 = vrot.lane.b32.xlu0 %v888, 4
      %v1060 = vpop.permute.xlu0 %1059
      %1061 = vrot.lane.b32.xlu0 %v898, 4
      %v1062 = vpop.permute.xlu0 %1061
      %1063 = vrot.lane.b32.xlu0 %v912, 4
      %v1064 = vpop.permute.xlu0 %1063
      %1065 = vrot.lane.b32.xlu0 %v922, 4
      %v1066 = vpop.permute.xlu0 %1065
      %1067 = vrot.lane.b32.xlu0 %v936, 4
      %v1068 = vpop.permute.xlu0 %1067
      %1069 = vrot.lane.b32.xlu0 %v946, 4
      %v1070 = vpop.permute.xlu0 %1069
      %1071 = vrot.lane.b32.xlu0 %v960, 4
      %v1072 = vpop.permute.xlu0 %1071
      %1073 = vrot.lane.b32.xlu0 %v970, 4
      %v1074 = vpop.permute.xlu0 %1073
      %1075 = vrot.lane.b32.xlu0 %v984, 4
      %v1076 = vpop.permute.xlu0 %1075
      %1077 = vrot.lane.b32.xlu0 %v994, 4
      %v1078 = vpop.permute.xlu0 %1077
      %1079 = vrot.lane.b32.xlu0 %v1008, 4
      %v1080 = vpop.permute.xlu0 %1079
      %1081 = vrot.lane.b32.xlu0 %v1018, 4
      %v1082 = vpop.permute.xlu0 %1081
      %vm1115 = vcmask 60448
      %1116 = vst.msk [vmem:[#allocation3] sm:$0xf] %vm1115, %v1020
      %1117 = vst.msk [vmem:[#allocation3 + $0x4] sm:$0xf] %vm1115, %v1022
      %1118 = vst.msk [vmem:[#allocation3 + $0x8] sm:$0xf] %vm1115, %v1024
      %1119 = vst.msk [vmem:[#allocation3 + $0xc] sm:$0xf] %vm1115, %v1026
      %1120 = vst.msk [vmem:[#allocation3 + $0x10] sm:$0xf] %vm1115, %v1028
      %1121 = vst.msk [vmem:[#allocation3 + $0x14] sm:$0xf] %vm1115, %v1030
      %1122 = vst.msk [vmem:[#allocation3 + $0x18] sm:$0xf] %vm1115, %v1032
      %1123 = vst.msk [vmem:[#allocation3 + $0x1c] sm:$0xf] %vm1115, %v1034
      %1124 = vst.msk [vmem:[#allocation3 + $0x20] sm:$0xf] %vm1115, %v1036
      %1125 = vst.msk [vmem:[#allocation3 + $0x24] sm:$0xf] %vm1115, %v1038
      %1126 = vst.msk [vmem:[#allocation3 + $0x28] sm:$0xf] %vm1115, %v1040
      %1127 = vst.msk [vmem:[#allocation3 + $0x2c] sm:$0xf] %vm1115, %v1042
      %1128 = vst.msk [vmem:[#allocation3 + $0x30] sm:$0xf] %vm1115, %v1044
      %1129 = vst.msk [vmem:[#allocation3 + $0x34] sm:$0xf] %vm1115, %v1046
      %1130 = vst.msk [vmem:[#allocation3 + $0x38] sm:$0xf] %vm1115, %v1048
      %1131 = vst.msk [vmem:[#allocation3 + $0x3c] sm:$0xf] %vm1115, %v1050
      %1132 = vst.msk [vmem:[#allocation3 + $0x40] sm:$0xf] %vm1115, %v1052
      %1133 = vst.msk [vmem:[#allocation3 + $0x44] sm:$0xf] %vm1115, %v1054
      %1134 = vst.msk [vmem:[#allocation3 + $0x48] sm:$0xf] %vm1115, %v1056
      %1135 = vst.msk [vmem:[#allocation3 + $0x4c] sm:$0xf] %vm1115, %v1058
      %1136 = vst.msk [vmem:[#allocation3 + $0x50] sm:$0xf] %vm1115, %v1060
      %1137 = vst.msk [vmem:[#allocation3 + $0x54] sm:$0xf] %vm1115, %v1062
      %1138 = vst.msk [vmem:[#allocation3 + $0x58] sm:$0xf] %vm1115, %v1064
      %1139 = vst.msk [vmem:[#allocation3 + $0x5c] sm:$0xf] %vm1115, %v1066
      %1140 = vst.msk [vmem:[#allocation3 + $0x60] sm:$0xf] %vm1115, %v1068
      %1141 = vst.msk [vmem:[#allocation3 + $0x64] sm:$0xf] %vm1115, %v1070
      %1142 = vst.msk [vmem:[#allocation3 + $0x68] sm:$0xf] %vm1115, %v1072
      %1143 = vst.msk [vmem:[#allocation3 + $0x6c] sm:$0xf] %vm1115, %v1074
      %1144 = vst.msk [vmem:[#allocation3 + $0x70] sm:$0xf] %vm1115, %v1076
      %1145 = vst.msk [vmem:[#allocation3 + $0x74] sm:$0xf] %vm1115, %v1078
      %1146 = vst.msk [vmem:[#allocation3 + $0x78] sm:$0xf] %vm1115, %v1080
      %1147 = vst.msk [vmem:[#allocation3 + $0x7c] sm:$0xf] %vm1115, %v1082
      %v1148 = vld [vmem:[#allocation2] sm:$0xe]
      %v1149 = vld [vmem:[#allocation2 + $0x4] sm:$0xf]
      %v1150 = vld [vmem:[#allocation2 + $0x8] sm:$0x1]
      %v1151 = vld [vmem:[#allocation2 + $0xc] sm:$0xe]
      %v1152 = vld [vmem:[#allocation2 + $0x10] sm:$0xf]
      %v1153 = vld [vmem:[#allocation2 + $0x14] sm:$0x1]
      %v1154 = vld [vmem:[#allocation2 + $0x18] sm:$0xe]
      %v1155 = vld [vmem:[#allocation2 + $0x1c] sm:$0xf]
      %v1156 = vld [vmem:[#allocation2 + $0x20] sm:$0x1]
      %v1157 = vld [vmem:[#allocation2 + $0x24] sm:$0xe]
      %v1158 = vld [vmem:[#allocation2 + $0x28] sm:$0xf]
      %v1159 = vld [vmem:[#allocation2 + $0x2c] sm:$0x1]
      %v1160 = vld [vmem:[#allocation2 + $0x30] sm:$0xe]
      %v1161 = vld [vmem:[#allocation2 + $0x34] sm:$0xf]
      %v1162 = vld [vmem:[#allocation2 + $0x38] sm:$0x1]
      %v1163 = vld [vmem:[#allocation2 + $0x3c] sm:$0xe]
      %v1164 = vld [vmem:[#allocation2 + $0x40] sm:$0xf]
      %v1165 = vld [vmem:[#allocation2 + $0x44] sm:$0x1]
      %v1166 = vld [vmem:[#allocation2 + $0x48] sm:$0xe]
      %v1167 = vld [vmem:[#allocation2 + $0x4c] sm:$0xf]
      %v1168 = vld [vmem:[#allocation2 + $0x50] sm:$0x1]
      %v1169 = vld [vmem:[#allocation2 + $0x54] sm:$0xe]
      %v1170 = vld [vmem:[#allocation2 + $0x58] sm:$0xf]
      %v1171 = vld [vmem:[#allocation2 + $0x5c] sm:$0x1]
      %v1172 = vld [vmem:[#allocation2 + $0x60] sm:$0xe]
      %v1173 = vld [vmem:[#allocation2 + $0x64] sm:$0xf]
      %v1174 = vld [vmem:[#allocation2 + $0x68] sm:$0x1]
      %v1175 = vld [vmem:[#allocation2 + $0x6c] sm:$0xe]
      %v1176 = vld [vmem:[#allocation2 + $0x70] sm:$0xf]
      %v1177 = vld [vmem:[#allocation2 + $0x74] sm:$0x1]
      %v1178 = vld [vmem:[#allocation2 + $0x78] sm:$0xe]
      %v1179 = vld [vmem:[#allocation2 + $0x7c] sm:$0xf]
      %v1180 = vld [vmem:[#allocation2 + $0x80] sm:$0x1]
      %v1181 = vld [vmem:[#allocation2 + $0x84] sm:$0xe]
      %v1182 = vld [vmem:[#allocation2 + $0x88] sm:$0xf]
      %v1183 = vld [vmem:[#allocation2 + $0x8c] sm:$0x1]
      %v1184 = vld [vmem:[#allocation2 + $0x90] sm:$0xe]
      %v1185 = vld [vmem:[#allocation2 + $0x94] sm:$0xf]
      %v1186 = vld [vmem:[#allocation2 + $0x98] sm:$0x1]
      %v1187 = vld [vmem:[#allocation2 + $0x9c] sm:$0xe]
      %v1188 = vld [vmem:[#allocation2 + $0xa0] sm:$0xf]
      %v1189 = vld [vmem:[#allocation2 + $0xa4] sm:$0x1]
      %v1190 = vld [vmem:[#allocation2 + $0xa8] sm:$0xe]
      %v1191 = vld [vmem:[#allocation2 + $0xac] sm:$0xf]
      %v1192 = vld [vmem:[#allocation2 + $0xb0] sm:$0x1]
      %v1193 = vld [vmem:[#allocation2 + $0xb4] sm:$0xe]
      %v1194 = vld [vmem:[#allocation2 + $0xb8] sm:$0xf]
      %v1195 = vld [vmem:[#allocation2 + $0xbc] sm:$0x1]
      %vm1244 = vcmask 1042432
      %vm1245 = vcmask 1046532
      %vm1246 = vmor %vm1244, %vm1245
      %v1247 = vrot.slane %v1148, 5
      %v1248 = vrot.slane %v1247, 4
      %v1249 = vrot.slane %v1149, 5
      %v1250 = vsel %vm1246, %v1248, %v1249
      %v1251 = vrot.slane %v1249, 4
      %v1252 = vrot.slane %v1150, 5
      %v1253 = vsel %vm1246, %v1251, %v1252
      %v1254 = vrot.slane %v1151, 5
      %v1255 = vrot.slane %v1254, 4
      %v1256 = vrot.slane %v1152, 5
      %v1257 = vsel %vm1246, %v1255, %v1256
      %v1258 = vrot.slane %v1256, 4
      %v1259 = vrot.slane %v1153, 5
      %v1260 = vsel %vm1246, %v1258, %v1259
      %v1261 = vrot.slane %v1154, 5
      %v1262 = vrot.slane %v1261, 4
      %v1263 = vrot.slane %v1155, 5
      %v1264 = vsel %vm1246, %v1262, %v1263
      %v1265 = vrot.slane %v1263, 4
      %v1266 = vrot.slane %v1156, 5
      %v1267 = vsel %vm1246, %v1265, %v1266
      %v1268 = vrot.slane %v1157, 5
      %v1269 = vrot.slane %v1268, 4
      %v1270 = vrot.slane %v1158, 5
      %v1271 = vsel %vm1246, %v1269, %v1270
      %v1272 = vrot.slane %v1270, 4
      %v1273 = vrot.slane %v1159, 5
      %v1274 = vsel %vm1246, %v1272, %v1273
      %v1275 = vrot.slane %v1160, 5
      %v1276 = vrot.slane %v1275, 4
      %v1277 = vrot.slane %v1161, 5
      %v1278 = vsel %vm1246, %v1276, %v1277
      %v1279 = vrot.slane %v1277, 4
      %v1280 = vrot.slane %v1162, 5
      %v1281 = vsel %vm1246, %v1279, %v1280
      %v1282 = vrot.slane %v1163, 5
      %v1283 = vrot.slane %v1282, 4
      %v1284 = vrot.slane %v1164, 5
      %v1285 = vsel %vm1246, %v1283, %v1284
      %v1286 = vrot.slane %v1284, 4
      %v1287 = vrot.slane %v1165, 5
      %v1288 = vsel %vm1246, %v1286, %v1287
      %v1289 = vrot.slane %v1166, 5
      %v1290 = vrot.slane %v1289, 4
      %v1291 = vrot.slane %v1167, 5
      %v1292 = vsel %vm1246, %v1290, %v1291
      %v1293 = vrot.slane %v1291, 4
      %v1294 = vrot.slane %v1168, 5
      %v1295 = vsel %vm1246, %v1293, %v1294
      %v1296 = vrot.slane %v1169, 5
      %v1297 = vrot.slane %v1296, 4
      %v1298 = vrot.slane %v1170, 5
      %v1299 = vsel %vm1246, %v1297, %v1298
      %v1300 = vrot.slane %v1298, 4
      %v1301 = vrot.slane %v1171, 5
      %v1302 = vsel %vm1246, %v1300, %v1301
      %v1303 = vrot.slane %v1172, 5
      %v1304 = vrot.slane %v1303, 4
      %v1305 = vrot.slane %v1173, 5
      %v1306 = vsel %vm1246, %v1304, %v1305
      %v1307 = vrot.slane %v1305, 4
      %v1308 = vrot.slane %v1174, 5
      %v1309 = vsel %vm1246, %v1307, %v1308
      %v1310 = vrot.slane %v1175, 5
      %v1311 = vrot.slane %v1310, 4
      %v1312 = vrot.slane %v1176, 5
      %v1313 = vsel %vm1246, %v1311, %v1312
      %v1314 = vrot.slane %v1312, 4
      %v1315 = vrot.slane %v1177, 5
      %v1316 = vsel %vm1246, %v1314, %v1315
      %v1317 = vrot.slane %v1178, 5
      %v1318 = vrot.slane %v1317, 4
      %v1319 = vrot.slane %v1179, 5
      %v1320 = vsel %vm1246, %v1318, %v1319
      %v1321 = vrot.slane %v1319, 4
      %v1322 = vrot.slane %v1180, 5
      %v1323 = vsel %vm1246, %v1321, %v1322
      %v1324 = vrot.slane %v1181, 5
      %v1325 = vrot.slane %v1324, 4
      %v1326 = vrot.slane %v1182, 5
      %v1327 = vsel %vm1246, %v1325, %v1326
      %v1328 = vrot.slane %v1326, 4
      %v1329 = vrot.slane %v1183, 5
      %v1330 = vsel %vm1246, %v1328, %v1329
      %v1331 = vrot.slane %v1184, 5
      %v1332 = vrot.slane %v1331, 4
      %v1333 = vrot.slane %v1185, 5
      %v1334 = vsel %vm1246, %v1332, %v1333
      %v1335 = vrot.slane %v1333, 4
      %v1336 = vrot.slane %v1186, 5
      %v1337 = vsel %vm1246, %v1335, %v1336
      %v1338 = vrot.slane %v1187, 5
      %v1339 = vrot.slane %v1338, 4
      %v1340 = vrot.slane %v1188, 5
      %v1341 = vsel %vm1246, %v1339, %v1340
      %v1342 = vrot.slane %v1340, 4
      %v1343 = vrot.slane %v1189, 5
      %v1344 = vsel %vm1246, %v1342, %v1343
      %v1345 = vrot.slane %v1190, 5
      %v1346 = vrot.slane %v1345, 4
      %v1347 = vrot.slane %v1191, 5
      %v1348 = vsel %vm1246, %v1346, %v1347
      %v1349 = vrot.slane %v1347, 4
      %v1350 = vrot.slane %v1192, 5
      %v1351 = vsel %vm1246, %v1349, %v1350
      %v1352 = vrot.slane %v1193, 5
      %v1353 = vrot.slane %v1352, 4
      %v1354 = vrot.slane %v1194, 5
      %v1355 = vsel %vm1246, %v1353, %v1354
      %v1356 = vrot.slane %v1354, 4
      %v1357 = vrot.slane %v1195, 5
      %v1358 = vsel %vm1246, %v1356, %v1357
      %1359 = vrot.lane.b32.xlu0 %v1250, 8
      %v1360 = vpop.permute.xlu0 %1359
      %1361 = vrot.lane.b32.xlu0 %v1253, 8
      %v1362 = vpop.permute.xlu0 %1361
      %1363 = vrot.lane.b32.xlu0 %v1257, 8
      %v1364 = vpop.permute.xlu0 %1363
      %1365 = vrot.lane.b32.xlu0 %v1260, 8
      %v1366 = vpop.permute.xlu0 %1365
      %1367 = vrot.lane.b32.xlu0 %v1264, 8
      %v1368 = vpop.permute.xlu0 %1367
      %1369 = vrot.lane.b32.xlu0 %v1267, 8
      %v1370 = vpop.permute.xlu0 %1369
      %1371 = vrot.lane.b32.xlu0 %v1271, 8
      %v1372 = vpop.permute.xlu0 %1371
      %1373 = vrot.lane.b32.xlu0 %v1274, 8
      %v1374 = vpop.permute.xlu0 %1373
      %1375 = vrot.lane.b32.xlu0 %v1278, 8
      %v1376 = vpop.permute.xlu0 %1375
      %1377 = vrot.lane.b32.xlu0 %v1281, 8
      %v1378 = vpop.permute.xlu0 %1377
      %1379 = vrot.lane.b32.xlu0 %v1285, 8
      %v1380 = vpop.permute.xlu0 %1379
      %1381 = vrot.lane.b32.xlu0 %v1288, 8
      %v1382 = vpop.permute.xlu0 %1381
      %1383 = vrot.lane.b32.xlu0 %v1292, 8
      %v1384 = vpop.permute.xlu0 %1383
      %1385 = vrot.lane.b32.xlu0 %v1295, 8
      %v1386 = vpop.permute.xlu0 %1385
      %1387 = vrot.lane.b32.xlu0 %v1299, 8
      %v1388 = vpop.permute.xlu0 %1387
      %1389 = vrot.lane.b32.xlu0 %v1302, 8
      %v1390 = vpop.permute.xlu0 %1389
      %1391 = vrot.lane.b32.xlu0 %v1306, 8
      %v1392 = vpop.permute.xlu0 %1391
      %1393 = vrot.lane.b32.xlu0 %v1309, 8
      %v1394 = vpop.permute.xlu0 %1393
      %1395 = vrot.lane.b32.xlu0 %v1313, 8
      %v1396 = vpop.permute.xlu0 %1395
      %1397 = vrot.lane.b32.xlu0 %v1316, 8
      %v1398 = vpop.permute.xlu0 %1397
      %1399 = vrot.lane.b32.xlu0 %v1320, 8
      %v1400 = vpop.permute.xlu0 %1399
      %1401 = vrot.lane.b32.xlu0 %v1323, 8
      %v1402 = vpop.permute.xlu0 %1401
      %1403 = vrot.lane.b32.xlu0 %v1327, 8
      %v1404 = vpop.permute.xlu0 %1403
      %1405 = vrot.lane.b32.xlu0 %v1330, 8
      %v1406 = vpop.permute.xlu0 %1405
      %1407 = vrot.lane.b32.xlu0 %v1334, 8
      %v1408 = vpop.permute.xlu0 %1407
      %1409 = vrot.lane.b32.xlu0 %v1337, 8
      %v1410 = vpop.permute.xlu0 %1409
      %1411 = vrot.lane.b32.xlu0 %v1341, 8
      %v1412 = vpop.permute.xlu0 %1411
      %1413 = vrot.lane.b32.xlu0 %v1344, 8
      %v1414 = vpop.permute.xlu0 %1413
      %1415 = vrot.lane.b32.xlu0 %v1348, 8
      %v1416 = vpop.permute.xlu0 %1415
      %1417 = vrot.lane.b32.xlu0 %v1351, 8
      %v1418 = vpop.permute.xlu0 %1417
      %1419 = vrot.lane.b32.xlu0 %v1355, 8
      %v1420 = vpop.permute.xlu0 %1419
      %1421 = vrot.lane.b32.xlu0 %v1358, 8
      %v1422 = vpop.permute.xlu0 %1421
      %vm1455 = vcmask 93248
      %1456 = vst.msk [vmem:[#allocation3] sm:$0xf] %vm1455, %v1360
      %1457 = vst.msk [vmem:[#allocation3 + $0x4] sm:$0xf] %vm1455, %v1362
      %1458 = vst.msk [vmem:[#allocation3 + $0x8] sm:$0xf] %vm1455, %v1364
      %1459 = vst.msk [vmem:[#allocation3 + $0xc] sm:$0xf] %vm1455, %v1366
      %1460 = vst.msk [vmem:[#allocation3 + $0x10] sm:$0xf] %vm1455, %v1368
      %1461 = vst.msk [vmem:[#allocation3 + $0x14] sm:$0xf] %vm1455, %v1370
      %1462 = vst.msk [vmem:[#allocation3 + $0x18] sm:$0xf] %vm1455, %v1372
      %1463 = vst.msk [vmem:[#allocation3 + $0x1c] sm:$0xf] %vm1455, %v1374
      %1464 = vst.msk [vmem:[#allocation3 + $0x20] sm:$0xf] %vm1455, %v1376
      %1465 = vst.msk [vmem:[#allocation3 + $0x24] sm:$0xf] %vm1455, %v1378
      %1466 = vst.msk [vmem:[#allocation3 + $0x28] sm:$0xf] %vm1455, %v1380
      %1467 = vst.msk [vmem:[#allocation3 + $0x2c] sm:$0xf] %vm1455, %v1382
      %1468 = vst.msk [vmem:[#allocation3 + $0x30] sm:$0xf] %vm1455, %v1384
      %1469 = vst.msk [vmem:[#allocation3 + $0x34] sm:$0xf] %vm1455, %v1386
      %1470 = vst.msk [vmem:[#allocation3 + $0x38] sm:$0xf] %vm1455, %v1388
      %1471 = vst.msk [vmem:[#allocation3 + $0x3c] sm:$0xf] %vm1455, %v1390
      %1472 = vst.msk [vmem:[#allocation3 + $0x40] sm:$0xf] %vm1455, %v1392
      %1473 = vst.msk [vmem:[#allocation3 + $0x44] sm:$0xf] %vm1455, %v1394
      %1474 = vst.msk [vmem:[#allocation3 + $0x48] sm:$0xf] %vm1455, %v1396
      %1475 = vst.msk [vmem:[#allocation3 + $0x4c] sm:$0xf] %vm1455, %v1398
      %1476 = vst.msk [vmem:[#allocation3 + $0x50] sm:$0xf] %vm1455, %v1400
      %1477 = vst.msk [vmem:[#allocation3 + $0x54] sm:$0xf] %vm1455, %v1402
      %1478 = vst.msk [vmem:[#allocation3 + $0x58] sm:$0xf] %vm1455, %v1404
      %1479 = vst.msk [vmem:[#allocation3 + $0x5c] sm:$0xf] %vm1455, %v1406
      %1480 = vst.msk [vmem:[#allocation3 + $0x60] sm:$0xf] %vm1455, %v1408
      %1481 = vst.msk [vmem:[#allocation3 + $0x64] sm:$0xf] %vm1455, %v1410
      %1482 = vst.msk [vmem:[#allocation3 + $0x68] sm:$0xf] %vm1455, %v1412
      %1483 = vst.msk [vmem:[#allocation3 + $0x6c] sm:$0xf] %vm1455, %v1414
      %1484 = vst.msk [vmem:[#allocation3 + $0x70] sm:$0xf] %vm1455, %v1416
      %1485 = vst.msk [vmem:[#allocation3 + $0x74] sm:$0xf] %vm1455, %v1418
      %1486 = vst.msk [vmem:[#allocation3 + $0x78] sm:$0xf] %vm1455, %v1420
      %1487 = vst.msk [vmem:[#allocation3 + $0x7c] sm:$0xf] %vm1455, %v1422
      %s1488 = scalar_lea.vmem [#allocation2], 12
      %v1489 = vld [vmem:[%s1488] sm:$0xf]
      %v1490 = vld [vmem:[%s1488 + $0x4] sm:$0xf]
      %v1491 = vld [vmem:[%s1488 + $0xc] sm:$0xf]
      %v1492 = vld [vmem:[%s1488 + $0x10] sm:$0xf]
      %v1493 = vld [vmem:[%s1488 + $0x18] sm:$0xf]
      %v1494 = vld [vmem:[%s1488 + $0x1c] sm:$0xf]
      %v1495 = vld [vmem:[%s1488 + $0x24] sm:$0xf]
      %v1496 = vld [vmem:[%s1488 + $0x28] sm:$0xf]
      %v1497 = vld [vmem:[%s1488 + $0x30] sm:$0xf]
      %v1498 = vld [vmem:[%s1488 + $0x34] sm:$0xf]
      %v1499 = vld [vmem:[%s1488 + $0x3c] sm:$0xf]
      %v1500 = vld [vmem:[%s1488 + $0x40] sm:$0xf]
      %v1501 = vld [vmem:[%s1488 + $0x48] sm:$0xf]
      %v1502 = vld [vmem:[%s1488 + $0x4c] sm:$0xf]
      %v1503 = vld [vmem:[%s1488 + $0x54] sm:$0xf]
      %v1504 = vld [vmem:[%s1488 + $0x58] sm:$0xf]
      %v1505 = vld [vmem:[%s1488 + $0x60] sm:$0xf]
      %v1506 = vld [vmem:[%s1488 + $0x64] sm:$0xf]
      %v1507 = vld [vmem:[%s1488 + $0x6c] sm:$0xf]
      %v1508 = vld [vmem:[%s1488 + $0x70] sm:$0xf]
      %v1509 = vld [vmem:[%s1488 + $0x78] sm:$0xf]
      %v1510 = vld [vmem:[%s1488 + $0x7c] sm:$0xf]
      %v1511 = vld [vmem:[%s1488 + $0x84] sm:$0xf]
      %v1512 = vld [vmem:[%s1488 + $0x88] sm:$0xf]
      %v1513 = vld [vmem:[%s1488 + $0x90] sm:$0xf]
      %v1514 = vld [vmem:[%s1488 + $0x94] sm:$0xf]
      %v1515 = vld [vmem:[%s1488 + $0x9c] sm:$0xf]
      %v1516 = vld [vmem:[%s1488 + $0xa0] sm:$0xf]
      %v1517 = vld [vmem:[%s1488 + $0xa8] sm:$0xf]
      %v1518 = vld [vmem:[%s1488 + $0xac] sm:$0xf]
      %v1519 = vld [vmem:[%s1488 + $0xb4] sm:$0xf]
      %v1520 = vld [vmem:[%s1488 + $0xb8] sm:$0xf]
      %1553 = vrot.lane.b32.xlu0 %v1489, 12
      %v1554 = vpop.permute.xlu0 %1553
      %1555 = vrot.lane.b32.xlu0 %v1490, 12
      %v1556 = vpop.permute.xlu0 %1555
      %1557 = vrot.lane.b32.xlu0 %v1491, 12
      %v1558 = vpop.permute.xlu0 %1557
      %1559 = vrot.lane.b32.xlu0 %v1492, 12
      %v1560 = vpop.permute.xlu0 %1559
      %1561 = vrot.lane.b32.xlu0 %v1493, 12
      %v1562 = vpop.permute.xlu0 %1561
      %1563 = vrot.lane.b32.xlu0 %v1494, 12
      %v1564 = vpop.permute.xlu0 %1563
      %1565 = vrot.lane.b32.xlu0 %v1495, 12
      %v1566 = vpop.permute.xlu0 %1565
      %1567 = vrot.lane.b32.xlu0 %v1496, 12
      %v1568 = vpop.permute.xlu0 %1567
      %1569 = vrot.lane.b32.xlu0 %v1497, 12
      %v1570 = vpop.permute.xlu0 %1569
      %1571 = vrot.lane.b32.xlu0 %v1498, 12
      %v1572 = vpop.permute.xlu0 %1571
      %1573 = vrot.lane.b32.xlu0 %v1499, 12
      %v1574 = vpop.permute.xlu0 %1573
      %1575 = vrot.lane.b32.xlu0 %v1500, 12
      %v1576 = vpop.permute.xlu0 %1575
      %1577 = vrot.lane.b32.xlu0 %v1501, 12
      %v1578 = vpop.permute.xlu0 %1577
      %1579 = vrot.lane.b32.xlu0 %v1502, 12
      %v1580 = vpop.permute.xlu0 %1579
      %1581 = vrot.lane.b32.xlu0 %v1503, 12
      %v1582 = vpop.permute.xlu0 %1581
      %1583 = vrot.lane.b32.xlu0 %v1504, 12
      %v1584 = vpop.permute.xlu0 %1583
      %1585 = vrot.lane.b32.xlu0 %v1505, 12
      %v1586 = vpop.permute.xlu0 %1585
      %1587 = vrot.lane.b32.xlu0 %v1506, 12
      %v1588 = vpop.permute.xlu0 %1587
      %1589 = vrot.lane.b32.xlu0 %v1507, 12
      %v1590 = vpop.permute.xlu0 %1589
      %1591 = vrot.lane.b32.xlu0 %v1508, 12
      %v1592 = vpop.permute.xlu0 %1591
      %1593 = vrot.lane.b32.xlu0 %v1509, 12
      %v1594 = vpop.permute.xlu0 %1593
      %1595 = vrot.lane.b32.xlu0 %v1510, 12
      %v1596 = vpop.permute.xlu0 %1595
      %1597 = vrot.lane.b32.xlu0 %v1511, 12
      %v1598 = vpop.permute.xlu0 %1597
      %1599 = vrot.lane.b32.xlu0 %v1512, 12
      %v1600 = vpop.permute.xlu0 %1599
      %1601 = vrot.lane.b32.xlu0 %v1513, 12
      %v1602 = vpop.permute.xlu0 %1601
      %1603 = vrot.lane.b32.xlu0 %v1514, 12
      %v1604 = vpop.permute.xlu0 %1603
      %1605 = vrot.lane.b32.xlu0 %v1515, 12
      %v1606 = vpop.permute.xlu0 %1605
      %1607 = vrot.lane.b32.xlu0 %v1516, 12
      %v1608 = vpop.permute.xlu0 %1607
      %1609 = vrot.lane.b32.xlu0 %v1517, 12
      %v1610 = vpop.permute.xlu0 %1609
      %1611 = vrot.lane.b32.xlu0 %v1518, 12
      %v1612 = vpop.permute.xlu0 %1611
      %1613 = vrot.lane.b32.xlu0 %v1519, 12
      %v1614 = vpop.permute.xlu0 %1613
      %1615 = vrot.lane.b32.xlu0 %v1520, 12
      %v1616 = vpop.permute.xlu0 %1615
      %vm1649 = vcmask 126048
      %1650 = vst.msk [vmem:[#allocation3] sm:$0xf] %vm1649, %v1554
      %1651 = vst.msk [vmem:[#allocation3 + $0x4] sm:$0xf] %vm1649, %v1556
      %1652 = vst.msk [vmem:[#allocation3 + $0x8] sm:$0xf] %vm1649, %v1558
      %1653 = vst.msk [vmem:[#allocation3 + $0xc] sm:$0xf] %vm1649, %v1560
      %1654 = vst.msk [vmem:[#allocation3 + $0x10] sm:$0xf] %vm1649, %v1562
      %1655 = vst.msk [vmem:[#allocation3 + $0x14] sm:$0xf] %vm1649, %v1564
      %1656 = vst.msk [vmem:[#allocation3 + $0x18] sm:$0xf] %vm1649, %v1566
      %1657 = vst.msk [vmem:[#allocation3 + $0x1c] sm:$0xf] %vm1649, %v1568
      %1658 = vst.msk [vmem:[#allocation3 + $0x20] sm:$0xf] %vm1649, %v1570
      %1659 = vst.msk [vmem:[#allocation3 + $0x24] sm:$0xf] %vm1649, %v1572
      %1660 = vst.msk [vmem:[#allocation3 + $0x28] sm:$0xf] %vm1649, %v1574
      %1661 = vst.msk [vmem:[#allocation3 + $0x2c] sm:$0xf] %vm1649, %v1576
      %1662 = vst.msk [vmem:[#allocation3 + $0x30] sm:$0xf] %vm1649, %v1578
      %1663 = vst.msk [vmem:[#allocation3 + $0x34] sm:$0xf] %vm1649, %v1580
      %1664 = vst.msk [vmem:[#allocation3 + $0x38] sm:$0xf] %vm1649, %v1582
      %1665 = vst.msk [vmem:[#allocation3 + $0x3c] sm:$0xf] %vm1649, %v1584
      %1666 = vst.msk [vmem:[#allocation3 + $0x40] sm:$0xf] %vm1649, %v1586
      %1667 = vst.msk [vmem:[#allocation3 + $0x44] sm:$0xf] %vm1649, %v1588
      %1668 = vst.msk [vmem:[#allocation3 + $0x48] sm:$0xf] %vm1649, %v1590
      %1669 = vst.msk [vmem:[#allocation3 + $0x4c] sm:$0xf] %vm1649, %v1592
      %1670 = vst.msk [vmem:[#allocation3 + $0x50] sm:$0xf] %vm1649, %v1594
      %1671 = vst.msk [vmem:[#allocation3 + $0x54] sm:$0xf] %vm1649, %v1596
      %1672 = vst.msk [vmem:[#allocation3 + $0x58] sm:$0xf] %vm1649, %v1598
      %1673 = vst.msk [vmem:[#allocation3 + $0x5c] sm:$0xf] %vm1649, %v1600
      %1674 = vst.msk [vmem:[#allocation3 + $0x60] sm:$0xf] %vm1649, %v1602
      %1675 = vst.msk [vmem:[#allocation3 + $0x64] sm:$0xf] %vm1649, %v1604
      %1676 = vst.msk [vmem:[#allocation3 + $0x68] sm:$0xf] %vm1649, %v1606
      %1677 = vst.msk [vmem:[#allocation3 + $0x6c] sm:$0xf] %vm1649, %v1608
      %1678 = vst.msk [vmem:[#allocation3 + $0x70] sm:$0xf] %vm1649, %v1610
      %1679 = vst.msk [vmem:[#allocation3 + $0x74] sm:$0xf] %vm1649, %v1612
      %1680 = vst.msk [vmem:[#allocation3 + $0x78] sm:$0xf] %vm1649, %v1614
      %1681 = vst.msk [vmem:[#allocation3 + $0x7c] sm:$0xf] %vm1649, %v1616
      %v1682 = vld [vmem:[%s1488] sm:$0xf]
      %v1683 = vld [vmem:[%s1488 + $0x4] sm:$0xf]
      %v1684 = vld [vmem:[%s1488 + $0x8] sm:$0x1]
      %v1685 = vld [vmem:[%s1488 + $0xc] sm:$0xf]
      %v1686 = vld [vmem:[%s1488 + $0x10] sm:$0xf]
      %v1687 = vld [vmem:[%s1488 + $0x14] sm:$0x1]
      %v1688 = vld [vmem:[%s1488 + $0x18] sm:$0xf]
      %v1689 = vld [vmem:[%s1488 + $0x1c] sm:$0xf]
      %v1690 = vld [vmem:[%s1488 + $0x20] sm:$0x1]
      %v1691 = vld [vmem:[%s1488 + $0x24] sm:$0xf]
      %v1692 = vld [vmem:[%s1488 + $0x28] sm:$0xf]
      %v1693 = vld [vmem:[%s1488 + $0x2c] sm:$0x1]
      %v1694 = vld [vmem:[%s1488 + $0x30] sm:$0xf]
      %v1695 = vld [vmem:[%s1488 + $0x34] sm:$0xf]
      %v1696 = vld [vmem:[%s1488 + $0x38] sm:$0x1]
      %v1697 = vld [vmem:[%s1488 + $0x3c] sm:$0xf]
      %v1698 = vld [vmem:[%s1488 + $0x40] sm:$0xf]
      %v1699 = vld [vmem:[%s1488 + $0x44] sm:$0x1]
      %v1700 = vld [vmem:[%s1488 + $0x48] sm:$0xf]
      %v1701 = vld [vmem:[%s1488 + $0x4c] sm:$0xf]
      %v1702 = vld [vmem:[%s1488 + $0x50] sm:$0x1]
      %v1703 = vld [vmem:[%s1488 + $0x54] sm:$0xf]
      %v1704 = vld [vmem:[%s1488 + $0x58] sm:$0xf]
      %v1705 = vld [vmem:[%s1488 + $0x5c] sm:$0x1]
      %v1706 = vld [vmem:[%s1488 + $0x60] sm:$0xf]
      %v1707 = vld [vmem:[%s1488 + $0x64] sm:$0xf]
      %v1708 = vld [vmem:[%s1488 + $0x68] sm:$0x1]
      %v1709 = vld [vmem:[%s1488 + $0x6c] sm:$0xf]
      %v1710 = vld [vmem:[%s1488 + $0x70] sm:$0xf]
      %v1711 = vld [vmem:[%s1488 + $0x74] sm:$0x1]
      %v1712 = vld [vmem:[%s1488 + $0x78] sm:$0xf]
      %v1713 = vld [vmem:[%s1488 + $0x7c] sm:$0xf]
      %v1714 = vld [vmem:[%s1488 + $0x80] sm:$0x1]
      %v1715 = vld [vmem:[%s1488 + $0x84] sm:$0xf]
      %v1716 = vld [vmem:[%s1488 + $0x88] sm:$0xf]
      %v1717 = vld [vmem:[%s1488 + $0x8c] sm:$0x1]
      %v1718 = vld [vmem:[%s1488 + $0x90] sm:$0xf]
      %v1719 = vld [vmem:[%s1488 + $0x94] sm:$0xf]
      %v1720 = vld [vmem:[%s1488 + $0x98] sm:$0x1]
      %v1721 = vld [vmem:[%s1488 + $0x9c] sm:$0xf]
      %v1722 = vld [vmem:[%s1488 + $0xa0] sm:$0xf]
      %v1723 = vld [vmem:[%s1488 + $0xa4] sm:$0x1]
      %v1724 = vld [vmem:[%s1488 + $0xa8] sm:$0xf]
      %v1725 = vld [vmem:[%s1488 + $0xac] sm:$0xf]
      %v1726 = vld [vmem:[%s1488 + $0xb0] sm:$0x1]
      %v1727 = vld [vmem:[%s1488 + $0xb4] sm:$0xf]
      %v1728 = vld [vmem:[%s1488 + $0xb8] sm:$0xf]
      %v1729 = vld [vmem:[%s1488 + $0xbc] sm:$0x1]
      %v1731 = vshrl.u32 %v1682, 16
      %v1733 = vrot.slane %v1731, 4
      %v1734 = vshll.u32 %v1682, 16
      %v1736 = vrot.slane %v1734, 5
      %v1737 = vor.u32 %v1733, %v1736
      %v1738 = vrot.slane %v1737, 4
      %v1740 = vshll.u32 %v1683, 16
      %v1742 = vrot.slane %v1740, 5
      %v1743 = vsel %vm634, %v1738, %v1742
      %v1744 = vshrl.u32 %v1683, 16
      %v1746 = vrot.slane %v1744, 4
      %v1747 = vor.u32 %v1746, %v1742
      %v1748 = vrot.slane %v1747, 4
      %v1750 = vshll.u32 %v1684, 16
      %v1752 = vrot.slane %v1750, 5
      %v1753 = vsel %vm634, %v1748, %v1752
      %v1755 = vshrl.u32 %v1685, 16
      %v1757 = vrot.slane %v1755, 4
      %v1758 = vshll.u32 %v1685, 16
      %v1760 = vrot.slane %v1758, 5
      %v1761 = vor.u32 %v1757, %v1760
      %v1762 = vrot.slane %v1761, 4
      %v1764 = vshll.u32 %v1686, 16
      %v1766 = vrot.slane %v1764, 5
      %v1767 = vsel %vm634, %v1762, %v1766
      %v1768 = vshrl.u32 %v1686, 16
      %v1770 = vrot.slane %v1768, 4
      %v1771 = vor.u32 %v1770, %v1766
      %v1772 = vrot.slane %v1771, 4
      %v1774 = vshll.u32 %v1687, 16
      %v1776 = vrot.slane %v1774, 5
      %v1777 = vsel %vm634, %v1772, %v1776
      %v1779 = vshrl.u32 %v1688, 16
      %v1781 = vrot.slane %v1779, 4
      %v1782 = vshll.u32 %v1688, 16
      %v1784 = vrot.slane %v1782, 5
      %v1785 = vor.u32 %v1781, %v1784
      %v1786 = vrot.slane %v1785, 4
      %v1788 = vshll.u32 %v1689, 16
      %v1790 = vrot.slane %v1788, 5
      %v1791 = vsel %vm634, %v1786, %v1790
      %v1792 = vshrl.u32 %v1689, 16
      %v1794 = vrot.slane %v1792, 4
      %v1795 = vor.u32 %v1794, %v1790
      %v1796 = vrot.slane %v1795, 4
      %v1798 = vshll.u32 %v1690, 16
      %v1800 = vrot.slane %v1798, 5
      %v1801 = vsel %vm634, %v1796, %v1800
      %v1803 = vshrl.u32 %v1691, 16
      %v1805 = vrot.slane %v1803, 4
      %v1806 = vshll.u32 %v1691, 16
      %v1808 = vrot.slane %v1806, 5
      %v1809 = vor.u32 %v1805, %v1808
      %v1810 = vrot.slane %v1809, 4
      %v1812 = vshll.u32 %v1692, 16
      %v1814 = vrot.slane %v1812, 5
      %v1815 = vsel %vm634, %v1810, %v1814
      %v1816 = vshrl.u32 %v1692, 16
      %v1818 = vrot.slane %v1816, 4
      %v1819 = vor.u32 %v1818, %v1814
      %v1820 = vrot.slane %v1819, 4
      %v1822 = vshll.u32 %v1693, 16
      %v1824 = vrot.slane %v1822, 5
      %v1825 = vsel %vm634, %v1820, %v1824
      %v1827 = vshrl.u32 %v1694, 16
      %v1829 = vrot.slane %v1827, 4
      %v1830 = vshll.u32 %v1694, 16
      %v1832 = vrot.slane %v1830, 5
      %v1833 = vor.u32 %v1829, %v1832
      %v1834 = vrot.slane %v1833, 4
      %v1836 = vshll.u32 %v1695, 16
      %v1838 = vrot.slane %v1836, 5
      %v1839 = vsel %vm634, %v1834, %v1838
      %v1840 = vshrl.u32 %v1695, 16
      %v1842 = vrot.slane %v1840, 4
      %v1843 = vor.u32 %v1842, %v1838
      %v1844 = vrot.slane %v1843, 4
      %v1846 = vshll.u32 %v1696, 16
      %v1848 = vrot.slane %v1846, 5
      %v1849 = vsel %vm634, %v1844, %v1848
      %v1851 = vshrl.u32 %v1697, 16
      %v1853 = vrot.slane %v1851, 4
      %v1854 = vshll.u32 %v1697, 16
      %v1856 = vrot.slane %v1854, 5
      %v1857 = vor.u32 %v1853, %v1856
      %v1858 = vrot.slane %v1857, 4
      %v1860 = vshll.u32 %v1698, 16
      %v1862 = vrot.slane %v1860, 5
      %v1863 = vsel %vm634, %v1858, %v1862
      %v1864 = vshrl.u32 %v1698, 16
      %v1866 = vrot.slane %v1864, 4
      %v1867 = vor.u32 %v1866, %v1862
      %v1868 = vrot.slane %v1867, 4
      %v1870 = vshll.u32 %v1699, 16
      %v1872 = vrot.slane %v1870, 5
      %v1873 = vsel %vm634, %v1868, %v1872
      %v1875 = vshrl.u32 %v1700, 16
      %v1877 = vrot.slane %v1875, 4
      %v1878 = vshll.u32 %v1700, 16
      %v1880 = vrot.slane %v1878, 5
      %v1881 = vor.u32 %v1877, %v1880
      %v1882 = vrot.slane %v1881, 4
      %v1884 = vshll.u32 %v1701, 16
      %v1886 = vrot.slane %v1884, 5
      %v1887 = vsel %vm634, %v1882, %v1886
      %v1888 = vshrl.u32 %v1701, 16
      %v1890 = vrot.slane %v1888, 4
      %v1891 = vor.u32 %v1890, %v1886
      %v1892 = vrot.slane %v1891, 4
      %v1894 = vshll.u32 %v1702, 16
      %v1896 = vrot.slane %v1894, 5
      %v1897 = vsel %vm634, %v1892, %v1896
      %v1899 = vshrl.u32 %v1703, 16
      %v1901 = vrot.slane %v1899, 4
      %v1902 = vshll.u32 %v1703, 16
      %v1904 = vrot.slane %v1902, 5
      %v1905 = vor.u32 %v1901, %v1904
      %v1906 = vrot.slane %v1905, 4
      %v1908 = vshll.u32 %v1704, 16
      %v1910 = vrot.slane %v1908, 5
      %v1911 = vsel %vm634, %v1906, %v1910
      %v1912 = vshrl.u32 %v1704, 16
      %v1914 = vrot.slane %v1912, 4
      %v1915 = vor.u32 %v1914, %v1910
      %v1916 = vrot.slane %v1915, 4
      %v1918 = vshll.u32 %v1705, 16
      %v1920 = vrot.slane %v1918, 5
      %v1921 = vsel %vm634, %v1916, %v1920
      %v1923 = vshrl.u32 %v1706, 16
      %v1925 = vrot.slane %v1923, 4
      %v1926 = vshll.u32 %v1706, 16
      %v1928 = vrot.slane %v1926, 5
      %v1929 = vor.u32 %v1925, %v1928
      %v1930 = vrot.slane %v1929, 4
      %v1932 = vshll.u32 %v1707, 16
      %v1934 = vrot.slane %v1932, 5
      %v1935 = vsel %vm634, %v1930, %v1934
      %v1936 = vshrl.u32 %v1707, 16
      %v1938 = vrot.slane %v1936, 4
      %v1939 = vor.u32 %v1938, %v1934
      %v1940 = vrot.slane %v1939, 4
      %v1942 = vshll.u32 %v1708, 16
      %v1944 = vrot.slane %v1942, 5
      %v1945 = vsel %vm634, %v1940, %v1944
      %v1947 = vshrl.u32 %v1709, 16
      %v1949 = vrot.slane %v1947, 4
      %v1950 = vshll.u32 %v1709, 16
      %v1952 = vrot.slane %v1950, 5
      %v1953 = vor.u32 %v1949, %v1952
      %v1954 = vrot.slane %v1953, 4
      %v1956 = vshll.u32 %v1710, 16
      %v1958 = vrot.slane %v1956, 5
      %v1959 = vsel %vm634, %v1954, %v1958
      %v1960 = vshrl.u32 %v1710, 16
      %v1962 = vrot.slane %v1960, 4
      %v1963 = vor.u32 %v1962, %v1958
      %v1964 = vrot.slane %v1963, 4
      %v1966 = vshll.u32 %v1711, 16
      %v1968 = vrot.slane %v1966, 5
      %v1969 = vsel %vm634, %v1964, %v1968
      %v1971 = vshrl.u32 %v1712, 16
      %v1973 = vrot.slane %v1971, 4
      %v1974 = vshll.u32 %v1712, 16
      %v1976 = vrot.slane %v1974, 5
      %v1977 = vor.u32 %v1973, %v1976
      %v1978 = vrot.slane %v1977, 4
      %v1980 = vshll.u32 %v1713, 16
      %v1982 = vrot.slane %v1980, 5
      %v1983 = vsel %vm634, %v1978, %v1982
      %v1984 = vshrl.u32 %v1713, 16
      %v1986 = vrot.slane %v1984, 4
      %v1987 = vor.u32 %v1986, %v1982
      %v1988 = vrot.slane %v1987, 4
      %v1990 = vshll.u32 %v1714, 16
      %v1992 = vrot.slane %v1990, 5
      %v1993 = vsel %vm634, %v1988, %v1992
      %v1995 = vshrl.u32 %v1715, 16
      %v1997 = vrot.slane %v1995, 4
      %v1998 = vshll.u32 %v1715, 16
      %v2000 = vrot.slane %v1998, 5
      %v2001 = vor.u32 %v1997, %v2000
      %v2002 = vrot.slane %v2001, 4
      %v2004 = vshll.u32 %v1716, 16
      %v2006 = vrot.slane %v2004, 5
      %v2007 = vsel %vm634, %v2002, %v2006
      %v2008 = vshrl.u32 %v1716, 16
      %v2010 = vrot.slane %v2008, 4
      %v2011 = vor.u32 %v2010, %v2006
      %v2012 = vrot.slane %v2011, 4
      %v2014 = vshll.u32 %v1717, 16
      %v2016 = vrot.slane %v2014, 5
      %v2017 = vsel %vm634, %v2012, %v2016
      %v2019 = vshrl.u32 %v1718, 16
      %v2021 = vrot.slane %v2019, 4
      %v2022 = vshll.u32 %v1718, 16
      %v2024 = vrot.slane %v2022, 5
      %v2025 = vor.u32 %v2021, %v2024
      %v2026 = vrot.slane %v2025, 4
      %v2028 = vshll.u32 %v1719, 16
      %v2030 = vrot.slane %v2028, 5
      %v2031 = vsel %vm634, %v2026, %v2030
      %v2032 = vshrl.u32 %v1719, 16
      %v2034 = vrot.slane %v2032, 4
      %v2035 = vor.u32 %v2034, %v2030
      %v2036 = vrot.slane %v2035, 4
      %v2038 = vshll.u32 %v1720, 16
      %v2040 = vrot.slane %v2038, 5
      %v2041 = vsel %vm634, %v2036, %v2040
      %v2043 = vshrl.u32 %v1721, 16
      %v2045 = vrot.slane %v2043, 4
      %v2046 = vshll.u32 %v1721, 16
      %v2048 = vrot.slane %v2046, 5
      %v2049 = vor.u32 %v2045, %v2048
      %v2050 = vrot.slane %v2049, 4
      %v2052 = vshll.u32 %v1722, 16
      %v2054 = vrot.slane %v2052, 5
      %v2055 = vsel %vm634, %v2050, %v2054
      %v2056 = vshrl.u32 %v1722, 16
      %v2058 = vrot.slane %v2056, 4
      %v2059 = vor.u32 %v2058, %v2054
      %v2060 = vrot.slane %v2059, 4
      %v2062 = vshll.u32 %v1723, 16
      %v2064 = vrot.slane %v2062, 5
      %v2065 = vsel %vm634, %v2060, %v2064
      %v2067 = vshrl.u32 %v1724, 16
      %v2069 = vrot.slane %v2067, 4
      %v2070 = vshll.u32 %v1724, 16
      %v2072 = vrot.slane %v2070, 5
      %v2073 = vor.u32 %v2069, %v2072
      %v2074 = vrot.slane %v2073, 4
      %v2076 = vshll.u32 %v1725, 16
      %v2078 = vrot.slane %v2076, 5
      %v2079 = vsel %vm634, %v2074, %v2078
      %v2080 = vshrl.u32 %v1725, 16
      %v2082 = vrot.slane %v2080, 4
      %v2083 = vor.u32 %v2082, %v2078
      %v2084 = vrot.slane %v2083, 4
      %v2086 = vshll.u32 %v1726, 16
      %v2088 = vrot.slane %v2086, 5
      %v2089 = vsel %vm634, %v2084, %v2088
      %v2091 = vshrl.u32 %v1727, 16
      %v2093 = vrot.slane %v2091, 4
      %v2094 = vshll.u32 %v1727, 16
      %v2096 = vrot.slane %v2094, 5
      %v2097 = vor.u32 %v2093, %v2096
      %v2098 = vrot.slane %v2097, 4
      %v2100 = vshll.u32 %v1728, 16
      %v2102 = vrot.slane %v2100, 5
      %v2103 = vsel %vm634, %v2098, %v2102
      %v2104 = vshrl.u32 %v1728, 16
      %v2106 = vrot.slane %v2104, 4
      %v2107 = vor.u32 %v2106, %v2102
      %v2108 = vrot.slane %v2107, 4
      %v2110 = vshll.u32 %v1729, 16
      %v2112 = vrot.slane %v2110, 5
      %v2113 = vsel %vm634, %v2108, %v2112
      %2114 = vrot.lane.b32.xlu0 %v1743, 16
      %v2115 = vpop.permute.xlu0 %2114
      %2116 = vrot.lane.b32.xlu0 %v1753, 16
      %v2117 = vpop.permute.xlu0 %2116
      %2118 = vrot.lane.b32.xlu0 %v1767, 16
      %v2119 = vpop.permute.xlu0 %2118
      %2120 = vrot.lane.b32.xlu0 %v1777, 16
      %v2121 = vpop.permute.xlu0 %2120
      %2122 = vrot.lane.b32.xlu0 %v1791, 16
      %v2123 = vpop.permute.xlu0 %2122
      %2124 = vrot.lane.b32.xlu0 %v1801, 16
      %v2125 = vpop.permute.xlu0 %2124
      %2126 = vrot.lane.b32.xlu0 %v1815, 16
      %v2127 = vpop.permute.xlu0 %2126
      %2128 = vrot.lane.b32.xlu0 %v1825, 16
      %v2129 = vpop.permute.xlu0 %2128
      %2130 = vrot.lane.b32.xlu0 %v1839, 16
      %v2131 = vpop.permute.xlu0 %2130
      %2132 = vrot.lane.b32.xlu0 %v1849, 16
      %v2133 = vpop.permute.xlu0 %2132
      %2134 = vrot.lane.b32.xlu0 %v1863, 16
      %v2135 = vpop.permute.xlu0 %2134
      %2136 = vrot.lane.b32.xlu0 %v1873, 16
      %v2137 = vpop.permute.xlu0 %2136
      %2138 = vrot.lane.b32.xlu0 %v1887, 16
      %v2139 = vpop.permute.xlu0 %2138
      %2140 = vrot.lane.b32.xlu0 %v1897, 16
      %v2141 = vpop.permute.xlu0 %2140
      %2142 = vrot.lane.b32.xlu0 %v1911, 16
      %v2143 = vpop.permute.xlu0 %2142
      %2144 = vrot.lane.b32.xlu0 %v1921, 16
      %v2145 = vpop.permute.xlu0 %2144
      %2146 = vrot.lane.b32.xlu0 %v1935, 16
      %v2147 = vpop.permute.xlu0 %2146
      %2148 = vrot.lane.b32.xlu0 %v1945, 16
      %v2149 = vpop.permute.xlu0 %2148
      %2150 = vrot.lane.b32.xlu0 %v1959, 16
      %v2151 = vpop.permute.xlu0 %2150
      %2152 = vrot.lane.b32.xlu0 %v1969, 16
      %v2153 = vpop.permute.xlu0 %2152
      %2154 = vrot.lane.b32.xlu0 %v1983, 16
      %v2155 = vpop.permute.xlu0 %2154
      %2156 = vrot.lane.b32.xlu0 %v1993, 16
      %v2157 = vpop.permute.xlu0 %2156
      %2158 = vrot.lane.b32.xlu0 %v2007, 16
      %v2159 = vpop.permute.xlu0 %2158
      %2160 = vrot.lane.b32.xlu0 %v2017, 16
      %v2161 = vpop.permute.xlu0 %2160
      %2162 = vrot.lane.b32.xlu0 %v2031, 16
      %v2163 = vpop.permute.xlu0 %2162
      %2164 = vrot.lane.b32.xlu0 %v2041, 16
      %v2165 = vpop.permute.xlu0 %2164
      %2166 = vrot.lane.b32.xlu0 %v2055, 16
      %v2167 = vpop.permute.xlu0 %2166
      %2168 = vrot.lane.b32.xlu0 %v2065, 16
      %v2169 = vpop.permute.xlu0 %2168
      %2170 = vrot.lane.b32.xlu0 %v2079, 16
      %v2171 = vpop.permute.xlu0 %2170
      %2172 = vrot.lane.b32.xlu0 %v2089, 16
      %v2173 = vpop.permute.xlu0 %2172
      %2174 = vrot.lane.b32.xlu0 %v2103, 16
      %v2175 = vpop.permute.xlu0 %2174
      %2176 = vrot.lane.b32.xlu0 %v2113, 16
      %v2177 = vpop.permute.xlu0 %2176
      %vm2210 = vcmask 158848
      %2211 = vst.msk [vmem:[#allocation3] sm:$0xf] %vm2210, %v2115
      %2212 = vst.msk [vmem:[#allocation3 + $0x4] sm:$0xf] %vm2210, %v2117
      %2213 = vst.msk [vmem:[#allocation3 + $0x8] sm:$0xf] %vm2210, %v2119
      %2214 = vst.msk [vmem:[#allocation3 + $0xc] sm:$0xf] %vm2210, %v2121
      %2215 = vst.msk [vmem:[#allocation3 + $0x10] sm:$0xf] %vm2210, %v2123
      %2216 = vst.msk [vmem:[#allocation3 + $0x14] sm:$0xf] %vm2210, %v2125
      %2217 = vst.msk [vmem:[#allocation3 + $0x18] sm:$0xf] %vm2210, %v2127
      %2218 = vst.msk [vmem:[#allocation3 + $0x1c] sm:$0xf] %vm2210, %v2129
      %2219 = vst.msk [vmem:[#allocation3 + $0x20] sm:$0xf] %vm2210, %v2131
      %2220 = vst.msk [vmem:[#allocation3 + $0x24] sm:$0xf] %vm2210, %v2133
      %2221 = vst.msk [vmem:[#allocation3 + $0x28] sm:$0xf] %vm2210, %v2135
      %2222 = vst.msk [vmem:[#allocation3 + $0x2c] sm:$0xf] %vm2210, %v2137
      %2223 = vst.msk [vmem:[#allocation3 + $0x30] sm:$0xf] %vm2210, %v2139
      %2224 = vst.msk [vmem:[#allocation3 + $0x34] sm:$0xf] %vm2210, %v2141
      %2225 = vst.msk [vmem:[#allocation3 + $0x38] sm:$0xf] %vm2210, %v2143
      %2226 = vst.msk [vmem:[#allocation3 + $0x3c] sm:$0xf] %vm2210, %v2145
      %2227 = vst.msk [vmem:[#allocation3 + $0x40] sm:$0xf] %vm2210, %v2147
      %2228 = vst.msk [vmem:[#allocation3 + $0x44] sm:$0xf] %vm2210, %v2149
      %2229 = vst.msk [vmem:[#allocation3 + $0x48] sm:$0xf] %vm2210, %v2151
      %2230 = vst.msk [vmem:[#allocation3 + $0x4c] sm:$0xf] %vm2210, %v2153
      %2231 = vst.msk [vmem:[#allocation3 + $0x50] sm:$0xf] %vm2210, %v2155
      %2232 = vst.msk [vmem:[#allocation3 + $0x54] sm:$0xf] %vm2210, %v2157
      %2233 = vst.msk [vmem:[#allocation3 + $0x58] sm:$0xf] %vm2210, %v2159
      %2234 = vst.msk [vmem:[#allocation3 + $0x5c] sm:$0xf] %vm2210, %v2161
      %2235 = vst.msk [vmem:[#allocation3 + $0x60] sm:$0xf] %vm2210, %v2163
      %2236 = vst.msk [vmem:[#allocation3 + $0x64] sm:$0xf] %vm2210, %v2165
      %2237 = vst.msk [vmem:[#allocation3 + $0x68] sm:$0xf] %vm2210, %v2167
      %2238 = vst.msk [vmem:[#allocation3 + $0x6c] sm:$0xf] %vm2210, %v2169
      %2239 = vst.msk [vmem:[#allocation3 + $0x70] sm:$0xf] %vm2210, %v2171
      %2240 = vst.msk [vmem:[#allocation3 + $0x74] sm:$0xf] %vm2210, %v2173
      %2241 = vst.msk [vmem:[#allocation3 + $0x78] sm:$0xf] %vm2210, %v2175
      %2242 = vst.msk [vmem:[#allocation3 + $0x7c] sm:$0xf] %vm2210, %v2177
      %v2243 = vld [vmem:[%s1488] sm:$0xe]
      %v2244 = vld [vmem:[%s1488 + $0x4] sm:$0xf]
      %v2245 = vld [vmem:[%s1488 + $0x8] sm:$0x1]
      %v2246 = vld [vmem:[%s1488 + $0xc] sm:$0xe]
      %v2247 = vld [vmem:[%s1488 + $0x10] sm:$0xf]
      %v2248 = vld [vmem:[%s1488 + $0x14] sm:$0x1]
      %v2249 = vld [vmem:[%s1488 + $0x18] sm:$0xe]
      %v2250 = vld [vmem:[%s1488 + $0x1c] sm:$0xf]
      %v2251 = vld [vmem:[%s1488 + $0x20] sm:$0x1]
      %v2252 = vld [vmem:[%s1488 + $0x24] sm:$0xe]
      %v2253 = vld [vmem:[%s1488 + $0x28] sm:$0xf]
      %v2254 = vld [vmem:[%s1488 + $0x2c] sm:$0x1]
      %v2255 = vld [vmem:[%s1488 + $0x30] sm:$0xe]
      %v2256 = vld [vmem:[%s1488 + $0x34] sm:$0xf]
      %v2257 = vld [vmem:[%s1488 + $0x38] sm:$0x1]
      %v2258 = vld [vmem:[%s1488 + $0x3c] sm:$0xe]
      %v2259 = vld [vmem:[%s1488 + $0x40] sm:$0xf]
      %v2260 = vld [vmem:[%s1488 + $0x44] sm:$0x1]
      %v2261 = vld [vmem:[%s1488 + $0x48] sm:$0xe]
      %v2262 = vld [vmem:[%s1488 + $0x4c] sm:$0xf]
      %v2263 = vld [vmem:[%s1488 + $0x50] sm:$0x1]
      %v2264 = vld [vmem:[%s1488 + $0x54] sm:$0xe]
      %v2265 = vld [vmem:[%s1488 + $0x58] sm:$0xf]
      %v2266 = vld [vmem:[%s1488 + $0x5c] sm:$0x1]
      %v2267 = vld [vmem:[%s1488 + $0x60] sm:$0xe]
      %v2268 = vld [vmem:[%s1488 + $0x64] sm:$0xf]
      %v2269 = vld [vmem:[%s1488 + $0x68] sm:$0x1]
      %v2270 = vld [vmem:[%s1488 + $0x6c] sm:$0xe]
      %v2271 = vld [vmem:[%s1488 + $0x70] sm:$0xf]
      %v2272 = vld [vmem:[%s1488 + $0x74] sm:$0x1]
      %v2273 = vld [vmem:[%s1488 + $0x78] sm:$0xe]
      %v2274 = vld [vmem:[%s1488 + $0x7c] sm:$0xf]
      %v2275 = vld [vmem:[%s1488 + $0x80] sm:$0x1]
      %v2276 = vld [vmem:[%s1488 + $0x84] sm:$0xe]
      %v2277 = vld [vmem:[%s1488 + $0x88] sm:$0xf]
      %v2278 = vld [vmem:[%s1488 + $0x8c] sm:$0x1]
      %v2279 = vld [vmem:[%s1488 + $0x90] sm:$0xe]
      %v2280 = vld [vmem:[%s1488 + $0x94] sm:$0xf]
      %v2281 = vld [vmem:[%s1488 + $0x98] sm:$0x1]
      %v2282 = vld [vmem:[%s1488 + $0x9c] sm:$0xe]
      %v2283 = vld [vmem:[%s1488 + $0xa0] sm:$0xf]
      %v2284 = vld [vmem:[%s1488 + $0xa4] sm:$0x1]
      %v2285 = vld [vmem:[%s1488 + $0xa8] sm:$0xe]
      %v2286 = vld [vmem:[%s1488 + $0xac] sm:$0xf]
      %v2287 = vld [vmem:[%s1488 + $0xb0] sm:$0x1]
      %v2288 = vld [vmem:[%s1488 + $0xb4] sm:$0xe]
      %v2289 = vld [vmem:[%s1488 + $0xb8] sm:$0xf]
      %v2290 = vld [vmem:[%s1488 + $0xbc] sm:$0x1]
      %v2339 = vrot.slane %v2243, 5
      %v2340 = vrot.slane %v2339, 4
      %v2341 = vrot.slane %v2244, 5
      %v2342 = vsel %vm1246, %v2340, %v2341
      %v2343 = vrot.slane %v2341, 4
      %v2344 = vrot.slane %v2245, 5
      %v2345 = vsel %vm1246, %v2343, %v2344
      %v2346 = vrot.slane %v2246, 5
      %v2347 = vrot.slane %v2346, 4
      %v2348 = vrot.slane %v2247, 5
      %v2349 = vsel %vm1246, %v2347, %v2348
      %v2350 = vrot.slane %v2348, 4
      %v2351 = vrot.slane %v2248, 5
      %v2352 = vsel %vm1246, %v2350, %v2351
      %v2353 = vrot.slane %v2249, 5
      %v2354 = vrot.slane %v2353, 4
      %v2355 = vrot.slane %v2250, 5
      %v2356 = vsel %vm1246, %v2354, %v2355
      %v2357 = vrot.slane %v2355, 4
      %v2358 = vrot.slane %v2251, 5
      %v2359 = vsel %vm1246, %v2357, %v2358
      %v2360 = vrot.slane %v2252, 5
      %v2361 = vrot.slane %v2360, 4
      %v2362 = vrot.slane %v2253, 5
      %v2363 = vsel %vm1246, %v2361, %v2362
      %v2364 = vrot.slane %v2362, 4
      %v2365 = vrot.slane %v2254, 5
      %v2366 = vsel %vm1246, %v2364, %v2365
      %v2367 = vrot.slane %v2255, 5
      %v2368 = vrot.slane %v2367, 4
      %v2369 = vrot.slane %v2256, 5
      %v2370 = vsel %vm1246, %v2368, %v2369
      %v2371 = vrot.slane %v2369, 4
      %v2372 = vrot.slane %v2257, 5
      %v2373 = vsel %vm1246, %v2371, %v2372
      %v2374 = vrot.slane %v2258, 5
      %v2375 = vrot.slane %v2374, 4
      %v2376 = vrot.slane %v2259, 5
      %v2377 = vsel %vm1246, %v2375, %v2376
      %v2378 = vrot.slane %v2376, 4
      %v2379 = vrot.slane %v2260, 5
      %v2380 = vsel %vm1246, %v2378, %v2379
      %v2381 = vrot.slane %v2261, 5
      %v2382 = vrot.slane %v2381, 4
      %v2383 = vrot.slane %v2262, 5
      %v2384 = vsel %vm1246, %v2382, %v2383
      %v2385 = vrot.slane %v2383, 4
      %v2386 = vrot.slane %v2263, 5
      %v2387 = vsel %vm1246, %v2385, %v2386
      %v2388 = vrot.slane %v2264, 5
      %v2389 = vrot.slane %v2388, 4
      %v2390 = vrot.slane %v2265, 5
      %v2391 = vsel %vm1246, %v2389, %v2390
      %v2392 = vrot.slane %v2390, 4
      %v2393 = vrot.slane %v2266, 5
      %v2394 = vsel %vm1246, %v2392, %v2393
      %v2395 = vrot.slane %v2267, 5
      %v2396 = vrot.slane %v2395, 4
      %v2397 = vrot.slane %v2268, 5
      %v2398 = vsel %vm1246, %v2396, %v2397
      %v2399 = vrot.slane %v2397, 4
      %v2400 = vrot.slane %v2269, 5
      %v2401 = vsel %vm1246, %v2399, %v2400
      %v2402 = vrot.slane %v2270, 5
      %v2403 = vrot.slane %v2402, 4
      %v2404 = vrot.slane %v2271, 5
      %v2405 = vsel %vm1246, %v2403, %v2404
      %v2406 = vrot.slane %v2404, 4
      %v2407 = vrot.slane %v2272, 5
      %v2408 = vsel %vm1246, %v2406, %v2407
      %v2409 = vrot.slane %v2273, 5
      %v2410 = vrot.slane %v2409, 4
      %v2411 = vrot.slane %v2274, 5
      %v2412 = vsel %vm1246, %v2410, %v2411
      %v2413 = vrot.slane %v2411, 4
      %v2414 = vrot.slane %v2275, 5
      %v2415 = vsel %vm1246, %v2413, %v2414
      %v2416 = vrot.slane %v2276, 5
      %v2417 = vrot.slane %v2416, 4
      %v2418 = vrot.slane %v2277, 5
      %v2419 = vsel %vm1246, %v2417, %v2418
      %v2420 = vrot.slane %v2418, 4
      %v2421 = vrot.slane %v2278, 5
      %v2422 = vsel %vm1246, %v2420, %v2421
      %v2423 = vrot.slane %v2279, 5
      %v2424 = vrot.slane %v2423, 4
      %v2425 = vrot.slane %v2280, 5
      %v2426 = vsel %vm1246, %v2424, %v2425
      %v2427 = vrot.slane %v2425, 4
      %v2428 = vrot.slane %v2281, 5
      %v2429 = vsel %vm1246, %v2427, %v2428
      %v2430 = vrot.slane %v2282, 5
      %v2431 = vrot.slane %v2430, 4
      %v2432 = vrot.slane %v2283, 5
      %v2433 = vsel %vm1246, %v2431, %v2432
      %v2434 = vrot.slane %v2432, 4
      %v2435 = vrot.slane %v2284, 5
      %v2436 = vsel %vm1246, %v2434, %v2435
      %v2437 = vrot.slane %v2285, 5
      %v2438 = vrot.slane %v2437, 4
      %v2439 = vrot.slane %v2286, 5
      %v2440 = vsel %vm1246, %v2438, %v2439
      %v2441 = vrot.slane %v2439, 4
      %v2442 = vrot.slane %v2287, 5
      %v2443 = vsel %vm1246, %v2441, %v2442
      %v2444 = vrot.slane %v2288, 5
      %v2445 = vrot.slane %v2444, 4
      %v2446 = vrot.slane %v2289, 5
      %v2447 = vsel %vm1246, %v2445, %v2446
      %v2448 = vrot.slane %v2446, 4
      %v2449 = vrot.slane %v2290, 5
      %v2450 = vsel %vm1246, %v2448, %v2449
      %2451 = vrot.lane.b32.xlu0 %v2342, 20
      %v2452 = vpop.permute.xlu0 %2451
      %2453 = vrot.lane.b32.xlu0 %v2345, 20
      %v2454 = vpop.permute.xlu0 %2453
      %2455 = vrot.lane.b32.xlu0 %v2349, 20
      %v2456 = vpop.permute.xlu0 %2455
      %2457 = vrot.lane.b32.xlu0 %v2352, 20
      %v2458 = vpop.permute.xlu0 %2457
      %2459 = vrot.lane.b32.xlu0 %v2356, 20
      %v2460 = vpop.permute.xlu0 %2459
      %2461 = vrot.lane.b32.xlu0 %v2359, 20
      %v2462 = vpop.permute.xlu0 %2461
      %2463 = vrot.lane.b32.xlu0 %v2363, 20
      %v2464 = vpop.permute.xlu0 %2463
      %2465 = vrot.lane.b32.xlu0 %v2366, 20
      %v2466 = vpop.permute.xlu0 %2465
      %2467 = vrot.lane.b32.xlu0 %v2370, 20
      %v2468 = vpop.permute.xlu0 %2467
      %2469 = vrot.lane.b32.xlu0 %v2373, 20
      %v2470 = vpop.permute.xlu0 %2469
      %2471 = vrot.lane.b32.xlu0 %v2377, 20
      %v2472 = vpop.permute.xlu0 %2471
      %2473 = vrot.lane.b32.xlu0 %v2380, 20
      %v2474 = vpop.permute.xlu0 %2473
      %2475 = vrot.lane.b32.xlu0 %v2384, 20
      %v2476 = vpop.permute.xlu0 %2475
      %2477 = vrot.lane.b32.xlu0 %v2387, 20
      %v2478 = vpop.permute.xlu0 %2477
      %2479 = vrot.lane.b32.xlu0 %v2391, 20
      %v2480 = vpop.permute.xlu0 %2479
      %2481 = vrot.lane.b32.xlu0 %v2394, 20
      %v2482 = vpop.permute.xlu0 %2481
      %2483 = vrot.lane.b32.xlu0 %v2398, 20
      %v2484 = vpop.permute.xlu0 %2483
      %2485 = vrot.lane.b32.xlu0 %v2401, 20
      %v2486 = vpop.permute.xlu0 %2485
      %2487 = vrot.lane.b32.xlu0 %v2405, 20
      %v2488 = vpop.permute.xlu0 %2487
      %2489 = vrot.lane.b32.xlu0 %v2408, 20
      %v2490 = vpop.permute.xlu0 %2489
      %2491 = vrot.lane.b32.xlu0 %v2412, 20
      %v2492 = vpop.permute.xlu0 %2491
      %2493 = vrot.lane.b32.xlu0 %v2415, 20
      %v2494 = vpop.permute.xlu0 %2493
      %2495 = vrot.lane.b32.xlu0 %v2419, 20
      %v2496 = vpop.permute.xlu0 %2495
      %2497 = vrot.lane.b32.xlu0 %v2422, 20
      %v2498 = vpop.permute.xlu0 %2497
      %2499 = vrot.lane.b32.xlu0 %v2426, 20
      %v2500 = vpop.permute.xlu0 %2499
      %2501 = vrot.lane.b32.xlu0 %v2429, 20
      %v2502 = vpop.permute.xlu0 %2501
      %2503 = vrot.lane.b32.xlu0 %v2433, 20
      %v2504 = vpop.permute.xlu0 %2503
      %2505 = vrot.lane.b32.xlu0 %v2436, 20
      %v2506 = vpop.permute.xlu0 %2505
      %2507 = vrot.lane.b32.xlu0 %v2440, 20
      %v2508 = vpop.permute.xlu0 %2507
      %2509 = vrot.lane.b32.xlu0 %v2443, 20
      %v2510 = vpop.permute.xlu0 %2509
      %2511 = vrot.lane.b32.xlu0 %v2447, 20
      %v2512 = vpop.permute.xlu0 %2511
      %2513 = vrot.lane.b32.xlu0 %v2450, 20
      %v2514 = vpop.permute.xlu0 %2513
      %vm2547 = vcmask 191648
      %2548 = vst.msk [vmem:[#allocation3] sm:$0xf] %vm2547, %v2452
      %2549 = vst.msk [vmem:[#allocation3 + $0x4] sm:$0xf] %vm2547, %v2454
      %2550 = vst.msk [vmem:[#allocation3 + $0x8] sm:$0xf] %vm2547, %v2456
      %2551 = vst.msk [vmem:[#allocation3 + $0xc] sm:$0xf] %vm2547, %v2458
      %2552 = vst.msk [vmem:[#allocation3 + $0x10] sm:$0xf] %vm2547, %v2460
      %2553 = vst.msk [vmem:[#allocation3 + $0x14] sm:$0xf] %vm2547, %v2462
      %2554 = vst.msk [vmem:[#allocation3 + $0x18] sm:$0xf] %vm2547, %v2464
      %2555 = vst.msk [vmem:[#allocation3 + $0x1c] sm:$0xf] %vm2547, %v2466
      %2556 = vst.msk [vmem:[#allocation3 + $0x20] sm:$0xf] %vm2547, %v2468
      %2557 = vst.msk [vmem:[#allocation3 + $0x24] sm:$0xf] %vm2547, %v2470
      %2558 = vst.msk [vmem:[#allocation3 + $0x28] sm:$0xf] %vm2547, %v2472
      %2559 = vst.msk [vmem:[#allocation3 + $0x2c] sm:$0xf] %vm2547, %v2474
      %2560 = vst.msk [vmem:[#allocation3 + $0x30] sm:$0xf] %vm2547, %v2476
      %2561 = vst.msk [vmem:[#allocation3 + $0x34] sm:$0xf] %vm2547, %v2478
      %2562 = vst.msk [vmem:[#allocation3 + $0x38] sm:$0xf] %vm2547, %v2480
      %2563 = vst.msk [vmem:[#allocation3 + $0x3c] sm:$0xf] %vm2547, %v2482
      %2564 = vst.msk [vmem:[#allocation3 + $0x40] sm:$0xf] %vm2547, %v2484
      %2565 = vst.msk [vmem:[#allocation3 + $0x44] sm:$0xf] %vm2547, %v2486
      %2566 = vst.msk [vmem:[#allocation3 + $0x48] sm:$0xf] %vm2547, %v2488
      %2567 = vst.msk [vmem:[#allocation3 + $0x4c] sm:$0xf] %vm2547, %v2490
      %2568 = vst.msk [vmem:[#allocation3 + $0x50] sm:$0xf] %vm2547, %v2492
      %2569 = vst.msk [vmem:[#allocation3 + $0x54] sm:$0xf] %vm2547, %v2494
      %2570 = vst.msk [vmem:[#allocation3 + $0x58] sm:$0xf] %vm2547, %v2496
      %2571 = vst.msk [vmem:[#allocation3 + $0x5c] sm:$0xf] %vm2547, %v2498
      %2572 = vst.msk [vmem:[#allocation3 + $0x60] sm:$0xf] %vm2547, %v2500
      %2573 = vst.msk [vmem:[#allocation3 + $0x64] sm:$0xf] %vm2547, %v2502
      %2574 = vst.msk [vmem:[#allocation3 + $0x68] sm:$0xf] %vm2547, %v2504
      %2575 = vst.msk [vmem:[#allocation3 + $0x6c] sm:$0xf] %vm2547, %v2506
      %2576 = vst.msk [vmem:[#allocation3 + $0x70] sm:$0xf] %vm2547, %v2508
      %2577 = vst.msk [vmem:[#allocation3 + $0x74] sm:$0xf] %vm2547, %v2510
      %2578 = vst.msk [vmem:[#allocation3 + $0x78] sm:$0xf] %vm2547, %v2512
      %2579 = vst.msk [vmem:[#allocation3 + $0x7c] sm:$0xf] %vm2547, %v2514
      %s2580 = scalar_lea.vmem [#allocation2], 24
      %v2581 = vld [vmem:[%s2580] sm:$0xf]
      %v2582 = vld [vmem:[%s2580 + $0x4] sm:$0xf]
      %v2583 = vld [vmem:[%s2580 + $0xc] sm:$0xf]
      %v2584 = vld [vmem:[%s2580 + $0x10] sm:$0xf]
      %v2585 = vld [vmem:[%s2580 + $0x18] sm:$0xf]
      %v2586 = vld [vmem:[%s2580 + $0x1c] sm:$0xf]
      %v2587 = vld [vmem:[%s2580 + $0x24] sm:$0xf]
      %v2588 = vld [vmem:[%s2580 + $0x28] sm:$0xf]
      %v2589 = vld [vmem:[%s2580 + $0x30] sm:$0xf]
      %v2590 = vld [vmem:[%s2580 + $0x34] sm:$0xf]
      %v2591 = vld [vmem:[%s2580 + $0x3c] sm:$0xf]
      %v2592 = vld [vmem:[%s2580 + $0x40] sm:$0xf]
      %v2593 = vld [vmem:[%s2580 + $0x48] sm:$0xf]
      %v2594 = vld [vmem:[%s2580 + $0x4c] sm:$0xf]
      %v2595 = vld [vmem:[%s2580 + $0x54] sm:$0xf]
      %v2596 = vld [vmem:[%s2580 + $0x58] sm:$0xf]
      %v2597 = vld [vmem:[%s2580 + $0x60] sm:$0xf]
      %v2598 = vld [vmem:[%s2580 + $0x64] sm:$0xf]
      %v2599 = vld [vmem:[%s2580 + $0x6c] sm:$0xf]
      %v2600 = vld [vmem:[%s2580 + $0x70] sm:$0xf]
      %v2601 = vld [vmem:[%s2580 + $0x78] sm:$0xf]
      %v2602 = vld [vmem:[%s2580 + $0x7c] sm:$0xf]
      %v2603 = vld [vmem:[%s2580 + $0x84] sm:$0xf]
      %v2604 = vld [vmem:[%s2580 + $0x88] sm:$0xf]
      %v2605 = vld [vmem:[%s2580 + $0x90] sm:$0xf]
      %v2606 = vld [vmem:[%s2580 + $0x94] sm:$0xf]
      %v2607 = vld [vmem:[%s2580 + $0x9c] sm:$0xf]
      %v2608 = vld [vmem:[%s2580 + $0xa0] sm:$0xf]
      %v2609 = vld [vmem:[%s2580 + $0xa8] sm:$0xf]
      %v2610 = vld [vmem:[%s2580 + $0xac] sm:$0xf]
      %v2611 = vld [vmem:[%s2580 + $0xb4] sm:$0xf]
      %v2612 = vld [vmem:[%s2580 + $0xb8] sm:$0xf]
      %2645 = vrot.lane.b32.xlu0 %v2581, 24
      %v2646 = vpop.permute.xlu0 %2645
      %2647 = vrot.lane.b32.xlu0 %v2582, 24
      %v2648 = vpop.permute.xlu0 %2647
      %2649 = vrot.lane.b32.xlu0 %v2583, 24
      %v2650 = vpop.permute.xlu0 %2649
      %2651 = vrot.lane.b32.xlu0 %v2584, 24
      %v2652 = vpop.permute.xlu0 %2651
      %2653 = vrot.lane.b32.xlu0 %v2585, 24
      %v2654 = vpop.permute.xlu0 %2653
      %2655 = vrot.lane.b32.xlu0 %v2586, 24
      %v2656 = vpop.permute.xlu0 %2655
      %2657 = vrot.lane.b32.xlu0 %v2587, 24
      %v2658 = vpop.permute.xlu0 %2657
      %2659 = vrot.lane.b32.xlu0 %v2588, 24
      %v2660 = vpop.permute.xlu0 %2659
      %2661 = vrot.lane.b32.xlu0 %v2589, 24
      %v2662 = vpop.permute.xlu0 %2661
      %2663 = vrot.lane.b32.xlu0 %v2590, 24
      %v2664 = vpop.permute.xlu0 %2663
      %2665 = vrot.lane.b32.xlu0 %v2591, 24
      %v2666 = vpop.permute.xlu0 %2665
      %2667 = vrot.lane.b32.xlu0 %v2592, 24
      %v2668 = vpop.permute.xlu0 %2667
      %2669 = vrot.lane.b32.xlu0 %v2593, 24
      %v2670 = vpop.permute.xlu0 %2669
      %2671 = vrot.lane.b32.xlu0 %v2594, 24
      %v2672 = vpop.permute.xlu0 %2671
      %2673 = vrot.lane.b32.xlu0 %v2595, 24
      %v2674 = vpop.permute.xlu0 %2673
      %2675 = vrot.lane.b32.xlu0 %v2596, 24
      %v2676 = vpop.permute.xlu0 %2675
      %2677 = vrot.lane.b32.xlu0 %v2597, 24
      %v2678 = vpop.permute.xlu0 %2677
      %2679 = vrot.lane.b32.xlu0 %v2598, 24
      %v2680 = vpop.permute.xlu0 %2679
      %2681 = vrot.lane.b32.xlu0 %v2599, 24
      %v2682 = vpop.permute.xlu0 %2681
      %2683 = vrot.lane.b32.xlu0 %v2600, 24
      %v2684 = vpop.permute.xlu0 %2683
      %2685 = vrot.lane.b32.xlu0 %v2601, 24
      %v2686 = vpop.permute.xlu0 %2685
      %2687 = vrot.lane.b32.xlu0 %v2602, 24
      %v2688 = vpop.permute.xlu0 %2687
      %2689 = vrot.lane.b32.xlu0 %v2603, 24
      %v2690 = vpop.permute.xlu0 %2689
      %2691 = vrot.lane.b32.xlu0 %v2604, 24
      %v2692 = vpop.permute.xlu0 %2691
      %2693 = vrot.lane.b32.xlu0 %v2605, 24
      %v2694 = vpop.permute.xlu0 %2693
      %2695 = vrot.lane.b32.xlu0 %v2606, 24
      %v2696 = vpop.permute.xlu0 %2695
      %2697 = vrot.lane.b32.xlu0 %v2607, 24
      %v2698 = vpop.permute.xlu0 %2697
      %2699 = vrot.lane.b32.xlu0 %v2608, 24
      %v2700 = vpop.permute.xlu0 %2699
      %2701 = vrot.lane.b32.xlu0 %v2609, 24
      %v2702 = vpop.permute.xlu0 %2701
      %2703 = vrot.lane.b32.xlu0 %v2610, 24
      %v2704 = vpop.permute.xlu0 %2703
      %2705 = vrot.lane.b32.xlu0 %v2611, 24
      %v2706 = vpop.permute.xlu0 %2705
      %2707 = vrot.lane.b32.xlu0 %v2612, 24
      %v2708 = vpop.permute.xlu0 %2707
      %vm2741 = vcmask 224448
      %2742 = vst.msk [vmem:[#allocation3] sm:$0xf] %vm2741, %v2646
      %2743 = vst.msk [vmem:[#allocation3 + $0x4] sm:$0xf] %vm2741, %v2648
      %2744 = vst.msk [vmem:[#allocation3 + $0x8] sm:$0xf] %vm2741, %v2650
      %2745 = vst.msk [vmem:[#allocation3 + $0xc] sm:$0xf] %vm2741, %v2652
      %2746 = vst.msk [vmem:[#allocation3 + $0x10] sm:$0xf] %vm2741, %v2654
      %2747 = vst.msk [vmem:[#allocation3 + $0x14] sm:$0xf] %vm2741, %v2656
      %2748 = vst.msk [vmem:[#allocation3 + $0x18] sm:$0xf] %vm2741, %v2658
      %2749 = vst.msk [vmem:[#allocation3 + $0x1c] sm:$0xf] %vm2741, %v2660
      %2750 = vst.msk [vmem:[#allocation3 + $0x20] sm:$0xf] %vm2741, %v2662
      %2751 = vst.msk [vmem:[#allocation3 + $0x24] sm:$0xf] %vm2741, %v2664
      %2752 = vst.msk [vmem:[#allocation3 + $0x28] sm:$0xf] %vm2741, %v2666
      %2753 = vst.msk [vmem:[#allocation3 + $0x2c] sm:$0xf] %vm2741, %v2668
      %2754 = vst.msk [vmem:[#allocation3 + $0x30] sm:$0xf] %vm2741, %v2670
      %2755 = vst.msk [vmem:[#allocation3 + $0x34] sm:$0xf] %vm2741, %v2672
      %2756 = vst.msk [vmem:[#allocation3 + $0x38] sm:$0xf] %vm2741, %v2674
      %2757 = vst.msk [vmem:[#allocation3 + $0x3c] sm:$0xf] %vm2741, %v2676
      %2758 = vst.msk [vmem:[#allocation3 + $0x40] sm:$0xf] %vm2741, %v2678
      %2759 = vst.msk [vmem:[#allocation3 + $0x44] sm:$0xf] %vm2741, %v2680
      %2760 = vst.msk [vmem:[#allocation3 + $0x48] sm:$0xf] %vm2741, %v2682
      %2761 = vst.msk [vmem:[#allocation3 + $0x4c] sm:$0xf] %vm2741, %v2684
      %2762 = vst.msk [vmem:[#allocation3 + $0x50] sm:$0xf] %vm2741, %v2686
      %2763 = vst.msk [vmem:[#allocation3 + $0x54] sm:$0xf] %vm2741, %v2688
      %2764 = vst.msk [vmem:[#allocation3 + $0x58] sm:$0xf] %vm2741, %v2690
      %2765 = vst.msk [vmem:[#allocation3 + $0x5c] sm:$0xf] %vm2741, %v2692
      %2766 = vst.msk [vmem:[#allocation3 + $0x60] sm:$0xf] %vm2741, %v2694
      %2767 = vst.msk [vmem:[#allocation3 + $0x64] sm:$0xf] %vm2741, %v2696
      %2768 = vst.msk [vmem:[#allocation3 + $0x68] sm:$0xf] %vm2741, %v2698
      %2769 = vst.msk [vmem:[#allocation3 + $0x6c] sm:$0xf] %vm2741, %v2700
      %2770 = vst.msk [vmem:[#allocation3 + $0x70] sm:$0xf] %vm2741, %v2702
      %2771 = vst.msk [vmem:[#allocation3 + $0x74] sm:$0xf] %vm2741, %v2704
      %2772 = vst.msk [vmem:[#allocation3 + $0x78] sm:$0xf] %vm2741, %v2706
      %2773 = vst.msk [vmem:[#allocation3 + $0x7c] sm:$0xf] %vm2741, %v2708
      %v2774 = vld [vmem:[%s2580] sm:$0xf]
      %v2775 = vld [vmem:[%s2580 + $0x4] sm:$0xf]
      %v2776 = vld [vmem:[%s2580 + $0x8] sm:$0x1]
      %v2777 = vld [vmem:[%s2580 + $0xc] sm:$0xf]
      %v2778 = vld [vmem:[%s2580 + $0x10] sm:$0xf]
      %v2779 = vld [vmem:[%s2580 + $0x14] sm:$0x1]
      %v2780 = vld [vmem:[%s2580 + $0x18] sm:$0xf]
      %v2781 = vld [vmem:[%s2580 + $0x1c] sm:$0xf]
      %v2782 = vld [vmem:[%s2580 + $0x20] sm:$0x1]
      %v2783 = vld [vmem:[%s2580 + $0x24] sm:$0xf]
      %v2784 = vld [vmem:[%s2580 + $0x28] sm:$0xf]
      %v2785 = vld [vmem:[%s2580 + $0x2c] sm:$0x1]
      %v2786 = vld [vmem:[%s2580 + $0x30] sm:$0xf]
      %v2787 = vld [vmem:[%s2580 + $0x34] sm:$0xf]
      %v2788 = vld [vmem:[%s2580 + $0x38] sm:$0x1]
      %v2789 = vld [vmem:[%s2580 + $0x3c] sm:$0xf]
      %v2790 = vld [vmem:[%s2580 + $0x40] sm:$0xf]
      %v2791 = vld [vmem:[%s2580 + $0x44] sm:$0x1]
      %v2792 = vld [vmem:[%s2580 + $0x48] sm:$0xf]
      %v2793 = vld [vmem:[%s2580 + $0x4c] sm:$0xf]
      %v2794 = vld [vmem:[%s2580 + $0x50] sm:$0x1]
      %v2795 = vld [vmem:[%s2580 + $0x54] sm:$0xf]
      %v2796 = vld [vmem:[%s2580 + $0x58] sm:$0xf]
      %v2797 = vld [vmem:[%s2580 + $0x5c] sm:$0x1]
      %v2798 = vld [vmem:[%s2580 + $0x60] sm:$0xf]
      %v2799 = vld [vmem:[%s2580 + $0x64] sm:$0xf]
      %v2800 = vld [vmem:[%s2580 + $0x68] sm:$0x1]
      %v2801 = vld [vmem:[%s2580 + $0x6c] sm:$0xf]
      %v2802 = vld [vmem:[%s2580 + $0x70] sm:$0xf]
      %v2803 = vld [vmem:[%s2580 + $0x74] sm:$0x1]
      %v2804 = vld [vmem:[%s2580 + $0x78] sm:$0xf]
      %v2805 = vld [vmem:[%s2580 + $0x7c] sm:$0xf]
      %v2806 = vld [vmem:[%s2580 + $0x80] sm:$0x1]
      %v2807 = vld [vmem:[%s2580 + $0x84] sm:$0xf]
      %v2808 = vld [vmem:[%s2580 + $0x88] sm:$0xf]
      %v2809 = vld [vmem:[%s2580 + $0x8c] sm:$0x1]
      %v2810 = vld [vmem:[%s2580 + $0x90] sm:$0xf]
      %v2811 = vld [vmem:[%s2580 + $0x94] sm:$0xf]
      %v2812 = vld [vmem:[%s2580 + $0x98] sm:$0x1]
      %v2813 = vld [vmem:[%s2580 + $0x9c] sm:$0xf]
      %v2814 = vld [vmem:[%s2580 + $0xa0] sm:$0xf]
      %v2815 = vld [vmem:[%s2580 + $0xa4] sm:$0x1]
      %v2816 = vld [vmem:[%s2580 + $0xa8] sm:$0xf]
      %v2817 = vld [vmem:[%s2580 + $0xac] sm:$0xf]
      %v2818 = vld [vmem:[%s2580 + $0xb0] sm:$0x1]
      %v2819 = vld [vmem:[%s2580 + $0xb4] sm:$0xf]
      %v2820 = vld [vmem:[%s2580 + $0xb8] sm:$0xf]
      %v2821 = vld [vmem:[%s2580 + $0xbc] sm:$0x1]
      %v2823 = vshrl.u32 %v2774, 16
      %v2825 = vrot.slane %v2823, 4
      %v2826 = vshll.u32 %v2774, 16
      %v2828 = vrot.slane %v2826, 5
      %v2829 = vor.u32 %v2825, %v2828
      %v2830 = vrot.slane %v2829, 4
      %v2832 = vshll.u32 %v2775, 16
      %v2834 = vrot.slane %v2832, 5
      %v2835 = vsel %vm634, %v2830, %v2834
      %v2836 = vshrl.u32 %v2775, 16
      %v2838 = vrot.slane %v2836, 4
      %v2839 = vor.u32 %v2838, %v2834
      %v2840 = vrot.slane %v2839, 4
      %v2842 = vshll.u32 %v2776, 16
      %v2844 = vrot.slane %v2842, 5
      %v2845 = vsel %vm634, %v2840, %v2844
      %v2847 = vshrl.u32 %v2777, 16
      %v2849 = vrot.slane %v2847, 4
      %v2850 = vshll.u32 %v2777, 16
      %v2852 = vrot.slane %v2850, 5
      %v2853 = vor.u32 %v2849, %v2852
      %v2854 = vrot.slane %v2853, 4
      %v2856 = vshll.u32 %v2778, 16
      %v2858 = vrot.slane %v2856, 5
      %v2859 = vsel %vm634, %v2854, %v2858
      %v2860 = vshrl.u32 %v2778, 16
      %v2862 = vrot.slane %v2860, 4
      %v2863 = vor.u32 %v2862, %v2858
      %v2864 = vrot.slane %v2863, 4
      %v2866 = vshll.u32 %v2779, 16
      %v2868 = vrot.slane %v2866, 5
      %v2869 = vsel %vm634, %v2864, %v2868
      %v2871 = vshrl.u32 %v2780, 16
      %v2873 = vrot.slane %v2871, 4
      %v2874 = vshll.u32 %v2780, 16
      %v2876 = vrot.slane %v2874, 5
      %v2877 = vor.u32 %v2873, %v2876
      %v2878 = vrot.slane %v2877, 4
      %v2880 = vshll.u32 %v2781, 16
      %v2882 = vrot.slane %v2880, 5
      %v2883 = vsel %vm634, %v2878, %v2882
      %v2884 = vshrl.u32 %v2781, 16
      %v2886 = vrot.slane %v2884, 4
      %v2887 = vor.u32 %v2886, %v2882
      %v2888 = vrot.slane %v2887, 4
      %v2890 = vshll.u32 %v2782, 16
      %v2892 = vrot.slane %v2890, 5
      %v2893 = vsel %vm634, %v2888, %v2892
      %v2895 = vshrl.u32 %v2783, 16
      %v2897 = vrot.slane %v2895, 4
      %v2898 = vshll.u32 %v2783, 16
      %v2900 = vrot.slane %v2898, 5
      %v2901 = vor.u32 %v2897, %v2900
      %v2902 = vrot.slane %v2901, 4
      %v2904 = vshll.u32 %v2784, 16
      %v2906 = vrot.slane %v2904, 5
      %v2907 = vsel %vm634, %v2902, %v2906
      %v2908 = vshrl.u32 %v2784, 16
      %v2910 = vrot.slane %v2908, 4
      %v2911 = vor.u32 %v2910, %v2906
      %v2912 = vrot.slane %v2911, 4
      %v2914 = vshll.u32 %v2785, 16
      %v2916 = vrot.slane %v2914, 5
      %v2917 = vsel %vm634, %v2912, %v2916
      %v2919 = vshrl.u32 %v2786, 16
      %v2921 = vrot.slane %v2919, 4
      %v2922 = vshll.u32 %v2786, 16
      %v2924 = vrot.slane %v2922, 5
      %v2925 = vor.u32 %v2921, %v2924
      %v2926 = vrot.slane %v2925, 4
      %v2928 = vshll.u32 %v2787, 16
      %v2930 = vrot.slane %v2928, 5
      %v2931 = vsel %vm634, %v2926, %v2930
      %v2932 = vshrl.u32 %v2787, 16
      %v2934 = vrot.slane %v2932, 4
      %v2935 = vor.u32 %v2934, %v2930
      %v2936 = vrot.slane %v2935, 4
      %v2938 = vshll.u32 %v2788, 16
      %v2940 = vrot.slane %v2938, 5
      %v2941 = vsel %vm634, %v2936, %v2940
      %v2943 = vshrl.u32 %v2789, 16
      %v2945 = vrot.slane %v2943, 4
      %v2946 = vshll.u32 %v2789, 16
      %v2948 = vrot.slane %v2946, 5
      %v2949 = vor.u32 %v2945, %v2948
      %v2950 = vrot.slane %v2949, 4
      %v2952 = vshll.u32 %v2790, 16
      %v2954 = vrot.slane %v2952, 5
      %v2955 = vsel %vm634, %v2950, %v2954
      %v2956 = vshrl.u32 %v2790, 16
      %v2958 = vrot.slane %v2956, 4
      %v2959 = vor.u32 %v2958, %v2954
      %v2960 = vrot.slane %v2959, 4
      %v2962 = vshll.u32 %v2791, 16
      %v2964 = vrot.slane %v2962, 5
      %v2965 = vsel %vm634, %v2960, %v2964
      %v2967 = vshrl.u32 %v2792, 16
      %v2969 = vrot.slane %v2967, 4
      %v2970 = vshll.u32 %v2792, 16
      %v2972 = vrot.slane %v2970, 5
      %v2973 = vor.u32 %v2969, %v2972
      %v2974 = vrot.slane %v2973, 4
      %v2976 = vshll.u32 %v2793, 16
      %v2978 = vrot.slane %v2976, 5
      %v2979 = vsel %vm634, %v2974, %v2978
      %v2980 = vshrl.u32 %v2793, 16
      %v2982 = vrot.slane %v2980, 4
      %v2983 = vor.u32 %v2982, %v2978
      %v2984 = vrot.slane %v2983, 4
      %v2986 = vshll.u32 %v2794, 16
      %v2988 = vrot.slane %v2986, 5
      %v2989 = vsel %vm634, %v2984, %v2988
      %v2991 = vshrl.u32 %v2795, 16
      %v2993 = vrot.slane %v2991, 4
      %v2994 = vshll.u32 %v2795, 16
      %v2996 = vrot.slane %v2994, 5
      %v2997 = vor.u32 %v2993, %v2996
      %v2998 = vrot.slane %v2997, 4
      %v3000 = vshll.u32 %v2796, 16
      %v3002 = vrot.slane %v3000, 5
      %v3003 = vsel %vm634, %v2998, %v3002
      %v3004 = vshrl.u32 %v2796, 16
      %v3006 = vrot.slane %v3004, 4
      %v3007 = vor.u32 %v3006, %v3002
      %v3008 = vrot.slane %v3007, 4
      %v3010 = vshll.u32 %v2797, 16
      %v3012 = vrot.slane %v3010, 5
      %v3013 = vsel %vm634, %v3008, %v3012
      %v3015 = vshrl.u32 %v2798, 16
      %v3017 = vrot.slane %v3015, 4
      %v3018 = vshll.u32 %v2798, 16
      %v3020 = vrot.slane %v3018, 5
      %v3021 = vor.u32 %v3017, %v3020
      %v3022 = vrot.slane %v3021, 4
      %v3024 = vshll.u32 %v2799, 16
      %v3026 = vrot.slane %v3024, 5
      %v3027 = vsel %vm634, %v3022, %v3026
      %v3028 = vshrl.u32 %v2799, 16
      %v3030 = vrot.slane %v3028, 4
      %v3031 = vor.u32 %v3030, %v3026
      %v3032 = vrot.slane %v3031, 4
      %v3034 = vshll.u32 %v2800, 16
      %v3036 = vrot.slane %v3034, 5
      %v3037 = vsel %vm634, %v3032, %v3036
      %v3039 = vshrl.u32 %v2801, 16
      %v3041 = vrot.slane %v3039, 4
      %v3042 = vshll.u32 %v2801, 16
      %v3044 = vrot.slane %v3042, 5
      %v3045 = vor.u32 %v3041, %v3044
      %v3046 = vrot.slane %v3045, 4
      %v3048 = vshll.u32 %v2802, 16
      %v3050 = vrot.slane %v3048, 5
      %v3051 = vsel %vm634, %v3046, %v3050
      %v3052 = vshrl.u32 %v2802, 16
      %v3054 = vrot.slane %v3052, 4
      %v3055 = vor.u32 %v3054, %v3050
      %v3056 = vrot.slane %v3055, 4
      %v3058 = vshll.u32 %v2803, 16
      %v3060 = vrot.slane %v3058, 5
      %v3061 = vsel %vm634, %v3056, %v3060
      %v3063 = vshrl.u32 %v2804, 16
      %v3065 = vrot.slane %v3063, 4
      %v3066 = vshll.u32 %v2804, 16
      %v3068 = vrot.slane %v3066, 5
      %v3069 = vor.u32 %v3065, %v3068
      %v3070 = vrot.slane %v3069, 4
      %v3072 = vshll.u32 %v2805, 16
      %v3074 = vrot.slane %v3072, 5
      %v3075 = vsel %vm634, %v3070, %v3074
      %v3076 = vshrl.u32 %v2805, 16
      %v3078 = vrot.slane %v3076, 4
      %v3079 = vor.u32 %v3078, %v3074
      %v3080 = vrot.slane %v3079, 4
      %v3082 = vshll.u32 %v2806, 16
      %v3084 = vrot.slane %v3082, 5
      %v3085 = vsel %vm634, %v3080, %v3084
      %v3087 = vshrl.u32 %v2807, 16
      %v3089 = vrot.slane %v3087, 4
      %v3090 = vshll.u32 %v2807, 16
      %v3092 = vrot.slane %v3090, 5
      %v3093 = vor.u32 %v3089, %v3092
      %v3094 = vrot.slane %v3093, 4
      %v3096 = vshll.u32 %v2808, 16
      %v3098 = vrot.slane %v3096, 5
      %v3099 = vsel %vm634, %v3094, %v3098
      %v3100 = vshrl.u32 %v2808, 16
      %v3102 = vrot.slane %v3100, 4
      %v3103 = vor.u32 %v3102, %v3098
      %v3104 = vrot.slane %v3103, 4
      %v3106 = vshll.u32 %v2809, 16
      %v3108 = vrot.slane %v3106, 5
      %v3109 = vsel %vm634, %v3104, %v3108
      %v3111 = vshrl.u32 %v2810, 16
      %v3113 = vrot.slane %v3111, 4
      %v3114 = vshll.u32 %v2810, 16
      %v3116 = vrot.slane %v3114, 5
      %v3117 = vor.u32 %v3113, %v3116
      %v3118 = vrot.slane %v3117, 4
      %v3120 = vshll.u32 %v2811, 16
      %v3122 = vrot.slane %v3120, 5
      %v3123 = vsel %vm634, %v3118, %v3122
      %v3124 = vshrl.u32 %v2811, 16
      %v3126 = vrot.slane %v3124, 4
      %v3127 = vor.u32 %v3126, %v3122
      %v3128 = vrot.slane %v3127, 4
      %v3130 = vshll.u32 %v2812, 16
      %v3132 = vrot.slane %v3130, 5
      %v3133 = vsel %vm634, %v3128, %v3132
      %v3135 = vshrl.u32 %v2813, 16
      %v3137 = vrot.slane %v3135, 4
      %v3138 = vshll.u32 %v2813, 16
      %v3140 = vrot.slane %v3138, 5
      %v3141 = vor.u32 %v3137, %v3140
      %v3142 = vrot.slane %v3141, 4
      %v3144 = vshll.u32 %v2814, 16
      %v3146 = vrot.slane %v3144, 5
      %v3147 = vsel %vm634, %v3142, %v3146
      %v3148 = vshrl.u32 %v2814, 16
      %v3150 = vrot.slane %v3148, 4
      %v3151 = vor.u32 %v3150, %v3146
      %v3152 = vrot.slane %v3151, 4
      %v3154 = vshll.u32 %v2815, 16
      %v3156 = vrot.slane %v3154, 5
      %v3157 = vsel %vm634, %v3152, %v3156
      %v3159 = vshrl.u32 %v2816, 16
      %v3161 = vrot.slane %v3159, 4
      %v3162 = vshll.u32 %v2816, 16
      %v3164 = vrot.slane %v3162, 5
      %v3165 = vor.u32 %v3161, %v3164
      %v3166 = vrot.slane %v3165, 4
      %v3168 = vshll.u32 %v2817, 16
      %v3170 = vrot.slane %v3168, 5
      %v3171 = vsel %vm634, %v3166, %v3170
      %v3172 = vshrl.u32 %v2817, 16
      %v3174 = vrot.slane %v3172, 4
      %v3175 = vor.u32 %v3174, %v3170
      %v3176 = vrot.slane %v3175, 4
      %v3178 = vshll.u32 %v2818, 16
      %v3180 = vrot.slane %v3178, 5
      %v3181 = vsel %vm634, %v3176, %v3180
      %v3183 = vshrl.u32 %v2819, 16
      %v3185 = vrot.slane %v3183, 4
      %v3186 = vshll.u32 %v2819, 16
      %v3188 = vrot.slane %v3186, 5
      %v3189 = vor.u32 %v3185, %v3188
      %v3190 = vrot.slane %v3189, 4
      %v3192 = vshll.u32 %v2820, 16
      %v3194 = vrot.slane %v3192, 5
      %v3195 = vsel %vm634, %v3190, %v3194
      %v3196 = vshrl.u32 %v2820, 16
      %v3198 = vrot.slane %v3196, 4
      %v3199 = vor.u32 %v3198, %v3194
      %v3200 = vrot.slane %v3199, 4
      %v3202 = vshll.u32 %v2821, 16
      %v3204 = vrot.slane %v3202, 5
      %v3205 = vsel %vm634, %v3200, %v3204
      %3206 = vrot.lane.b32.xlu0 %v2835, 28
      %v3207 = vpop.permute.xlu0 %3206
      %3208 = vrot.lane.b32.xlu0 %v2845, 28
      %v3209 = vpop.permute.xlu0 %3208
      %3210 = vrot.lane.b32.xlu0 %v2859, 28
      %v3211 = vpop.permute.xlu0 %3210
      %3212 = vrot.lane.b32.xlu0 %v2869, 28
      %v3213 = vpop.permute.xlu0 %3212
      %3214 = vrot.lane.b32.xlu0 %v2883, 28
      %v3215 = vpop.permute.xlu0 %3214
      %3216 = vrot.lane.b32.xlu0 %v2893, 28
      %v3217 = vpop.permute.xlu0 %3216
      %3218 = vrot.lane.b32.xlu0 %v2907, 28
      %v3219 = vpop.permute.xlu0 %3218
      %3220 = vrot.lane.b32.xlu0 %v2917, 28
      %v3221 = vpop.permute.xlu0 %3220
      %3222 = vrot.lane.b32.xlu0 %v2931, 28
      %v3223 = vpop.permute.xlu0 %3222
      %3224 = vrot.lane.b32.xlu0 %v2941, 28
      %v3225 = vpop.permute.xlu0 %3224
      %3226 = vrot.lane.b32.xlu0 %v2955, 28
      %v3227 = vpop.permute.xlu0 %3226
      %3228 = vrot.lane.b32.xlu0 %v2965, 28
      %v3229 = vpop.permute.xlu0 %3228
      %3230 = vrot.lane.b32.xlu0 %v2979, 28
      %v3231 = vpop.permute.xlu0 %3230
      %3232 = vrot.lane.b32.xlu0 %v2989, 28
      %v3233 = vpop.permute.xlu0 %3232
      %3234 = vrot.lane.b32.xlu0 %v3003, 28
      %v3235 = vpop.permute.xlu0 %3234
      %3236 = vrot.lane.b32.xlu0 %v3013, 28
      %v3237 = vpop.permute.xlu0 %3236
      %3238 = vrot.lane.b32.xlu0 %v3027, 28
      %v3239 = vpop.permute.xlu0 %3238
      %3240 = vrot.lane.b32.xlu0 %v3037, 28
      %v3241 = vpop.permute.xlu0 %3240
      %3242 = vrot.lane.b32.xlu0 %v3051, 28
      %v3243 = vpop.permute.xlu0 %3242
      %3244 = vrot.lane.b32.xlu0 %v3061, 28
      %v3245 = vpop.permute.xlu0 %3244
      %3246 = vrot.lane.b32.xlu0 %v3075, 28
      %v3247 = vpop.permute.xlu0 %3246
      %3248 = vrot.lane.b32.xlu0 %v3085, 28
      %v3249 = vpop.permute.xlu0 %3248
      %3250 = vrot.lane.b32.xlu0 %v3099, 28
      %v3251 = vpop.permute.xlu0 %3250
      %3252 = vrot.lane.b32.xlu0 %v3109, 28
      %v3253 = vpop.permute.xlu0 %3252
      %3254 = vrot.lane.b32.xlu0 %v3123, 28
      %v3255 = vpop.permute.xlu0 %3254
      %3256 = vrot.lane.b32.xlu0 %v3133, 28
      %v3257 = vpop.permute.xlu0 %3256
      %3258 = vrot.lane.b32.xlu0 %v3147, 28
      %v3259 = vpop.permute.xlu0 %3258
      %3260 = vrot.lane.b32.xlu0 %v3157, 28
      %v3261 = vpop.permute.xlu0 %3260
      %3262 = vrot.lane.b32.xlu0 %v3171, 28
      %v3263 = vpop.permute.xlu0 %3262
      %3264 = vrot.lane.b32.xlu0 %v3181, 28
      %v3265 = vpop.permute.xlu0 %3264
      %3266 = vrot.lane.b32.xlu0 %v3195, 28
      %v3267 = vpop.permute.xlu0 %3266
      %3268 = vrot.lane.b32.xlu0 %v3205, 28
      %v3269 = vpop.permute.xlu0 %3268
      %vm3302 = vcmask 257248
      %3303 = vst.msk [vmem:[#allocation3] sm:$0xf] %vm3302, %v3207
      %3304 = vst.msk [vmem:[#allocation3 + $0x4] sm:$0xf] %vm3302, %v3209
      %3305 = vst.msk [vmem:[#allocation3 + $0x8] sm:$0xf] %vm3302, %v3211
      %3306 = vst.msk [vmem:[#allocation3 + $0xc] sm:$0xf] %vm3302, %v3213
      %3307 = vst.msk [vmem:[#allocation3 + $0x10] sm:$0xf] %vm3302, %v3215
      %3308 = vst.msk [vmem:[#allocation3 + $0x14] sm:$0xf] %vm3302, %v3217
      %3309 = vst.msk [vmem:[#allocation3 + $0x18] sm:$0xf] %vm3302, %v3219
      %3310 = vst.msk [vmem:[#allocation3 + $0x1c] sm:$0xf] %vm3302, %v3221
      %3311 = vst.msk [vmem:[#allocation3 + $0x20] sm:$0xf] %vm3302, %v3223
      %3312 = vst.msk [vmem:[#allocation3 + $0x24] sm:$0xf] %vm3302, %v3225
      %3313 = vst.msk [vmem:[#allocation3 + $0x28] sm:$0xf] %vm3302, %v3227
      %3314 = vst.msk [vmem:[#allocation3 + $0x2c] sm:$0xf] %vm3302, %v3229
      %3315 = vst.msk [vmem:[#allocation3 + $0x30] sm:$0xf] %vm3302, %v3231
      %3316 = vst.msk [vmem:[#allocation3 + $0x34] sm:$0xf] %vm3302, %v3233
      %3317 = vst.msk [vmem:[#allocation3 + $0x38] sm:$0xf] %vm3302, %v3235
      %3318 = vst.msk [vmem:[#allocation3 + $0x3c] sm:$0xf] %vm3302, %v3237
      %3319 = vst.msk [vmem:[#allocation3 + $0x40] sm:$0xf] %vm3302, %v3239
      %3320 = vst.msk [vmem:[#allocation3 + $0x44] sm:$0xf] %vm3302, %v3241
      %3321 = vst.msk [vmem:[#allocation3 + $0x48] sm:$0xf] %vm3302, %v3243
      %3322 = vst.msk [vmem:[#allocation3 + $0x4c] sm:$0xf] %vm3302, %v3245
      %3323 = vst.msk [vmem:[#allocation3 + $0x50] sm:$0xf] %vm3302, %v3247
      %3324 = vst.msk [vmem:[#allocation3 + $0x54] sm:$0xf] %vm3302, %v3249
      %3325 = vst.msk [vmem:[#allocation3 + $0x58] sm:$0xf] %vm3302, %v3251
      %3326 = vst.msk [vmem:[#allocation3 + $0x5c] sm:$0xf] %vm3302, %v3253
      %3327 = vst.msk [vmem:[#allocation3 + $0x60] sm:$0xf] %vm3302, %v3255
      %3328 = vst.msk [vmem:[#allocation3 + $0x64] sm:$0xf] %vm3302, %v3257
      %3329 = vst.msk [vmem:[#allocation3 + $0x68] sm:$0xf] %vm3302, %v3259
      %3330 = vst.msk [vmem:[#allocation3 + $0x6c] sm:$0xf] %vm3302, %v3261
      %3331 = vst.msk [vmem:[#allocation3 + $0x70] sm:$0xf] %vm3302, %v3263
      %3332 = vst.msk [vmem:[#allocation3 + $0x74] sm:$0xf] %vm3302, %v3265
      %3333 = vst.msk [vmem:[#allocation3 + $0x78] sm:$0xf] %vm3302, %v3267
      %3334 = vst.msk [vmem:[#allocation3 + $0x7c] sm:$0xf] %vm3302, %v3269
      %v3335 = vld [vmem:[%s2580] sm:$0xe]
      %v3336 = vld [vmem:[%s2580 + $0x4] sm:$0xf]
      %v3337 = vld [vmem:[%s2580 + $0x8] sm:$0x1]
      %v3338 = vld [vmem:[%s2580 + $0xc] sm:$0xe]
      %v3339 = vld [vmem:[%s2580 + $0x10] sm:$0xf]
      %v3340 = vld [vmem:[%s2580 + $0x14] sm:$0x1]
      %v3341 = vld [vmem:[%s2580 + $0x18] sm:$0xe]
      %v3342 = vld [vmem:[%s2580 + $0x1c] sm:$0xf]
      %v3343 = vld [vmem:[%s2580 + $0x20] sm:$0x1]
      %v3344 = vld [vmem:[%s2580 + $0x24] sm:$0xe]
      %v3345 = vld [vmem:[%s2580 + $0x28] sm:$0xf]
      %v3346 = vld [vmem:[%s2580 + $0x2c] sm:$0x1]
      %v3347 = vld [vmem:[%s2580 + $0x30] sm:$0xe]
      %v3348 = vld [vmem:[%s2580 + $0x34] sm:$0xf]
      %v3349 = vld [vmem:[%s2580 + $0x38] sm:$0x1]
      %v3350 = vld [vmem:[%s2580 + $0x3c] sm:$0xe]
      %v3351 = vld [vmem:[%s2580 + $0x40] sm:$0xf]
      %v3352 = vld [vmem:[%s2580 + $0x44] sm:$0x1]
      %v3353 = vld [vmem:[%s2580 + $0x48] sm:$0xe]
      %v3354 = vld [vmem:[%s2580 + $0x4c] sm:$0xf]
      %v3355 = vld [vmem:[%s2580 + $0x50] sm:$0x1]
      %v3356 = vld [vmem:[%s2580 + $0x54] sm:$0xe]
      %v3357 = vld [vmem:[%s2580 + $0x58] sm:$0xf]
      %v3358 = vld [vmem:[%s2580 + $0x5c] sm:$0x1]
      %v3359 = vld [vmem:[%s2580 + $0x60] sm:$0xe]
      %v3360 = vld [vmem:[%s2580 + $0x64] sm:$0xf]
      %v3361 = vld [vmem:[%s2580 + $0x68] sm:$0x1]
      %v3362 = vld [vmem:[%s2580 + $0x6c] sm:$0xe]
      %v3363 = vld [vmem:[%s2580 + $0x70] sm:$0xf]
      %v3364 = vld [vmem:[%s2580 + $0x74] sm:$0x1]
      %v3365 = vld [vmem:[%s2580 + $0x78] sm:$0xe]
      %v3366 = vld [vmem:[%s2580 + $0x7c] sm:$0xf]
      %v3367 = vld [vmem:[%s2580 + $0x80] sm:$0x1]
      %v3368 = vld [vmem:[%s2580 + $0x84] sm:$0xe]
      %v3369 = vld [vmem:[%s2580 + $0x88] sm:$0xf]
      %v3370 = vld [vmem:[%s2580 + $0x8c] sm:$0x1]
      %v3371 = vld [vmem:[%s2580 + $0x90] sm:$0xe]
      %v3372 = vld [vmem:[%s2580 + $0x94] sm:$0xf]
      %v3373 = vld [vmem:[%s2580 + $0x98] sm:$0x1]
      %v3374 = vld [vmem:[%s2580 + $0x9c] sm:$0xe]
      %v3375 = vld [vmem:[%s2580 + $0xa0] sm:$0xf]
      %v3376 = vld [vmem:[%s2580 + $0xa4] sm:$0x1]
      %v3377 = vld [vmem:[%s2580 + $0xa8] sm:$0xe]
      %v3378 = vld [vmem:[%s2580 + $0xac] sm:$0xf]
      %v3379 = vld [vmem:[%s2580 + $0xb0] sm:$0x1]
      %v3380 = vld [vmem:[%s2580 + $0xb4] sm:$0xe]
      %v3381 = vld [vmem:[%s2580 + $0xb8] sm:$0xf]
      %v3382 = vld [vmem:[%s2580 + $0xbc] sm:$0x1]
      %v3431 = vrot.slane %v3335, 5
      %v3432 = vrot.slane %v3431, 4
      %v3433 = vrot.slane %v3336, 5
      %v3434 = vsel %vm1246, %v3432, %v3433
      %v3435 = vrot.slane %v3433, 4
      %v3436 = vrot.slane %v3337, 5
      %v3437 = vsel %vm1246, %v3435, %v3436
      %v3438 = vrot.slane %v3338, 5
      %v3439 = vrot.slane %v3438, 4
      %v3440 = vrot.slane %v3339, 5
      %v3441 = vsel %vm1246, %v3439, %v3440
      %v3442 = vrot.slane %v3440, 4
      %v3443 = vrot.slane %v3340, 5
      %v3444 = vsel %vm1246, %v3442, %v3443
      %v3445 = vrot.slane %v3341, 5
      %v3446 = vrot.slane %v3445, 4
      %v3447 = vrot.slane %v3342, 5
      %v3448 = vsel %vm1246, %v3446, %v3447
      %v3449 = vrot.slane %v3447, 4
      %v3450 = vrot.slane %v3343, 5
      %v3451 = vsel %vm1246, %v3449, %v3450
      %v3452 = vrot.slane %v3344, 5
      %v3453 = vrot.slane %v3452, 4
      %v3454 = vrot.slane %v3345, 5
      %v3455 = vsel %vm1246, %v3453, %v3454
      %v3456 = vrot.slane %v3454, 4
      %v3457 = vrot.slane %v3346, 5
      %v3458 = vsel %vm1246, %v3456, %v3457
      %v3459 = vrot.slane %v3347, 5
      %v3460 = vrot.slane %v3459, 4
      %v3461 = vrot.slane %v3348, 5
      %v3462 = vsel %vm1246, %v3460, %v3461
      %v3463 = vrot.slane %v3461, 4
      %v3464 = vrot.slane %v3349, 5
      %v3465 = vsel %vm1246, %v3463, %v3464
      %v3466 = vrot.slane %v3350, 5
      %v3467 = vrot.slane %v3466, 4
      %v3468 = vrot.slane %v3351, 5
      %v3469 = vsel %vm1246, %v3467, %v3468
      %v3470 = vrot.slane %v3468, 4
      %v3471 = vrot.slane %v3352, 5
      %v3472 = vsel %vm1246, %v3470, %v3471
      %v3473 = vrot.slane %v3353, 5
      %v3474 = vrot.slane %v3473, 4
      %v3475 = vrot.slane %v3354, 5
      %v3476 = vsel %vm1246, %v3474, %v3475
      %v3477 = vrot.slane %v3475, 4
      %v3478 = vrot.slane %v3355, 5
      %v3479 = vsel %vm1246, %v3477, %v3478
      %v3480 = vrot.slane %v3356, 5
      %v3481 = vrot.slane %v3480, 4
      %v3482 = vrot.slane %v3357, 5
      %v3483 = vsel %vm1246, %v3481, %v3482
      %v3484 = vrot.slane %v3482, 4
      %v3485 = vrot.slane %v3358, 5
      %v3486 = vsel %vm1246, %v3484, %v3485
      %v3487 = vrot.slane %v3359, 5
      %v3488 = vrot.slane %v3487, 4
      %v3489 = vrot.slane %v3360, 5
      %v3490 = vsel %vm1246, %v3488, %v3489
      %v3491 = vrot.slane %v3489, 4
      %v3492 = vrot.slane %v3361, 5
      %v3493 = vsel %vm1246, %v3491, %v3492
      %v3494 = vrot.slane %v3362, 5
      %v3495 = vrot.slane %v3494, 4
      %v3496 = vrot.slane %v3363, 5
      %v3497 = vsel %vm1246, %v3495, %v3496
      %v3498 = vrot.slane %v3496, 4
      %v3499 = vrot.slane %v3364, 5
      %v3500 = vsel %vm1246, %v3498, %v3499
      %v3501 = vrot.slane %v3365, 5
      %v3502 = vrot.slane %v3501, 4
      %v3503 = vrot.slane %v3366, 5
      %v3504 = vsel %vm1246, %v3502, %v3503
      %v3505 = vrot.slane %v3503, 4
      %v3506 = vrot.slane %v3367, 5
      %v3507 = vsel %vm1246, %v3505, %v3506
      %v3508 = vrot.slane %v3368, 5
      %v3509 = vrot.slane %v3508, 4
      %v3510 = vrot.slane %v3369, 5
      %v3511 = vsel %vm1246, %v3509, %v3510
      %v3512 = vrot.slane %v3510, 4
      %v3513 = vrot.slane %v3370, 5
      %v3514 = vsel %vm1246, %v3512, %v3513
      %v3515 = vrot.slane %v3371, 5
      %v3516 = vrot.slane %v3515, 4
      %v3517 = vrot.slane %v3372, 5
      %v3518 = vsel %vm1246, %v3516, %v3517
      %v3519 = vrot.slane %v3517, 4
      %v3520 = vrot.slane %v3373, 5
      %v3521 = vsel %vm1246, %v3519, %v3520
      %v3522 = vrot.slane %v3374, 5
      %v3523 = vrot.slane %v3522, 4
      %v3524 = vrot.slane %v3375, 5
      %v3525 = vsel %vm1246, %v3523, %v3524
      %v3526 = vrot.slane %v3524, 4
      %v3527 = vrot.slane %v3376, 5
      %v3528 = vsel %vm1246, %v3526, %v3527
      %v3529 = vrot.slane %v3377, 5
      %v3530 = vrot.slane %v3529, 4
      %v3531 = vrot.slane %v3378, 5
      %v3532 = vsel %vm1246, %v3530, %v3531
      %v3533 = vrot.slane %v3531, 4
      %v3534 = vrot.slane %v3379, 5
      %v3535 = vsel %vm1246, %v3533, %v3534
      %v3536 = vrot.slane %v3380, 5
      %v3537 = vrot.slane %v3536, 4
      %v3538 = vrot.slane %v3381, 5
      %v3539 = vsel %vm1246, %v3537, %v3538
      %v3540 = vrot.slane %v3538, 4
      %v3541 = vrot.slane %v3382, 5
      %v3542 = vsel %vm1246, %v3540, %v3541
      %3543 = vrot.lane.b32.xlu0 %v3434, 32
      %v3544 = vpop.permute.xlu0 %3543
      %3545 = vrot.lane.b32.xlu0 %v3437, 32
      %v3546 = vpop.permute.xlu0 %3545
      %3547 = vrot.lane.b32.xlu0 %v3441, 32
      %v3548 = vpop.permute.xlu0 %3547
      %3549 = vrot.lane.b32.xlu0 %v3444, 32
      %v3550 = vpop.permute.xlu0 %3549
      %3551 = vrot.lane.b32.xlu0 %v3448, 32
      %v3552 = vpop.permute.xlu0 %3551
      %3553 = vrot.lane.b32.xlu0 %v3451, 32
      %v3554 = vpop.permute.xlu0 %3553
      %3555 = vrot.lane.b32.xlu0 %v3455, 32
      %v3556 = vpop.permute.xlu0 %3555
      %3557 = vrot.lane.b32.xlu0 %v3458, 32
      %v3558 = vpop.permute.xlu0 %3557
      %3559 = vrot.lane.b32.xlu0 %v3462, 32
      %v3560 = vpop.permute.xlu0 %3559
      %3561 = vrot.lane.b32.xlu0 %v3465, 32
      %v3562 = vpop.permute.xlu0 %3561
      %3563 = vrot.lane.b32.xlu0 %v3469, 32
      %v3564 = vpop.permute.xlu0 %3563
      %3565 = vrot.lane.b32.xlu0 %v3472, 32
      %v3566 = vpop.permute.xlu0 %3565
      %3567 = vrot.lane.b32.xlu0 %v3476, 32
      %v3568 = vpop.permute.xlu0 %3567
      %3569 = vrot.lane.b32.xlu0 %v3479, 32
      %v3570 = vpop.permute.xlu0 %3569
      %3571 = vrot.lane.b32.xlu0 %v3483, 32
      %v3572 = vpop.permute.xlu0 %3571
      %3573 = vrot.lane.b32.xlu0 %v3486, 32
      %v3574 = vpop.permute.xlu0 %3573
      %3575 = vrot.lane.b32.xlu0 %v3490, 32
      %v3576 = vpop.permute.xlu0 %3575
      %3577 = vrot.lane.b32.xlu0 %v3493, 32
      %v3578 = vpop.permute.xlu0 %3577
      %3579 = vrot.lane.b32.xlu0 %v3497, 32
      %v3580 = vpop.permute.xlu0 %3579
      %3581 = vrot.lane.b32.xlu0 %v3500, 32
      %v3582 = vpop.permute.xlu0 %3581
      %3583 = vrot.lane.b32.xlu0 %v3504, 32
      %v3584 = vpop.permute.xlu0 %3583
      %3585 = vrot.lane.b32.xlu0 %v3507, 32
      %v3586 = vpop.permute.xlu0 %3585
      %3587 = vrot.lane.b32.xlu0 %v3511, 32
      %v3588 = vpop.permute.xlu0 %3587
      %3589 = vrot.lane.b32.xlu0 %v3514, 32
      %v3590 = vpop.permute.xlu0 %3589
      %3591 = vrot.lane.b32.xlu0 %v3518, 32
      %v3592 = vpop.permute.xlu0 %3591
      %3593 = vrot.lane.b32.xlu0 %v3521, 32
      %v3594 = vpop.permute.xlu0 %3593
      %3595 = vrot.lane.b32.xlu0 %v3525, 32
      %v3596 = vpop.permute.xlu0 %3595
      %3597 = vrot.lane.b32.xlu0 %v3528, 32
      %v3598 = vpop.permute.xlu0 %3597
      %3599 = vrot.lane.b32.xlu0 %v3532, 32
      %v3600 = vpop.permute.xlu0 %3599
      %3601 = vrot.lane.b32.xlu0 %v3535, 32
      %v3602 = vpop.permute.xlu0 %3601
      %3603 = vrot.lane.b32.xlu0 %v3539, 32
      %v3604 = vpop.permute.xlu0 %3603
      %3605 = vrot.lane.b32.xlu0 %v3542, 32
      %v3606 = vpop.permute.xlu0 %3605
      %vm3639 = vcmask 290048
      %3640 = vst.msk [vmem:[#allocation3] sm:$0xf] %vm3639, %v3544
      %3641 = vst.msk [vmem:[#allocation3 + $0x4] sm:$0xf] %vm3639, %v3546
      %3642 = vst.msk [vmem:[#allocation3 + $0x8] sm:$0xf] %vm3639, %v3548
      %3643 = vst.msk [vmem:[#allocation3 + $0xc] sm:$0xf] %vm3639, %v3550
      %3644 = vst.msk [vmem:[#allocation3 + $0x10] sm:$0xf] %vm3639, %v3552
      %3645 = vst.msk [vmem:[#allocation3 + $0x14] sm:$0xf] %vm3639, %v3554
      %3646 = vst.msk [vmem:[#allocation3 + $0x18] sm:$0xf] %vm3639, %v3556
      %3647 = vst.msk [vmem:[#allocation3 + $0x1c] sm:$0xf] %vm3639, %v3558
      %3648 = vst.msk [vmem:[#allocation3 + $0x20] sm:$0xf] %vm3639, %v3560
      %3649 = vst.msk [vmem:[#allocation3 + $0x24] sm:$0xf] %vm3639, %v3562
      %3650 = vst.msk [vmem:[#allocation3 + $0x28] sm:$0xf] %vm3639, %v3564
      %3651 = vst.msk [vmem:[#allocation3 + $0x2c] sm:$0xf] %vm3639, %v3566
      %3652 = vst.msk [vmem:[#allocation3 + $0x30] sm:$0xf] %vm3639, %v3568
      %3653 = vst.msk [vmem:[#allocation3 + $0x34] sm:$0xf] %vm3639, %v3570
      %3654 = vst.msk [vmem:[#allocation3 + $0x38] sm:$0xf] %vm3639, %v3572
      %3655 = vst.msk [vmem:[#allocation3 + $0x3c] sm:$0xf] %vm3639, %v3574
      %3656 = vst.msk [vmem:[#allocation3 + $0x40] sm:$0xf] %vm3639, %v3576
      %3657 = vst.msk [vmem:[#allocation3 + $0x44] sm:$0xf] %vm3639, %v3578
      %3658 = vst.msk [vmem:[#allocation3 + $0x48] sm:$0xf] %vm3639, %v3580
      %3659 = vst.msk [vmem:[#allocation3 + $0x4c] sm:$0xf] %vm3639, %v3582
      %3660 = vst.msk [vmem:[#allocation3 + $0x50] sm:$0xf] %vm3639, %v3584
      %3661 = vst.msk [vmem:[#allocation3 + $0x54] sm:$0xf] %vm3639, %v3586
      %3662 = vst.msk [vmem:[#allocation3 + $0x58] sm:$0xf] %vm3639, %v3588
      %3663 = vst.msk [vmem:[#allocation3 + $0x5c] sm:$0xf] %vm3639, %v3590
      %3664 = vst.msk [vmem:[#allocation3 + $0x60] sm:$0xf] %vm3639, %v3592
      %3665 = vst.msk [vmem:[#allocation3 + $0x64] sm:$0xf] %vm3639, %v3594
      %3666 = vst.msk [vmem:[#allocation3 + $0x68] sm:$0xf] %vm3639, %v3596
      %3667 = vst.msk [vmem:[#allocation3 + $0x6c] sm:$0xf] %vm3639, %v3598
      %3668 = vst.msk [vmem:[#allocation3 + $0x70] sm:$0xf] %vm3639, %v3600
      %3669 = vst.msk [vmem:[#allocation3 + $0x74] sm:$0xf] %vm3639, %v3602
      %3670 = vst.msk [vmem:[#allocation3 + $0x78] sm:$0xf] %vm3639, %v3604
      %3671 = vst.msk [vmem:[#allocation3 + $0x7c] sm:$0xf] %vm3639, %v3606
      %v3672 = vld [vmem:[#allocation3] sm:$0xf]
      %v3673 = vld [vmem:[#allocation3 + $0x4] sm:$0xf]
      %v3674 = vld [vmem:[#allocation3 + $0x8] sm:$0xf]
      %v3675 = vld [vmem:[#allocation3 + $0xc] sm:$0xf]
      %v3676 = vld [vmem:[#allocation3 + $0x10] sm:$0xf]
      %v3677 = vld [vmem:[#allocation3 + $0x14] sm:$0xf]
      %v3678 = vld [vmem:[#allocation3 + $0x18] sm:$0xf]
      %v3679 = vld [vmem:[#allocation3 + $0x1c] sm:$0xf]
      %v3680 = vld [vmem:[#allocation3 + $0x20] sm:$0xf]
      %v3681 = vld [vmem:[#allocation3 + $0x24] sm:$0xf]
      %v3682 = vld [vmem:[#allocation3 + $0x28] sm:$0xf]
      %v3683 = vld [vmem:[#allocation3 + $0x2c] sm:$0xf]
      %v3684 = vld [vmem:[#allocation3 + $0x30] sm:$0xf]
      %v3685 = vld [vmem:[#allocation3 + $0x34] sm:$0xf]
      %v3686 = vld [vmem:[#allocation3 + $0x38] sm:$0xf]
      %v3687 = vld [vmem:[#allocation3 + $0x3c] sm:$0xf]
      %v3688 = vld [vmem:[#allocation3 + $0x40] sm:$0xf]
      %v3689 = vld [vmem:[#allocation3 + $0x44] sm:$0xf]
      %v3690 = vld [vmem:[#allocation3 + $0x48] sm:$0xf]
      %v3691 = vld [vmem:[#allocation3 + $0x4c] sm:$0xf]
      %v3692 = vld [vmem:[#allocation3 + $0x50] sm:$0xf]
      %v3693 = vld [vmem:[#allocation3 + $0x54] sm:$0xf]
      %v3694 = vld [vmem:[#allocation3 + $0x58] sm:$0xf]
      %v3695 = vld [vmem:[#allocation3 + $0x5c] sm:$0xf]
      %v3696 = vld [vmem:[#allocation3 + $0x60] sm:$0xf]
      %v3697 = vld [vmem:[#allocation3 + $0x64] sm:$0xf]
      %v3698 = vld [vmem:[#allocation3 + $0x68] sm:$0xf]
      %v3699 = vld [vmem:[#allocation3 + $0x6c] sm:$0xf]
      %v3700 = vld [vmem:[#allocation3 + $0x70] sm:$0xf]
      %v3701 = vld [vmem:[#allocation3 + $0x74] sm:$0xf]
      %v3702 = vld [vmem:[#allocation3 + $0x78] sm:$0xf]
      %v3703 = vld [vmem:[#allocation3 + $0x7c] sm:$0xf]
      %v3704 = vld [vmem:[%s3] sm:$0xf]
      %v3705 = vld [vmem:[%s3 + $0x4] sm:$0xf]
      %v3706 = vld [vmem:[%s3 + $0x8] sm:$0xf]
      %v3707 = vld [vmem:[%s3 + $0xc] sm:$0xf]
      %v3708 = vld [vmem:[%s3 + $0x10] sm:$0x3]
      %v3741 = vunpack.c.l.b16 %v3672
      %v3742 = vunpack.c.l.b16 %v3673
      %v3743 = vunpack.c.l.b16 %v3674
      %v3744 = vunpack.c.l.b16 %v3675
      %v3745 = vunpack.c.l.b16 %v3676
      %v3746 = vunpack.c.l.b16 %v3677
      %v3747 = vunpack.c.l.b16 %v3678
      %v3748 = vunpack.c.l.b16 %v3679
      %v3749 = vunpack.c.l.b16 %v3680
      %v3750 = vunpack.c.l.b16 %v3681
      %v3751 = vunpack.c.l.b16 %v3682
      %v3752 = vunpack.c.l.b16 %v3683
      %v3753 = vunpack.c.l.b16 %v3684
      %v3754 = vunpack.c.l.b16 %v3685
      %v3755 = vunpack.c.l.b16 %v3686
      %v3756 = vunpack.c.l.b16 %v3687
      %v3757 = vunpack.c.l.b16 %v3688
      %v3758 = vunpack.c.l.b16 %v3689
      %v3759 = vunpack.c.l.b16 %v3690
      %v3760 = vunpack.c.l.b16 %v3691
      %v3761 = vunpack.c.l.b16 %v3692
      %v3762 = vunpack.c.l.b16 %v3693
      %v3763 = vunpack.c.l.b16 %v3694
      %v3764 = vunpack.c.l.b16 %v3695
      %v3765 = vunpack.c.l.b16 %v3696
      %v3766 = vunpack.c.l.b16 %v3697
      %v3767 = vunpack.c.l.b16 %v3698
      %v3768 = vunpack.c.l.b16 %v3699
      %v3769 = vunpack.c.l.b16 %v3700
      %v3770 = vunpack.c.l.b16 %v3701
      %v3771 = vunpack.c.l.b16 %v3702
      %v3772 = vunpack.c.l.b16 %v3703
      %v3773 = vpack.c.b16 %v3742, %v3741
      %v3774 = vpack.c.b16 %v3744, %v3743
      %v3775 = vpack.c.b16 %v3746, %v3745
      %v3776 = vpack.c.b16 %v3748, %v3747
      %v3777 = vpack.c.b16 %v3750, %v3749
      %v3778 = vpack.c.b16 %v3752, %v3751
      %v3779 = vpack.c.b16 %v3754, %v3753
      %v3780 = vpack.c.b16 %v3756, %v3755
      %v3781 = vpack.c.b16 %v3758, %v3757
      %v3782 = vpack.c.b16 %v3760, %v3759
      %v3783 = vpack.c.b16 %v3762, %v3761
      %v3784 = vpack.c.b16 %v3764, %v3763
      %v3785 = vpack.c.b16 %v3766, %v3765
      %v3786 = vpack.c.b16 %v3768, %v3767
      %v3787 = vpack.c.b16 %v3770, %v3769
      %v3788 = vpack.c.b16 %v3772, %v3771
      %v3794 = vunpack.c.l.b16 %v3704
      %v3795 = vunpack.c.l.b16 %v3705
      %v3796 = vunpack.c.l.b16 %v3706
      %v3797 = vunpack.c.l.b16 %v3707
      %v3798 = vunpack.c.l.b16 %v3708
      %v3799 = vpack.c.b16 %v3795, %v3794
      %v3800 = vpack.c.b16 %v3797, %v3796
      %v3801 = vpack.c.b16 %v3798, %v3798
      %vm3804 = vcmask 293888
      %v3806 = vsel %vm3804, %v3773, 0
      %v3809 = vsel %vm3804, %v3774, 0
      %v3812 = vsel %vm3804, %v3775, 0
      %v3815 = vsel %vm3804, %v3776, 0
      %v3818 = vsel %vm3804, %v3777, 0
      %v3821 = vsel %vm3804, %v3778, 0
      %v3824 = vsel %vm3804, %v3779, 0
      %v3827 = vsel %vm3804, %v3780, 0
      %v3830 = vsel %vm3804, %v3781, 0
      %v3833 = vsel %vm3804, %v3782, 0
      %v3836 = vsel %vm3804, %v3783, 0
      %v3839 = vsel %vm3804, %v3784, 0
      %v3842 = vsel %vm3804, %v3785, 0
      %v3845 = vsel %vm3804, %v3786, 0
      %v3848 = vsel %vm3804, %v3787, 0
      %v3851 = vsel %vm3804, %v3788, 0
      %vm3853 = vcmask 1041408
      %v3855 = vsel %vm3853, %v3801, 0
      %3857 = vmatprep.subr.bf16.mxu0 0
      %3858 = vmatpush1.bf16.msra.mxu0 0
      %3859 = vmatprep.subr.bf16.mxu0 0
      %3860 = vmatpush1.bf16.msra.mxu0 0
      %3861 = vmatprep.subr.bf16.mxu0 0
      %3862 = vmatpush1.bf16.msra.mxu0 0
      %3863 = vmatprep.subr.bf16.mxu0 0
      %3864 = vmatpush1.bf16.msra.mxu0 0
      %3865 = vmatprep.subr.bf16.mxu0 0
      %3866 = vmatpush1.bf16.msra.mxu0 0
      %3867 = vmatprep.subr.bf16.mxu0 0
      %3868 = vmatpush1.bf16.msra.mxu0 %v3855
      %3869 = vmatprep.subr.bf16.mxu0 0
      %3870 = vmatpush1.bf16.msra.mxu0 %v3800
      %3871 = vmatprep.subr.bf16.mxu0 0
      %3872 = vmatpush1.bf16.msra.mxu0 %v3799
      %3873 = vmatprep.subr.bf16.mxu0 0
      %3874 = vmatpush2.bf16.msra.mxu0 0
      %3875 = vmatprep.subr.bf16.mxu0 0
      %3876 = vmatpush2.bf16.msra.mxu0 0
      %3877 = vmatprep.subr.bf16.mxu0 0
      %3878 = vmatpush2.bf16.msra.mxu0 0
      %3879 = vmatprep.subr.bf16.mxu0 0
      %3880 = vmatpush2.bf16.msra.mxu0 0
      %3881 = vmatprep.subr.bf16.mxu0 0
      %3882 = vmatpush2.bf16.msra.mxu0 0
      %3883 = vmatprep.subr.bf16.mxu0 0
      %3884 = vmatpush2.bf16.msra.mxu0 0
      %3885 = vmatprep.subr.bf16.mxu0 0
      %3886 = vmatpush2.bf16.msra.mxu0 0
      %3887 = vmatprep.subr.bf16.mxu0 0
      %3888 = vmatpush2.bf16.msra.mxu0 0
      %3889 = vmatprep.mubr.bf16.mxu0 0
      %3890 = vmatmul.mubr.bf16.gmra.mxu0 %v3806
      %v3891 = vpop.f32.mrf.mxu0
      %v3892 = vadd.f32 0.0, %v3891
      %v3893 = vpop.f32.mrf.mxu0
      %v3894 = vpop.f32.mrf.mxu0
      %v3895 = vadd.f32 0.0, %v3894
      %v3896 = vpop.f32.mrf.mxu0
      %3897 = vmatprep.mubr.bf16.mxu0 0
      %3898 = vmatmul.mubr.bf16.gmra.mxu0 %v3809
      %v3899 = vpop.f32.mrf.mxu0
      %v3900 = vadd.f32 0.0, %v3899
      %v3901 = vpop.f32.mrf.mxu0
      %v3902 = vpop.f32.mrf.mxu0
      %v3903 = vadd.f32 0.0, %v3902
      %v3904 = vpop.f32.mrf.mxu0
      %3905 = vmatprep.mubr.bf16.mxu0 0
      %3906 = vmatmul.mubr.bf16.gmra.mxu0 %v3812
      %v3907 = vpop.f32.mrf.mxu0
      %v3908 = vadd.f32 0.0, %v3907
      %v3909 = vpop.f32.mrf.mxu0
      %v3910 = vpop.f32.mrf.mxu0
      %v3911 = vadd.f32 0.0, %v3910
      %v3912 = vpop.f32.mrf.mxu0
      %3913 = vmatprep.mubr.bf16.mxu0 0
      %3914 = vmatmul.mubr.bf16.gmra.mxu0 %v3815
      %v3915 = vpop.f32.mrf.mxu0
      %v3916 = vadd.f32 0.0, %v3915
      %v3917 = vpop.f32.mrf.mxu0
      %v3918 = vpop.f32.mrf.mxu0
      %v3919 = vadd.f32 0.0, %v3918
      %v3920 = vpop.f32.mrf.mxu0
      %3921 = vmatprep.mubr.bf16.mxu0 0
      %3922 = vmatmul.mubr.bf16.gmra.mxu0 %v3818
      %v3923 = vpop.f32.mrf.mxu0
      %v3924 = vadd.f32 0.0, %v3923
      %v3925 = vpop.f32.mrf.mxu0
      %v3926 = vpop.f32.mrf.mxu0
      %v3927 = vadd.f32 0.0, %v3926
      %v3928 = vpop.f32.mrf.mxu0
      %3929 = vmatprep.mubr.bf16.mxu0 0
      %3930 = vmatmul.mubr.bf16.gmra.mxu0 %v3821
      %v3931 = vpop.f32.mrf.mxu0
      %v3932 = vadd.f32 0.0, %v3931
      %v3933 = vpop.f32.mrf.mxu0
      %v3934 = vpop.f32.mrf.mxu0
      %v3935 = vadd.f32 0.0, %v3934
      %v3936 = vpop.f32.mrf.mxu0
      %3937 = vmatprep.mubr.bf16.mxu0 0
      %3938 = vmatmul.mubr.bf16.gmra.mxu0 %v3824
      %v3939 = vpop.f32.mrf.mxu0
      %v3940 = vadd.f32 0.0, %v3939
      %v3941 = vpop.f32.mrf.mxu0
      %v3942 = vpop.f32.mrf.mxu0
      %v3943 = vadd.f32 0.0, %v3942
      %v3944 = vpop.f32.mrf.mxu0
      %3945 = vmatprep.mubr.bf16.mxu0 0
      %3946 = vmatmul.mubr.bf16.gmra.mxu0 %v3827
      %v3947 = vpop.f32.mrf.mxu0
      %v3948 = vadd.f32 0.0, %v3947
      %v3949 = vpop.f32.mrf.mxu0
      %v3950 = vpop.f32.mrf.mxu0
      %v3951 = vadd.f32 0.0, %v3950
      %v3952 = vpop.f32.mrf.mxu0
      %3953 = vmatprep.mubr.bf16.mxu0 0
      %3954 = vmatmul.mubr.bf16.gmra.mxu0 %v3830
      %v3955 = vpop.f32.mrf.mxu0
      %v3956 = vadd.f32 0.0, %v3955
      %v3957 = vpop.f32.mrf.mxu0
      %v3958 = vpop.f32.mrf.mxu0
      %v3959 = vadd.f32 0.0, %v3958
      %v3960 = vpop.f32.mrf.mxu0
      %3961 = vmatprep.mubr.bf16.mxu0 0
      %3962 = vmatmul.mubr.bf16.gmra.mxu0 %v3833
      %v3963 = vpop.f32.mrf.mxu0
      %v3964 = vadd.f32 0.0, %v3963
      %v3965 = vpop.f32.mrf.mxu0
      %v3966 = vpop.f32.mrf.mxu0
      %v3967 = vadd.f32 0.0, %v3966
      %v3968 = vpop.f32.mrf.mxu0
      %3969 = vmatprep.mubr.bf16.mxu0 0
      %3970 = vmatmul.mubr.bf16.gmra.mxu0 %v3836
      %v3971 = vpop.f32.mrf.mxu0
      %v3972 = vadd.f32 0.0, %v3971
      %v3973 = vpop.f32.mrf.mxu0
      %v3974 = vpop.f32.mrf.mxu0
      %v3975 = vadd.f32 0.0, %v3974
      %v3976 = vpop.f32.mrf.mxu0
      %3977 = vmatprep.mubr.bf16.mxu0 0
      %3978 = vmatmul.mubr.bf16.gmra.mxu0 %v3839
      %v3979 = vpop.f32.mrf.mxu0
      %v3980 = vadd.f32 0.0, %v3979
      %v3981 = vpop.f32.mrf.mxu0
      %v3982 = vpop.f32.mrf.mxu0
      %v3983 = vadd.f32 0.0, %v3982
      %v3984 = vpop.f32.mrf.mxu0
      %3985 = vmatprep.mubr.bf16.mxu0 0
      %3986 = vmatmul.mubr.bf16.gmra.mxu0 %v3842
      %v3987 = vpop.f32.mrf.mxu0
      %v3988 = vadd.f32 0.0, %v3987
      %v3989 = vpop.f32.mrf.mxu0
      %v3990 = vpop.f32.mrf.mxu0
      %v3991 = vadd.f32 0.0, %v3990
      %v3992 = vpop.f32.mrf.mxu0
      %3993 = vmatprep.mubr.bf16.mxu0 0
      %3994 = vmatmul.mubr.bf16.gmra.mxu0 %v3845
      %v3995 = vpop.f32.mrf.mxu0
      %v3996 = vadd.f32 0.0, %v3995
      %v3997 = vpop.f32.mrf.mxu0
      %v3998 = vpop.f32.mrf.mxu0
      %v3999 = vadd.f32 0.0, %v3998
      %v4000 = vpop.f32.mrf.mxu0
      %4001 = vmatprep.mubr.bf16.mxu0 0
      %4002 = vmatmul.mubr.bf16.gmra.mxu0 %v3848
      %v4003 = vpop.f32.mrf.mxu0
      %v4004 = vadd.f32 0.0, %v4003
      %v4005 = vpop.f32.mrf.mxu0
      %v4006 = vpop.f32.mrf.mxu0
      %v4007 = vadd.f32 0.0, %v4006
      %v4008 = vpop.f32.mrf.mxu0
      %4009 = vmatprep.mubr.bf16.mxu0 0
      %4010 = vmatmul.mubr.bf16.gmra.mxu0 %v3851
      %v4011 = vpop.f32.mrf.mxu0
      %v4012 = vadd.f32 0.0, %v4011
      %v4013 = vpop.f32.mrf.mxu0
      %v4014 = vpop.f32.mrf.mxu0
      %v4015 = vadd.f32 0.0, %v4014
      %v4016 = vpop.f32.mrf.mxu0
      %4017 = vdwg.mxu0
      %vm4018 = vcmask 64512
      %v4019 = vsel %vm4018, %v3892, 0.0
      %v4020 = vsel %vm4018, %v3895, 0.0
      %v4021 = vadd.f32 %v4019, %v4020
      %v4022 = vsel %vm4018, %v3900, 0.0
      %v4023 = vadd.f32 %v4021, %v4022
      %v4024 = vsel %vm4018, %v3903, 0.0
      %v4025 = vadd.f32 %v4023, %v4024
      %v4026 = vsel %vm4018, %v3908, 0.0
      %v4027 = vadd.f32 %v4025, %v4026
      %v4028 = vsel %vm4018, %v3911, 0.0
      %v4029 = vadd.f32 %v4027, %v4028
      %v4030 = vsel %vm4018, %v3916, 0.0
      %v4031 = vadd.f32 %v4029, %v4030
      %v4032 = vsel %vm4018, %v3919, 0.0
      %v4033 = vadd.f32 %v4031, %v4032
      %v4034 = vsel %vm4018, %v3924, 0.0
      %v4035 = vadd.f32 %v4033, %v4034
      %v4036 = vsel %vm4018, %v3927, 0.0
      %v4037 = vadd.f32 %v4035, %v4036
      %v4038 = vsel %vm4018, %v3932, 0.0
      %v4039 = vadd.f32 %v4037, %v4038
      %v4040 = vsel %vm4018, %v3935, 0.0
      %v4041 = vadd.f32 %v4039, %v4040
      %v4042 = vsel %vm4018, %v3940, 0.0
      %v4043 = vadd.f32 %v4041, %v4042
      %v4044 = vsel %vm4018, %v3943, 0.0
      %v4045 = vadd.f32 %v4043, %v4044
      %v4046 = vsel %vm4018, %v3948, 0.0
      %v4047 = vadd.f32 %v4045, %v4046
      %v4048 = vsel %vm4018, %v3951, 0.0
      %v4049 = vadd.f32 %v4047, %v4048
      %v4050 = vsel %vm4018, %v3956, 0.0
      %v4051 = vadd.f32 %v4049, %v4050
      %v4052 = vsel %vm4018, %v3959, 0.0
      %v4053 = vadd.f32 %v4051, %v4052
      %v4054 = vsel %vm4018, %v3964, 0.0
      %v4055 = vadd.f32 %v4053, %v4054
      %v4056 = vsel %vm4018, %v3967, 0.0
      %v4057 = vadd.f32 %v4055, %v4056
      %v4058 = vsel %vm4018, %v3972, 0.0
      %v4059 = vadd.f32 %v4057, %v4058
      %v4060 = vsel %vm4018, %v3975, 0.0
      %v4061 = vadd.f32 %v4059, %v4060
      %v4062 = vsel %vm4018, %v3980, 0.0
      %v4063 = vadd.f32 %v4061, %v4062
      %v4064 = vsel %vm4018, %v3983, 0.0
      %v4065 = vadd.f32 %v4063, %v4064
      %v4066 = vsel %vm4018, %v3988, 0.0
      %v4067 = vadd.f32 %v4065, %v4066
      %v4068 = vsel %vm4018, %v3991, 0.0
      %v4069 = vadd.f32 %v4067, %v4068
      %v4070 = vsel %vm4018, %v3996, 0.0
      %v4071 = vadd.f32 %v4069, %v4070
      %v4072 = vsel %vm4018, %v3999, 0.0
      %v4073 = vadd.f32 %v4071, %v4072
      %v4074 = vsel %vm4018, %v4004, 0.0
      %v4075 = vadd.f32 %v4073, %v4074
      %v4076 = vsel %vm4018, %v4007, 0.0
      %v4077 = vadd.f32 %v4075, %v4076
      %v4078 = vsel %vm4018, %v4012, 0.0
      %v4079 = vadd.f32 %v4077, %v4078
      %v4080 = vsel %vm4018, %v4015, 0.0
      %v4081 = vadd.f32 %v4079, %v4080
      %v4082 = vrot.slane %v4081, 4
      %v4083 = vadd.f32 %v4081, %v4082
      %v4084 = vrot.slane %v4083, 2
      %v4085 = vadd.f32 %v4083, %v4084
      %v4086 = vrot.slane %v4085, 1
      %v4087 = vadd.f32 %v4085, %v4086
      %vm4088 = vcmask 57344
      %4089 = vst.msk [vmem:[%s406] sm:$0x1] %vm4088, %v4087
      %v4090 = vmul.f32 %v3892, %v3892
      %v4091 = vmul.f32 %v3895, %v3895
      %v4092 = vmul.f32 %v3900, %v3900
      %v4093 = vmul.f32 %v3903, %v3903
      %v4094 = vmul.f32 %v3908, %v3908
      %v4095 = vmul.f32 %v3911, %v3911
      %v4096 = vmul.f32 %v3916, %v3916
      %v4097 = vmul.f32 %v3919, %v3919
      %v4098 = vmul.f32 %v3924, %v3924
      %v4099 = vmul.f32 %v3927, %v3927
      %v4100 = vmul.f32 %v3932, %v3932
      %v4101 = vmul.f32 %v3935, %v3935
      %v4102 = vmul.f32 %v3940, %v3940
      %v4103 = vmul.f32 %v3943, %v3943
      %v4104 = vmul.f32 %v3948, %v3948
      %v4105 = vmul.f32 %v3951, %v3951
      %v4106 = vmul.f32 %v3956, %v3956
      %v4107 = vmul.f32 %v3959, %v3959
      %v4108 = vmul.f32 %v3964, %v3964
      %v4109 = vmul.f32 %v3967, %v3967
      %v4110 = vmul.f32 %v3972, %v3972
      %v4111 = vmul.f32 %v3975, %v3975
      %v4112 = vmul.f32 %v3980, %v3980
      %v4113 = vmul.f32 %v3983, %v3983
      %v4114 = vmul.f32 %v3988, %v3988
      %v4115 = vmul.f32 %v3991, %v3991
      %v4116 = vmul.f32 %v3996, %v3996
      %v4117 = vmul.f32 %v3999, %v3999
      %v4118 = vmul.f32 %v4004, %v4004
      %v4119 = vmul.f32 %v4007, %v4007
      %v4120 = vmul.f32 %v4012, %v4012
      %v4121 = vmul.f32 %v4015, %v4015
      %v4122 = vsel %vm4018, %v4090, 0.0
      %v4123 = vsel %vm4018, %v4091, 0.0
      %v4124 = vadd.f32 %v4122, %v4123
      %v4125 = vsel %vm4018, %v4092, 0.0
      %v4126 = vadd.f32 %v4124, %v4125
      %v4127 = vsel %vm4018, %v4093, 0.0
      %v4128 = vadd.f32 %v4126, %v4127
      %v4129 = vsel %vm4018, %v4094, 0.0
      %v4130 = vadd.f32 %v4128, %v4129
      %v4131 = vsel %vm4018, %v4095, 0.0
      %v4132 = vadd.f32 %v4130, %v4131
      %v4133 = vsel %vm4018, %v4096, 0.0
      %v4134 = vadd.f32 %v4132, %v4133
      %v4135 = vsel %vm4018, %v4097, 0.0
      %v4136 = vadd.f32 %v4134, %v4135
      %v4137 = vsel %vm4018, %v4098, 0.0
      %v4138 = vadd.f32 %v4136, %v4137
      %v4139 = vsel %vm4018, %v4099, 0.0
      %v4140 = vadd.f32 %v4138, %v4139
      %v4141 = vsel %vm4018, %v4100, 0.0
      %v4142 = vadd.f32 %v4140, %v4141
      %v4143 = vsel %vm4018, %v4101, 0.0
      %v4144 = vadd.f32 %v4142, %v4143
      %v4145 = vsel %vm4018, %v4102, 0.0
      %v4146 = vadd.f32 %v4144, %v4145
      %v4147 = vsel %vm4018, %v4103, 0.0
      %v4148 = vadd.f32 %v4146, %v4147
      %v4149 = vsel %vm4018, %v4104, 0.0
      %v4150 = vadd.f32 %v4148, %v4149
      %v4151 = vsel %vm4018, %v4105, 0.0
      %v4152 = vadd.f32 %v4150, %v4151
      %v4153 = vsel %vm4018, %v4106, 0.0
      %v4154 = vadd.f32 %v4152, %v4153
      %v4155 = vsel %vm4018, %v4107, 0.0
      %v4156 = vadd.f32 %v4154, %v4155
      %v4157 = vsel %vm4018, %v4108, 0.0
      %v4158 = vadd.f32 %v4156, %v4157
      %v4159 = vsel %vm4018, %v4109, 0.0
      %v4160 = vadd.f32 %v4158, %v4159
      %v4161 = vsel %vm4018, %v4110, 0.0
      %v4162 = vadd.f32 %v4160, %v4161
      %v4163 = vsel %vm4018, %v4111, 0.0
      %v4164 = vadd.f32 %v4162, %v4163
      %v4165 = vsel %vm4018, %v4112, 0.0
      %v4166 = vadd.f32 %v4164, %v4165
      %v4167 = vsel %vm4018, %v4113, 0.0
      %v4168 = vadd.f32 %v4166, %v4167
      %v4169 = vsel %vm4018, %v4114, 0.0
      %v4170 = vadd.f32 %v4168, %v4169
      %v4171 = vsel %vm4018, %v4115, 0.0
      %v4172 = vadd.f32 %v4170, %v4171
      %v4173 = vsel %vm4018, %v4116, 0.0
      %v4174 = vadd.f32 %v4172, %v4173
      %v4175 = vsel %vm4018, %v4117, 0.0
      %v4176 = vadd.f32 %v4174, %v4175
      %v4177 = vsel %vm4018, %v4118, 0.0
      %v4178 = vadd.f32 %v4176, %v4177
      %v4179 = vsel %vm4018, %v4119, 0.0
      %v4180 = vadd.f32 %v4178, %v4179
      %v4181 = vsel %vm4018, %v4120, 0.0
      %v4182 = vadd.f32 %v4180, %v4181
      %v4183 = vsel %vm4018, %v4121, 0.0
      %v4184 = vadd.f32 %v4182, %v4183
      %v4185 = vrot.slane %v4184, 4
      %v4186 = vadd.f32 %v4184, %v4185
      %v4187 = vrot.slane %v4186, 2
      %v4188 = vadd.f32 %v4186, %v4187
      %v4189 = vrot.slane %v4188, 1
      %v4190 = vadd.f32 %v4188, %v4189
      %4191 = vst.msk [vmem:[%s406 + $0x1] sm:$0x1] %vm4088, %v4190
      %4192 = vxpose.xlu0.b32.start [1/16] %v3892, 128
      %4193 = vxpose.xlu0.b32.cont [2/16] %v3895, 128
      %4194 = vxpose.xlu0.b32.cont [3/16] %v3900, 128
      %4195 = vxpose.xlu0.b32.cont [4/16] %v3903, 128
      %4196 = vxpose.xlu0.b32.cont [5/16] %v3908, 128
      %4197 = vxpose.xlu0.b32.cont [6/16] %v3911, 128
      %4198 = vxpose.xlu0.b32.cont [7/16] %v3916, 128
      %4199 = vxpose.xlu0.b32.cont [8/16] %v3919, 128
      %4200 = vxpose.xlu0.b32.cont [9/16] %v3924, 128
      %4201 = vxpose.xlu0.b32.cont [10/16] %v3927, 128
      %4202 = vxpose.xlu0.b32.cont [11/16] %v3932, 128
      %4203 = vxpose.xlu0.b32.cont [12/16] %v3935, 128
      %4204 = vxpose.xlu0.b32.cont [13/16] %v3940, 128
      %4205 = vxpose.xlu0.b32.cont [14/16] %v3943, 128
      %4206 = vxpose.xlu0.b32.cont [15/16] %v3948, 128
      %4207 = vxpose.xlu0.b32.end [16/16] %v3951, 128
      %v4208 = vpop.trf.xlu0
      %v4209 = vpop.trf.xlu0
      %v4210 = vpop.trf.xlu0
      %v4211 = vpop.trf.xlu0
      %v4212 = vpop.trf.xlu0
      %v4213 = vpop.trf.xlu0
      %v4214 = vpop.trf.xlu0
      %v4215 = vpop.trf.xlu0
      %v4216 = vpop.trf.xlu0
      %v4217 = vpop.trf.xlu0
      %v4218 = vpop.trf.xlu0
      %v4219 = vpop.trf.xlu0
      %v4220 = vpop.trf.xlu0
      %v4221 = vpop.trf.xlu0
      %v4222 = vpop.trf.xlu0
      %v4223 = vpop.trf.xlu0
      %4224 = vxpose.xlu0.b32.start [1/16] %v3956, 128
      %4225 = vxpose.xlu0.b32.cont [2/16] %v3959, 128
      %4226 = vxpose.xlu0.b32.cont [3/16] %v3964, 128
      %4227 = vxpose.xlu0.b32.cont [4/16] %v3967, 128
      %4228 = vxpose.xlu0.b32.cont [5/16] %v3972, 128
      %4229 = vxpose.xlu0.b32.cont [6/16] %v3975, 128
      %4230 = vxpose.xlu0.b32.cont [7/16] %v3980, 128
      %4231 = vxpose.xlu0.b32.cont [8/16] %v3983, 128
      %4232 = vxpose.xlu0.b32.cont [9/16] %v3988, 128
      %4233 = vxpose.xlu0.b32.cont [10/16] %v3991, 128
      %4234 = vxpose.xlu0.b32.cont [11/16] %v3996, 128
      %4235 = vxpose.xlu0.b32.cont [12/16] %v3999, 128
      %4236 = vxpose.xlu0.b32.cont [13/16] %v4004, 128
      %4237 = vxpose.xlu0.b32.cont [14/16] %v4007, 128
      %4238 = vxpose.xlu0.b32.cont [15/16] %v4012, 128
      %4239 = vxpose.xlu0.b32.end [16/16] %v4015, 128
      %v4240 = vpop.trf.xlu0
      %v4241 = vpop.trf.xlu0
      %v4242 = vpop.trf.xlu0
      %v4243 = vpop.trf.xlu0
      %v4244 = vpop.trf.xlu0
      %v4245 = vpop.trf.xlu0
      %v4246 = vpop.trf.xlu0
      %v4247 = vpop.trf.xlu0
      %v4248 = vpop.trf.xlu0
      %v4249 = vpop.trf.xlu0
      %v4250 = vpop.trf.xlu0
      %v4251 = vpop.trf.xlu0
      %v4252 = vpop.trf.xlu0
      %v4253 = vpop.trf.xlu0
      %v4254 = vpop.trf.xlu0
      %v4255 = vpop.trf.xlu0
      %v4256 = vpack.c.bf16 %v4208, %v4208
      %v4257 = vpack.c.bf16 %v4240, %v4240
      %v4260 = vunpack.c.l.b16 %v4256
      %v4261 = vunpack.c.l.b16 %v4257
      %v4262 = vpack.c.b16 %v4261, %v4260
      %4264 = vst [vmem:[%s398] sm:$0xff] %v4262
      %s4265 = smul.u32 2, %s22
      %p4266 = scmp.lt.s32.totalorder %s21, 1
      %s4267 = scalar_select %p4266, %s21, 1
      %p4268 = scmp.lt.s32.totalorder %s4265, 1
      %s4269 = scalar_select %p4268, %s4265, 1
      %s4270 = smul.addr %s4267, 2
      %s4271 = sadd.s32 %s4269, %s4270
      %s4272 = smul.addr %s4271, 4
      %s4273 = scalar_lea.vmem %s4, %s4272
      %p4274 = scmp.lt.s32.totalorder %s21, 1
      %s4275 = scalar_select %p4274, %s21, 1
      %p4276 = scmp.lt.s32.totalorder %s22, 0
      %s4277 = scalar_select %p4276, %s22, 0
      %s4278 = sadd.s32 %s4277, %s4275
      %s4279 = smul.addr %s4278, 2
      %s4280 = scalar_lea.vmem %s5, %s4279
      // Predicated region
      $region37: #{conv_block_forward.2} parent=35 // pred_check
        %p4281 = pneg %p162
      $region38: #{conv_block_forward.2} parent=35 // pred_check_branch
        %4283 = sbr.rel (%p4281) target = $region40
      $region39: #{conv_block_forward.2} parent=35 // pred_region
        %s4284 = smul.u32 2, %s22
      $region40: #{conv_block_forward.2} parent=35 // pred_fallthru
        _
      // Predicated region
      $region41: #{conv_block_forward.2} parent=35 // pred_check
        %p4285 = pneg %p190
      $region42: #{conv_block_forward.2} parent=35 // pred_check_branch
        %4287 = sbr.rel (%p4285) target = $region44
      $region43: #{conv_block_forward.2} parent=35 // pred_region
        _
      $region44: #{conv_block_forward.2} parent=35 // pred_fallthru
        _
    $region36: #{conv_block_forward.2} parent=5 // pred_fallthru
      _
    %p4288 = scmp.le.s32.totalorder 2, %s12
    // Predicated region
    $region45: #{conv_block_forward.2} parent=5 // pred_check
      %p4289 = pneg %p4288
    $region46: #{conv_block_forward.2} parent=5 // pred_check_branch
      %4291 = sbr.rel (%p4289) target = $region48
    $region47: #{conv_block_forward.2} parent=5 // pred_region
      %s4292 = ssub.s32 %s12, 2
      // Predicated region
      $region49: #{conv_block_forward.2} parent=47 // pred_check
        %p4293 = pneg %p168
      $region50: #{conv_block_forward.2} parent=47 // pred_check_branch
        %4295 = sbr.rel (%p4293) target = $region52
      $region51: #{conv_block_forward.2} parent=47 // pred_region
        %s4296 = smul.u32 2, %s24
        %p4297 = scmp.lt.s32.totalorder %s23, 1
        %s4298 = scalar_select %p4297, %s23, 1
        %p4299 = scmp.lt.s32.totalorder %s4296, 1
        %s4300 = scalar_select %p4299, %s4296, 1
        %s4301 = smul.addr %s4298, 2
        %s4302 = sadd.s32 %s4300, %s4301
        %s4303 = smul.addr %s4302, 4
        %s4304 = scalar_lea.vmem %s4, %s4303
      $region52: #{conv_block_forward.2} parent=47 // pred_fallthru
        _
      // Predicated region
      $region53: #{conv_block_forward.2} parent=47 // pred_check
        %p4305 = pneg %p196
      $region54: #{conv_block_forward.2} parent=47 // pred_check_branch
        %4307 = sbr.rel (%p4305) target = $region56
      $region55: #{conv_block_forward.2} parent=47 // pred_region
        %p4308 = scmp.lt.s32.totalorder %s23, 1
        %s4309 = scalar_select %p4308, %s23, 1
        %p4310 = scmp.lt.s32.totalorder %s24, 0
        %s4311 = scalar_select %p4310, %s24, 0
        %s4312 = sadd.s32 %s4311, %s4309
        %s4313 = smul.addr %s4312, 2
        %s4314 = scalar_lea.vmem %s5, %s4313
      $region56: #{conv_block_forward.2} parent=47 // pred_fallthru
        _
    $region48: #{conv_block_forward.2} parent=5 // pred_fallthru
      _
  $region6: #{conv_block_forward.2} parent=0 // loop_footer
    %s16 = sadd.s32 1, %s12
  $region7: #{conv_block_forward.2} parent=0 // loop_footer_branch
    %11 = sbr.rel target = $region3
  $region8: #{conv_block_forward.2} parent=0 // loop_exit
    _

</llo_original>
